<compile_context>
chip_gen: v7x
topology: tpu7x:2x2x1
jax: 0.10.0
libtpu: 0.0.40
codegen_flags: <defaults>
</compile_context>

<pallas_src>
import functools

import jax
import jax.numpy as jnp
from jax import lax
from jax.experimental import pallas as pl
from jax.experimental.pallas import tpu as pltpu

CPAD = 128  # lane-padded channel width used for every layer


def _round_up(x, m):
    return (x + m - 1) // m * m


# ----------------------------------------------------------------------------
# Kernel: one grid step = one conv layer applied to one row band of one image.
# ----------------------------------------------------------------------------
def _srvgg_layer_kernel(x_ref, w_ref, b_ref, a_ref, p_ref, o_ref, buf_ref, *,
                        H, W, TH, HALO, R, WB):
    """Refs:
      x_ref  : (1, 1, R, W, CPAD)  bf16  input band (with HALO recompute rows)
      w_ref  : (1, 3, 3*CPAD, CPAD) bf16 this layer's packed weights (dy major)
      b_ref  : (1, 1, CPAD) f32          this layer's bias
      a_ref  : (1, 1, CPAD) f32          this layer's PReLU slopes
      p_ref  : (CPAD, CPAD) bf16         residual permutation (c -> c*r*r+i*r+j)
      o_ref  : (1, 1, TH, W, CPAD) bf16  output band (pre-pixel-shuffle layout)
      buf_ref: (2, R+2, WB, CPAD) bf16   VMEM ping-pong activation buffers
    """
    HB = R + 2
    band = pl.program_id(1)
    l = pl.program_id(2)
    n_layers = pl.num_programs(2)
    parity = l % 2          # ping-pong slot holding this layer's input

    # ---- band setup (layer 0 only): zero halo strips, stage the input band ----
    @pl.when(l == 0)
    def _setup():
        zrow = jnp.zeros((2, 1, WB, CPAD), buf_ref.dtype)
        buf_ref[:, 0:1, :, :] = zrow                       # top conv halo row
        buf_ref[:, R + 1:R + 2, :, :] = zrow               # bottom conv halo row
        buf_ref[:, :, 0:1, :] = jnp.zeros((2, HB, 1, CPAD), buf_ref.dtype)
        buf_ref[:, :, W + 1:WB, :] = jnp.zeros((2, HB, WB - W - 1, CPAD),
                                               buf_ref.dtype)
        # Stage the band (already bf16, already row/channel padded) into slot 0.
        buf_ref[0, 1:R + 1, 1:W + 1, :] = x_ref[0, 0]

    # ---- 3x3 conv: 3 accumulating MXU matmuls (one per dy, K = 3*CPAD) ----
    src = buf_ref.at[parity]
    acc = jnp.zeros((R * W, CPAD), jnp.float32)
    for dy in range(3):
        taps = [src[dy:dy + R, dx:dx + W, :] for dx in range(3)]
        lhs = jnp.concatenate(taps, axis=-1).reshape(R * W, 3 * CPAD)
        acc = acc + jnp.dot(lhs, w_ref[0, dy],
                            preferred_element_type=jnp.float32)
    acc = acc + b_ref[0]

    # Per-row validity mask: rows of the recompute halo that fall outside the
    # image must stay exactly zero so they act as 'same' zero padding for the
    # next layer.
    g = band * TH - HALO + lax.broadcasted_iota(jnp.int32, (R, 1, 1), 0)
    row_ok = jnp.logical_and(g >= 0, g < H)

    is_last = l == n_layers - 1

    # Hidden-layer epilogue value: PReLU -> row mask -> bf16.
    act = jnp.where(acc >= 0.0, acc, a_ref[0] * acc).reshape(R, W, CPAD)
    act = jnp.where(row_ok, act, 0.0).astype(buf_ref.dtype)

    @pl.when(jnp.logical_and(jnp.logical_not(is_last), parity == 0))
    def _store_to_slot1():
        buf_ref[1, 1:R + 1, 1:W + 1, :] = act

    @pl.when(jnp.logical_and(jnp.logical_not(is_last), parity == 1))
    def _store_to_slot0():
        buf_ref[0, 1:R + 1, 1:W + 1, :] = act

    # Last layer: fuse the nearest-upsample residual (x @ P routes channel c of
    # x into output lane c*r*r + i*r + j) and emit the band's output rows.
    @pl.when(is_last)
    def _store_out():
        xc = x_ref[0, 0, HALO:HALO + TH].reshape(TH * W, CPAD)
        res = jnp.dot(xc, p_ref[...], preferred_element_type=jnp.float32)
        out = acc.reshape(R, W, CPAD)[HALO:HALO + TH].reshape(TH * W, CPAD) + res
        o_ref[0, 0] = out.reshape(TH, W, CPAD).astype(o_ref.dtype)


# ----------------------------------------------------------------------------
# Parameter construction (deterministic, synthetic), packed + lane-padded
# ----------------------------------------------------------------------------
def init_params(key, num_in_ch, num_out_ch, num_feat, num_conv, upscale):
    r = upscale
    chans = ([(num_in_ch, num_feat)] +
             [(num_feat, num_feat)] * num_conv +
             [(num_feat, num_out_ch * r * r)])
    L = len(chans)
    assert max(max(c) for c in chans) <= CPAD, "channel count exceeds lane pad"

    ws, bs, als, raw = [], [], [], []
    for idx, (cin, cout) in enumerate(chans):
        key, kw, kb = jax.random.split(key, 3)
        w = 0.05 * jax.random.normal(kw, (3, 3, cin, cout), jnp.float32)
        bv = 0.01 * jax.random.normal(kb, (cout,), jnp.float32)
        alpha = 0.25 if idx < L - 1 else 0.0   # PReLU on all but the last conv
        raw.append((w, bv, alpha))

        w_full = jnp.zeros((3, 3, CPAD, CPAD), jnp.float32)
        w_full = w_full.at[:, :, :cin, :cout].set(w)
        b_full = jnp.zeros((CPAD,), jnp.float32).at[:cout].set(bv)
        a_full = jnp.zeros((CPAD,), jnp.float32)
        if idx < L - 1:
            a_full = a_full.at[:cout].set(alpha)
        # (3, 3*CPAD, CPAD): row index = dx*CPAD + cin  (matches the lhs concat)
        ws.append(w_full.reshape(3, 3 * CPAD, CPAD))
        bs.append(b_full.reshape(1, CPAD))
        als.append(a_full.reshape(1, CPAD))

    w_p = jnp.stack(ws).astype(jnp.bfloat16)   # (L, 3, 3*CPAD, CPAD)
    b_p = jnp.stack(bs)                        # (L, 1, CPAD)
    a_p = jnp.stack(als)                       # (L, 1, CPAD)

    # Residual permutation: lane c of x -> output lane c*r*r + i*r + j.
    perm = jnp.zeros((CPAD, CPAD), jnp.float32)
    for c in range(num_out_ch):
        for ij in range(r * r):
            perm = perm.at[c, c * r * r + ij].set(1.0)
    perm = perm.astype(jnp.bfloat16)

    meta = (num_in_ch, num_out_ch, r, L)
    return (w_p, b_p, a_p, perm, raw, meta)


# ----------------------------------------------------------------------------
# Tile-size selection (keep per-band working set well inside VMEM)
# ----------------------------------------------------------------------------
def _pick_tile_rows(H, W, L, budget_bytes=24 << 20):
    wb = _round_up(W + 2, 8)
    for th in range(H, 0, -1):
        if H % th:
            continue
        halo = 0 if th == H else L
        r_rows = th + 2 * halo
        need = 2 * (r_rows + 2) * wb * CPAD * 2        # bf16 ping-pong scratch
        need += 2 * r_rows * W * CPAD * 2              # input band (dbl buffered)
        need += 2 * th * W * CPAD * 2                  # output band (dbl buffered)
        if need <= budget_bytes:
            return th
    return 1


# ----------------------------------------------------------------------------
# Forward pass (matches SRVGGNetCompact.forward)
# ----------------------------------------------------------------------------
def srvgg_forward(params, x_nchw, tile_rows=None):
    w_p, b_p, a_p, perm, _, meta = params
    num_in_ch, num_out_ch, r, L = meta
    N, Cin, H, W = x_nchw.shape
    assert Cin == num_in_ch
    assert num_in_ch == num_out_ch  # required by `out += base` in the module
    assert W % 8 == 0, "W must be a multiple of 8 (sublane-aligned reshapes)"
    cr2 = num_out_ch * r * r

    if tile_rows is None:
        tile_rows = _pick_tile_rows(H, W, L)
    TH = tile_rows
    assert H % TH == 0, "tile_rows must divide H"
    nb = H // TH
    HALO = L if nb > 1 else 0          # recompute halo rows per band side
    R = TH + 2 * HALO                  # rows held per band
    WB = _round_up(W + 2, 8)           # sublane-aligned scratch width
    HB = R + 2

    # VMEM accounting -> scoped-VMEM limit (review: re-derive instead of fixed).
    vmem_need = (2 * HB * WB * CPAD * 2                 # activation scratch
                 + 2 * R * W * CPAD * 2                 # input band blocks
                 + 2 * TH * W * CPAD * 2                # output band blocks
                 + 2 * (9 * CPAD * CPAD * 2 + 2 * CPAD * 4)  # weights/bias/alpha
                 + 2 * CPAD * CPAD * 2)                 # permutation matrix
    vmem_limit = int(min(max(4 * vmem_need, 32 << 20), 48 << 20))

    # NCHW -> NHWC, bf16, channel pad to 128 lanes, row pad by the halo, then
    # slice overlapping row bands (zeros outside the image give correct 'same'
    # padding at the true image boundary; the in-kernel mask keeps them zero).
    x_nhwc = jnp.transpose(x_nchw, (0, 2, 3, 1)).astype(jnp.bfloat16)
    x_pad = jnp.pad(x_nhwc, ((0, 0), (HALO, HALO), (0, 0), (0, CPAD - Cin)))
    x_bands = jnp.stack([x_pad[:, bi * TH: bi * TH + R] for bi in range(nb)],
                        axis=1)                          # (N, nb, R, W, CPAD)

    kernel = functools.partial(_srvgg_layer_kernel, H=H, W=W, TH=TH, HALO=HALO,
                               R=R, WB=WB)

    out_bands = pl.pallas_call(
        kernel,
        out_shape=jax.ShapeDtypeStruct((N, nb, TH, W, CPAD), jnp.bfloat16),
        grid=(N, nb, L),
        in_specs=[
            pl.BlockSpec((1, 1, R, W, CPAD), lambda n, b, l: (n, b, 0, 0, 0)),
            pl.BlockSpec((1, 3, 3 * CPAD, CPAD), lambda n, b, l: (l, 0, 0, 0)),
            pl.BlockSpec((1, 1, CPAD), lambda n, b, l: (l, 0, 0)),
            pl.BlockSpec((1, 1, CPAD), lambda n, b, l: (l, 0, 0)),
            pl.BlockSpec((CPAD, CPAD), lambda n, b, l: (0, 0)),
        ],
        out_specs=pl.BlockSpec((1, 1, TH, W, CPAD),
                               lambda n, b, l: (n, b, 0, 0, 0)),
        scratch_shapes=[pltpu.VMEM((2, HB, WB, CPAD), jnp.bfloat16)],
        compiler_params=pltpu.CompilerParams(
            dimension_semantics=("parallel", "parallel", "arbitrary"),
            vmem_limit_bytes=vmem_limit),
    )(x_bands, w_p, b_p, a_p, perm)

    # Pixel shuffle (pure rearrangement; residual was already fused in-kernel).
    out = out_bands.reshape(N, H, W, CPAD)[..., :cr2].astype(jnp.float32)
    out = out.reshape(N, H, W, num_out_ch, r, r)
    out = jnp.transpose(out, (0, 1, 4, 2, 5, 3)).reshape(N, H * r, W * r,
                                                         num_out_ch)
    return jnp.transpose(out, (0, 3, 1, 2))  # NHWC -> NCHW


# ----------------------------------------------------------------------------
# Pure-JAX f32 reference of the true module semantics (sanity check only)
# ----------------------------------------------------------------------------
def srvgg_reference(params, x_nchw):
    _, _, _, _, raw, meta = params
    num_in_ch, num_out_ch, r, L = meta
    N, Cin, H, W = x_nchw.shape
    x = jnp.transpose(x_nchw, (0, 2, 3, 1)).astype(jnp.float32)  # NHWC
    h = x
    for idx, (w, bv, alpha) in enumerate(raw):
        h = lax.conv_general_dilated(
            h, w, window_strides=(1, 1), padding="SAME",
            dimension_numbers=("NHWC", "HWIO", "NHWC"),
            precision=lax.Precision.HIGHEST)
        h = h + bv
        if idx < L - 1:
            h = jnp.where(h >= 0, h, alpha * h)
    out = h.reshape(N, H, W, num_out_ch, r, r)
    out = jnp.transpose(out, (0, 1, 4, 2, 5, 3)).reshape(N, H * r, W * r,
                                                         num_out_ch)
    base = jnp.repeat(jnp.repeat(x[..., :num_out_ch], r, axis=1), r, axis=2)
    out = out + base
    return jnp.transpose(out, (0, 3, 1, 2))


# ----------------------------------------------------------------------------
if __name__ == "__main__":
    # Small config consistent with the module's constructor.
    num_in_ch, num_out_ch = 3, 3
    num_feat, num_conv, upscale = 16, 2, 2
    N, H, W = 2, 16, 16

    key = jax.random.PRNGKey(0)
    key, kx = jax.random.split(key)
    x = jax.random.normal(kx, (N, num_in_ch, H, W), jnp.float32)

    params = init_params(key, num_in_ch, num_out_ch, num_feat, num_conv,
                         upscale)

    # Multi-band path (2 row bands -> exercises the recompute halo + row masks
    # and the parallel band axis).
    fwd_tiled = jax.jit(lambda xx: srvgg_forward(params, xx, tile_rows=8))
    out = jax.block_until_ready(fwd_tiled(x))

    expected_shape = (N, num_out_ch, H * upscale, W * upscale)
    assert out.shape == expected_shape, (out.shape, expected_shape)
    assert bool(jnp.isfinite(out).all())

    ref = jax.block_until_ready(srvgg_reference(params, x))
    err_tiled = float(jnp.max(jnp.abs(out - ref)))

    # Single-band path (no halo) as a second coverage point.
    fwd_full = jax.jit(lambda xx: srvgg_forward(params, xx, tile_rows=H))
    out_full = jax.block_until_ready(fwd_full(x))
    err_full = float(jnp.max(jnp.abs(out_full - ref)))

    # bf16 weights/activations/residual/output end-to-end vs an f32 reference:
    # expected max abs error is ~1e-2 for N(0,1) inputs, so 5e-2 is a safe but
    # still meaningful tolerance (indexing bugs produce O(0.1-1) errors).
    tol = 5e-2
    assert err_tiled < tol, f"tiled max abs error vs reference: {err_tiled}"
    assert err_full < tol, f"full-frame max abs error vs reference: {err_full}"

    print("KERNEL_OK")
</pallas_src>

<mosaic_0001>
module attributes {stable_mosaic.version = 11 : i64} {
  func.func @_srvgg_layer_kernel(%arg0: i32, %arg1: i32, %arg2: i32, %arg3: memref<1x1x16x16x128xbf16, #tpu.memory_space<vmem>>, %arg4: memref<1x3x384x128xbf16, #tpu.memory_space<vmem>>, %arg5: memref<1x1x128xf32, #tpu.memory_space<vmem>>, %arg6: memref<1x1x128xf32, #tpu.memory_space<vmem>>, %arg7: memref<128x128xbf16, #tpu.memory_space<vmem>>, %arg8: memref<1x1x8x16x128xbf16, #tpu.memory_space<vmem>>, %arg9: memref<2x18x24x128xbf16, #tpu.memory_space<vmem>>) attributes {dimension_semantics = [#tpu.dimension_semantics<parallel>, #tpu.dimension_semantics<parallel>, #tpu.dimension_semantics<arbitrary>], iteration_bounds = array<i64: 2, 2, 4>, scalar_prefetch = 0 : i64, scratch_operands = 1 : i64, tpu.core_type = #tpu.core_type<tc>, window_params = [{transform_indices = @transform_0, window_bounds = array<i64: 1, 1, 16, 16, 128>}, {transform_indices = @transform_1, window_bounds = array<i64: 1, 3, 384, 128>}, {transform_indices = @transform_2, window_bounds = array<i64: 1, 1, 128>}, {transform_indices = @transform_3, window_bounds = array<i64: 1, 1, 128>}, {pipeline_mode = #tpu.pipeline_mode<synchronous>, transform_indices = @transform_4, window_bounds = array<i64: 128, 128>}, {transform_indices = @transform_5, window_bounds = array<i64: 1, 1, 8, 16, 128>}]} {
    %c2_i32 = arith.constant 2 : i32
    %c0_i32 = arith.constant 0 : i32
    %0 = arith.cmpi eq, %c2_i32, %c0_i32 : i32
    %c1_i32 = arith.constant 1 : i32
    %1 = arith.select %0, %c1_i32, %c2_i32 : i32
    %2 = arith.remsi %arg2, %1 : i32
    %c0_i32_0 = arith.constant 0 : i32
    %3 = arith.cmpi ne, %2, %c0_i32_0 : i32
    %c0_i32_1 = arith.constant 0 : i32
    %4 = arith.cmpi slt, %2, %c0_i32_1 : i32
    %c0_i32_2 = arith.constant 0 : i32
    %5 = arith.cmpi slt, %1, %c0_i32_2 : i32
    %6 = arith.xori %4, %5 : i1
    %7 = arith.andi %6, %3 : i1
    %8 = arith.addi %2, %1 : i32
    %9 = arith.select %7, %8, %2 : i32
    %c0_i32_3 = arith.constant 0 : i32
    %10 = arith.cmpi eq, %arg2, %c0_i32_3 : i32
    %11 = arith.extui %10 : i1 to i32
    %c0_i32_4 = arith.constant 0 : i32
    %12 = arith.cmpi ne, %11, %c0_i32_4 : i32
    scf.if %12 {
      %cst_86 = arith.constant 0.000000e+00 : bf16
      %99 = vector.broadcast %cst_86 : bf16 to vector<2x1x24x128xbf16>
      %c0_87 = arith.constant 0 : index
      %c0_88 = arith.constant 0 : index
      %c0_89 = arith.constant 0 : index
      %c0_90 = arith.constant 0 : index
      %100 = vector.load %arg9[%c0_87, %c0_88, %c0_89, %c0_90] : memref<2x18x24x128xbf16, #tpu.memory_space<vmem>>, vector<2x1x24x128xbf16>
      tpu.vector_store %arg9[%c0_87, %c0_88, %c0_89, %c0_90], %99 {strides = array<i32>} : memref<2x18x24x128xbf16, #tpu.memory_space<vmem>>, vector<2x1x24x128xbf16>,
      %c0_91 = arith.constant 0 : index
      %c17 = arith.constant 17 : index
      %c0_92 = arith.constant 0 : index
      %c0_93 = arith.constant 0 : index
      %101 = vector.load %arg9[%c0_91, %c17, %c0_92, %c0_93] : memref<2x18x24x128xbf16, #tpu.memory_space<vmem>>, vector<2x1x24x128xbf16>
      tpu.vector_store %arg9[%c0_91, %c17, %c0_92, %c0_93], %99 {strides = array<i32>} : memref<2x18x24x128xbf16, #tpu.memory_space<vmem>>, vector<2x1x24x128xbf16>,
      %cst_94 = arith.constant 0.000000e+00 : bf16
      %102 = vector.broadcast %cst_94 : bf16 to vector<2x18x1x128xbf16>
      %c0_95 = arith.constant 0 : index
      %c0_96 = arith.constant 0 : index
      %c0_97 = arith.constant 0 : index
      %c0_98 = arith.constant 0 : index
      %103 = vector.load %arg9[%c0_95, %c0_96, %c0_97, %c0_98] : memref<2x18x24x128xbf16, #tpu.memory_space<vmem>>, vector<2x18x1x128xbf16>
      tpu.vector_store %arg9[%c0_95, %c0_96, %c0_97, %c0_98], %102 {strides = array<i32>} : memref<2x18x24x128xbf16, #tpu.memory_space<vmem>>, vector<2x18x1x128xbf16>,
      %cst_99 = arith.constant 0.000000e+00 : bf16
      %104 = vector.broadcast %cst_99 : bf16 to vector<2x18x7x128xbf16>
      %c0_100 = arith.constant 0 : index
      %c0_101 = arith.constant 0 : index
      %c17_102 = arith.constant 17 : index
      %c0_103 = arith.constant 0 : index
      %105 = vector.load %arg9[%c0_100, %c0_101, %c17_102, %c0_103] : memref<2x18x24x128xbf16, #tpu.memory_space<vmem>>, vector<2x18x7x128xbf16>
      tpu.vector_store %arg9[%c0_100, %c0_101, %c17_102, %c0_103], %104 {strides = array<i32>} : memref<2x18x24x128xbf16, #tpu.memory_space<vmem>>, vector<2x18x7x128xbf16>,
      %c0_104 = arith.constant 0 : index
      %c0_105 = arith.constant 0 : index
      %c0_106 = arith.constant 0 : index
      %c0_107 = arith.constant 0 : index
      %c0_108 = arith.constant 0 : index
      %106 = vector.load %arg3[%c0_104, %c0_105, %c0_106, %c0_107, %c0_108] : memref<1x1x16x16x128xbf16, #tpu.memory_space<vmem>>, vector<1x1x16x16x128xbf16>
      %107 = vector.shape_cast %106 : vector<1x1x16x16x128xbf16> to vector<16x16x128xbf16>
      %c0_109 = arith.constant 0 : index
      %c1_110 = arith.constant 1 : index
      %c1_111 = arith.constant 1 : index
      %c0_112 = arith.constant 0 : index
      %108 = vector.load %arg9[%c0_109, %c1_110, %c1_111, %c0_112] : memref<2x18x24x128xbf16, #tpu.memory_space<vmem>>, vector<1x16x16x128xbf16>
      %109 = vector.shape_cast %108 : vector<1x16x16x128xbf16> to vector<16x16x128xbf16>
      %110 = vector.shape_cast %107 : vector<16x16x128xbf16> to vector<1x16x16x128xbf16>
      tpu.vector_store %arg9[%c0_109, %c1_110, %c1_111, %c0_112], %110 {strides = array<i32>} : memref<2x18x24x128xbf16, #tpu.memory_space<vmem>>, vector<1x16x16x128xbf16>,
    } else {
    }
    %cst = arith.constant 0.000000e+00 : f32
    %13 = vector.broadcast %cst : f32 to vector<256x128xf32>
    %c0_i32_5 = arith.constant 0 : i32
    %c0_i32_6 = arith.constant 0 : i32
    %c0_i32_7 = arith.constant 0 : i32
    %14 = tpu.memref_slice %arg9[%9, %c0_i32_5, %c0_i32_6, %c0_i32_7] : memref<2x18x24x128xbf16, #tpu.memory_space<vmem>> -> memref<1x18x24x128xbf16, #tpu.memory_space<vmem>>
    %15 = tpu.memref_squeeze %14 : memref<1x18x24x128xbf16, #tpu.memory_space<vmem>> -> memref<18x24x128xbf16, #tpu.memory_space<vmem>>
    %c0 = arith.constant 0 : index
    %c0_8 = arith.constant 0 : index
    %c0_9 = arith.constant 0 : index
    %16 = vector.load %15[%c0, %c0_8, %c0_9] : memref<18x24x128xbf16, #tpu.memory_space<vmem>>, vector<16x16x128xbf16>
    %c0_i32_10 = arith.constant 0 : i32
    %c0_i32_11 = arith.constant 0 : i32
    %c0_i32_12 = arith.constant 0 : i32
    %17 = tpu.memref_slice %arg9[%9, %c0_i32_10, %c0_i32_11, %c0_i32_12] : memref<2x18x24x128xbf16, #tpu.memory_space<vmem>> -> memref<1x18x24x128xbf16, #tpu.memory_space<vmem>>
    %18 = tpu.memref_squeeze %17 : memref<1x18x24x128xbf16, #tpu.memory_space<vmem>> -> memref<18x24x128xbf16, #tpu.memory_space<vmem>>
    %c0_13 = arith.constant 0 : index
    %c1 = arith.constant 1 : index
    %c0_14 = arith.constant 0 : index
    %19 = vector.load %18[%c0_13, %c1, %c0_14] : memref<18x24x128xbf16, #tpu.memory_space<vmem>>, vector<16x16x128xbf16>
    %c0_i32_15 = arith.constant 0 : i32
    %c0_i32_16 = arith.constant 0 : i32
    %c0_i32_17 = arith.constant 0 : i32
    %20 = tpu.memref_slice %arg9[%9, %c0_i32_15, %c0_i32_16, %c0_i32_17] : memref<2x18x24x128xbf16, #tpu.memory_space<vmem>> -> memref<1x18x24x128xbf16, #tpu.memory_space<vmem>>
    %21 = tpu.memref_squeeze %20 : memref<1x18x24x128xbf16, #tpu.memory_space<vmem>> -> memref<18x24x128xbf16, #tpu.memory_space<vmem>>
    %c0_18 = arith.constant 0 : index
    %c2 = arith.constant 2 : index
    %c0_19 = arith.constant 0 : index
    %22 = vector.load %21[%c0_18, %c2, %c0_19] : memref<18x24x128xbf16, #tpu.memory_space<vmem>>, vector<16x16x128xbf16>
    %23 = tpu.concatenate %16, %19, %22 in 2 : vector<16x16x128xbf16>, vector<16x16x128xbf16>, vector<16x16x128xbf16> -> vector<16x16x384xbf16>
    %24 = vector.shape_cast %23 : vector<16x16x384xbf16> to vector<256x384xbf16>
    %c0_20 = arith.constant 0 : index
    %c0_21 = arith.constant 0 : index
    %c0_22 = arith.constant 0 : index
    %c0_23 = arith.constant 0 : index
    %25 = vector.load %arg4[%c0_20, %c0_21, %c0_22, %c0_23] : memref<1x3x384x128xbf16, #tpu.memory_space<vmem>>, vector<1x1x384x128xbf16>
    %26 = vector.shape_cast %25 : vector<1x1x384x128xbf16> to vector<384x128xbf16>
    %cst_24 = arith.constant dense<0.000000e+00> : vector<256x128xf32>
    %27 = tpu.matmul %24, %26, %cst_24 {dimension_numbers = #tpu.dot_dimension_numbers<[1], [0], [0], [1], [0, 0, 1, 1], [], []>} : vector<256x384xbf16>, vector<384x128xbf16>, vector<256x128xf32> -> vector<256x128xf32>
    %28 = arith.addf %13, %27 : vector<256x128xf32>
    %c0_i32_25 = arith.constant 0 : i32
    %c0_i32_26 = arith.constant 0 : i32
    %c0_i32_27 = arith.constant 0 : i32
    %29 = tpu.memref_slice %arg9[%9, %c0_i32_25, %c0_i32_26, %c0_i32_27] : memref<2x18x24x128xbf16, #tpu.memory_space<vmem>> -> memref<1x18x24x128xbf16, #tpu.memory_space<vmem>>
    %30 = tpu.memref_squeeze %29 : memref<1x18x24x128xbf16, #tpu.memory_space<vmem>> -> memref<18x24x128xbf16, #tpu.memory_space<vmem>>
    %c1_28 = arith.constant 1 : index
    %c0_29 = arith.constant 0 : index
    %c0_30 = arith.constant 0 : index
    %31 = vector.load %30[%c1_28, %c0_29, %c0_30] : memref<18x24x128xbf16, #tpu.memory_space<vmem>>, vector<16x16x128xbf16>
    %c0_i32_31 = arith.constant 0 : i32
    %c0_i32_32 = arith.constant 0 : i32
    %c0_i32_33 = arith.constant 0 : i32
    %32 = tpu.memref_slice %arg9[%9, %c0_i32_31, %c0_i32_32, %c0_i32_33] : memref<2x18x24x128xbf16, #tpu.memory_space<vmem>> -> memref<1x18x24x128xbf16, #tpu.memory_space<vmem>>
    %33 = tpu.memref_squeeze %32 : memref<1x18x24x128xbf16, #tpu.memory_space<vmem>> -> memref<18x24x128xbf16, #tpu.memory_space<vmem>>
    %c1_34 = arith.constant 1 : index
    %c1_35 = arith.constant 1 : index
    %c0_36 = arith.constant 0 : index
    %34 = vector.load %33[%c1_34, %c1_35, %c0_36] : memref<18x24x128xbf16, #tpu.memory_space<vmem>>, vector<16x16x128xbf16>
    %c0_i32_37 = arith.constant 0 : i32
    %c0_i32_38 = arith.constant 0 : i32
    %c0_i32_39 = arith.constant 0 : i32
    %35 = tpu.memref_slice %arg9[%9, %c0_i32_37, %c0_i32_38, %c0_i32_39] : memref<2x18x24x128xbf16, #tpu.memory_space<vmem>> -> memref<1x18x24x128xbf16, #tpu.memory_space<vmem>>
    %36 = tpu.memref_squeeze %35 : memref<1x18x24x128xbf16, #tpu.memory_space<vmem>> -> memref<18x24x128xbf16, #tpu.memory_space<vmem>>
    %c1_40 = arith.constant 1 : index
    %c2_41 = arith.constant 2 : index
    %c0_42 = arith.constant 0 : index
    %37 = vector.load %36[%c1_40, %c2_41, %c0_42] : memref<18x24x128xbf16, #tpu.memory_space<vmem>>, vector<16x16x128xbf16>
    %38 = tpu.concatenate %31, %34, %37 in 2 : vector<16x16x128xbf16>, vector<16x16x128xbf16>, vector<16x16x128xbf16> -> vector<16x16x384xbf16>
    %39 = vector.shape_cast %38 : vector<16x16x384xbf16> to vector<256x384xbf16>
    %c0_43 = arith.constant 0 : index
    %c1_44 = arith.constant 1 : index
    %c0_45 = arith.constant 0 : index
    %c0_46 = arith.constant 0 : index
    %40 = vector.load %arg4[%c0_43, %c1_44, %c0_45, %c0_46] : memref<1x3x384x128xbf16, #tpu.memory_space<vmem>>, vector<1x1x384x128xbf16>
    %41 = vector.shape_cast %40 : vector<1x1x384x128xbf16> to vector<384x128xbf16>
    %cst_47 = arith.constant dense<0.000000e+00> : vector<256x128xf32>
    %42 = tpu.matmul %39, %41, %cst_47 {dimension_numbers = #tpu.dot_dimension_numbers<[1], [0], [0], [1], [0, 0, 1, 1], [], []>} : vector<256x384xbf16>, vector<384x128xbf16>, vector<256x128xf32> -> vector<256x128xf32>
    %43 = arith.addf %28, %42 : vector<256x128xf32>
    %c0_i32_48 = arith.constant 0 : i32
    %c0_i32_49 = arith.constant 0 : i32
    %c0_i32_50 = arith.constant 0 : i32
    %44 = tpu.memref_slice %arg9[%9, %c0_i32_48, %c0_i32_49, %c0_i32_50] : memref<2x18x24x128xbf16, #tpu.memory_space<vmem>> -> memref<1x18x24x128xbf16, #tpu.memory_space<vmem>>
    %45 = tpu.memref_squeeze %44 : memref<1x18x24x128xbf16, #tpu.memory_space<vmem>> -> memref<18x24x128xbf16, #tpu.memory_space<vmem>>
    %c2_51 = arith.constant 2 : index
    %c0_52 = arith.constant 0 : index
    %c0_53 = arith.constant 0 : index
    %46 = vector.load %45[%c2_51, %c0_52, %c0_53] : memref<18x24x128xbf16, #tpu.memory_space<vmem>>, vector<16x16x128xbf16>
    %c0_i32_54 = arith.constant 0 : i32
    %c0_i32_55 = arith.constant 0 : i32
    %c0_i32_56 = arith.constant 0 : i32
    %47 = tpu.memref_slice %arg9[%9, %c0_i32_54, %c0_i32_55, %c0_i32_56] : memref<2x18x24x128xbf16, #tpu.memory_space<vmem>> -> memref<1x18x24x128xbf16, #tpu.memory_space<vmem>>
    %48 = tpu.memref_squeeze %47 : memref<1x18x24x128xbf16, #tpu.memory_space<vmem>> -> memref<18x24x128xbf16, #tpu.memory_space<vmem>>
    %c2_57 = arith.constant 2 : index
    %c1_58 = arith.constant 1 : index
    %c0_59 = arith.constant 0 : index
    %49 = vector.load %48[%c2_57, %c1_58, %c0_59] : memref<18x24x128xbf16, #tpu.memory_space<vmem>>, vector<16x16x128xbf16>
    %c0_i32_60 = arith.constant 0 : i32
    %c0_i32_61 = arith.constant 0 : i32
    %c0_i32_62 = arith.constant 0 : i32
    %50 = tpu.memref_slice %arg9[%9, %c0_i32_60, %c0_i32_61, %c0_i32_62] : memref<2x18x24x128xbf16, #tpu.memory_space<vmem>> -> memref<1x18x24x128xbf16, #tpu.memory_space<vmem>>
    %51 = tpu.memref_squeeze %50 : memref<1x18x24x128xbf16, #tpu.memory_space<vmem>> -> memref<18x24x128xbf16, #tpu.memory_space<vmem>>
    %c2_63 = arith.constant 2 : index
    %c2_64 = arith.constant 2 : index
    %c0_65 = arith.constant 0 : index
    %52 = vector.load %51[%c2_63, %c2_64, %c0_65] : memref<18x24x128xbf16, #tpu.memory_space<vmem>>, vector<16x16x128xbf16>
    %53 = tpu.concatenate %46, %49, %52 in 2 : vector<16x16x128xbf16>, vector<16x16x128xbf16>, vector<16x16x128xbf16> -> vector<16x16x384xbf16>
    %54 = vector.shape_cast %53 : vector<16x16x384xbf16> to vector<256x384xbf16>
    %c0_66 = arith.constant 0 : index
    %c2_67 = arith.constant 2 : index
    %c0_68 = arith.constant 0 : index
    %c0_69 = arith.constant 0 : index
    %55 = vector.load %arg4[%c0_66, %c2_67, %c0_68, %c0_69] : memref<1x3x384x128xbf16, #tpu.memory_space<vmem>>, vector<1x1x384x128xbf16>
    %56 = vector.shape_cast %55 : vector<1x1x384x128xbf16> to vector<384x128xbf16>
    %cst_70 = arith.constant dense<0.000000e+00> : vector<256x128xf32>
    %57 = tpu.matmul %54, %56, %cst_70 {dimension_numbers = #tpu.dot_dimension_numbers<[1], [0], [0], [1], [0, 0, 1, 1], [], []>} : vector<256x384xbf16>, vector<384x128xbf16>, vector<256x128xf32> -> vector<256x128xf32>
    %58 = arith.addf %43, %57 : vector<256x128xf32>
    %c0_71 = arith.constant 0 : index
    %c0_72 = arith.constant 0 : index
    %c0_73 = arith.constant 0 : index
    %59 = vector.load %arg5[%c0_71, %c0_72, %c0_73] : memref<1x1x128xf32, #tpu.memory_space<vmem>>, vector<1x1x128xf32>
    %60 = vector.shape_cast %59 : vector<1x1x128xf32> to vector<1x128xf32>
    %61 = vector.broadcast %60 : vector<1x128xf32> to vector<256x128xf32>
    %62 = arith.addf %58, %61 : vector<256x128xf32>
    %c8_i32 = arith.constant 8 : i32
    %63 = arith.muli %arg1, %c8_i32 : i32
    %c4_i32 = arith.constant 4 : i32
    %64 = arith.subi %63, %c4_i32 : i32
    %65 = tpu.iota {dimensions = array<i32: 0>} : vector<16x1x1xi32>
    %66 = vector.broadcast %64 : i32 to vector<16x1x1xi32>
    %67 = arith.addi %66, %65 : vector<16x1x1xi32>
    %c0_i32_74 = arith.constant 0 : i32
    %68 = vector.broadcast %c0_i32_74 : i32 to vector<16x1x1xi32>
    %69 = arith.cmpi sge, %67, %68 : vector<16x1x1xi32>
    %c16_i32 = arith.constant 16 : i32
    %70 = vector.broadcast %c16_i32 : i32 to vector<16x1x1xi32>
    %71 = arith.cmpi slt, %67, %70 : vector<16x1x1xi32>
    %72 = arith.andi %69, %71 : vector<16x1x1xi1>
    %c3_i32 = arith.constant 3 : i32
    %73 = arith.cmpi eq, %arg2, %c3_i32 : i32
    %cst_75 = arith.constant 0.000000e+00 : f32
    %74 = vector.broadcast %cst_75 : f32 to vector<256x128xf32>
    %75 = arith.cmpf oge, %62, %74 : vector<256x128xf32>
    %c0_76 = arith.constant 0 : index
    %c0_77 = arith.constant 0 : index
    %c0_78 = arith.constant 0 : index
    %76 = vector.load %arg6[%c0_76, %c0_77, %c0_78] : memref<1x1x128xf32, #tpu.memory_space<vmem>>, vector<1x1x128xf32>
    %77 = vector.shape_cast %76 : vector<1x1x128xf32> to vector<1x128xf32>
    %78 = vector.broadcast %77 : vector<1x128xf32> to vector<256x128xf32>
    %79 = arith.mulf %78, %62 : vector<256x128xf32>
    %80 = arith.select %75, %62, %79 : vector<256x128xi1>, vector<256x128xf32>
    %81 = vector.shape_cast %80 : vector<256x128xf32> to vector<16x16x128xf32>
    %cst_79 = arith.constant 0.000000e+00 : f32
    %82 = vector.shape_cast %72 : vector<16x1x1xi1> to vector<16x1x1xi1>
    %83 = vector.broadcast %82 : vector<16x1x1xi1> to vector<16x16x128xi1>
    %84 = vector.broadcast %cst_79 : f32 to vector<16x16x128xf32>
    %85 = arith.select %83, %81, %84 : vector<16x16x128xi1>, vector<16x16x128xf32>
    %86 = arith.truncf %85 : vector<16x16x128xf32> to vector<16x16x128xbf16>
    %true = arith.constant true
    %87 = arith.xori %73, %true : i1
    %c0_i32_80 = arith.constant 0 : i32
    %88 = arith.cmpi eq, %9, %c0_i32_80 : i32
    %89 = arith.andi %87, %88 : i1
    %90 = arith.extui %89 : i1 to i32
    %c0_i32_81 = arith.constant 0 : i32
    %91 = arith.cmpi ne, %90, %c0_i32_81 : i32
    scf.if %91 {
      %c1_86 = arith.constant 1 : index
      %c1_87 = arith.constant 1 : index
      %c1_88 = arith.constant 1 : index
      %c0_89 = arith.constant 0 : index
      %99 = vector.load %arg9[%c1_86, %c1_87, %c1_88, %c0_89] : memref<2x18x24x128xbf16, #tpu.memory_space<vmem>>, vector<1x16x16x128xbf16>
      %100 = vector.shape_cast %99 : vector<1x16x16x128xbf16> to vector<16x16x128xbf16>
      %101 = vector.shape_cast %86 : vector<16x16x128xbf16> to vector<1x16x16x128xbf16>
      tpu.vector_store %arg9[%c1_86, %c1_87, %c1_88, %c0_89], %101 {strides = array<i32>} : memref<2x18x24x128xbf16, #tpu.memory_space<vmem>>, vector<1x16x16x128xbf16>,
    } else {
    }
    %true_82 = arith.constant true
    %92 = arith.xori %73, %true_82 : i1
    %c1_i32_83 = arith.constant 1 : i32
    %93 = arith.cmpi eq, %9, %c1_i32_83 : i32
    %94 = arith.andi %92, %93 : i1
    %95 = arith.extui %94 : i1 to i32
    %c0_i32_84 = arith.constant 0 : i32
    %96 = arith.cmpi ne, %95, %c0_i32_84 : i32
    scf.if %96 {
      %c0_86 = arith.constant 0 : index
      %c1_87 = arith.constant 1 : index
      %c1_88 = arith.constant 1 : index
      %c0_89 = arith.constant 0 : index
      %99 = vector.load %arg9[%c0_86, %c1_87, %c1_88, %c0_89] : memref<2x18x24x128xbf16, #tpu.memory_space<vmem>>, vector<1x16x16x128xbf16>
      %100 = vector.shape_cast %99 : vector<1x16x16x128xbf16> to vector<16x16x128xbf16>
      %101 = vector.shape_cast %86 : vector<16x16x128xbf16> to vector<1x16x16x128xbf16>
      tpu.vector_store %arg9[%c0_86, %c1_87, %c1_88, %c0_89], %101 {strides = array<i32>} : memref<2x18x24x128xbf16, #tpu.memory_space<vmem>>, vector<1x16x16x128xbf16>,
    } else {
    }
    %97 = arith.extui %73 : i1 to i32
    %c0_i32_85 = arith.constant 0 : i32
    %98 = arith.cmpi ne, %97, %c0_i32_85 : i32
    scf.if %98 {
      %c0_86 = arith.constant 0 : index
      %c0_87 = arith.constant 0 : index
      %c4 = arith.constant 4 : index
      %c0_88 = arith.constant 0 : index
      %c0_89 = arith.constant 0 : index
      %99 = vector.load %arg3[%c0_86, %c0_87, %c4, %c0_88, %c0_89] : memref<1x1x16x16x128xbf16, #tpu.memory_space<vmem>>, vector<1x1x8x16x128xbf16>
      %100 = vector.shape_cast %99 : vector<1x1x8x16x128xbf16> to vector<8x16x128xbf16>
      %101 = vector.shape_cast %100 : vector<8x16x128xbf16> to vector<128x128xbf16>
      %c0_90 = arith.constant 0 : index
      %c0_91 = arith.constant 0 : index
      %102 = vector.load %arg7[%c0_90, %c0_91] : memref<128x128xbf16, #tpu.memory_space<vmem>>, vector<128x128xbf16>
      %cst_92 = arith.constant dense<0.000000e+00> : vector<128x128xf32>
      %103 = tpu.matmul %101, %102, %cst_92 {dimension_numbers = #tpu.dot_dimension_numbers<[1], [0], [0], [1], [0, 0, 1, 1], [], []>} : vector<128x128xbf16>, vector<128x128xbf16>, vector<128x128xf32> -> vector<128x128xf32>
      %104 = vector.shape_cast %62 : vector<256x128xf32> to vector<16x16x128xf32>
      %105 = vector.extract_strided_slice %104 {offsets = [4, 0, 0], sizes = [8, 16, 128], strides = [1, 1, 1]} : vector<16x16x128xf32> to vector<8x16x128xf32>
      %106 = vector.shape_cast %105 : vector<8x16x128xf32> to vector<128x128xf32>
      %107 = arith.addf %106, %103 : vector<128x128xf32>
      %108 = vector.shape_cast %107 : vector<128x128xf32> to vector<8x16x128xf32>
      %109 = arith.truncf %108 : vector<8x16x128xf32> to vector<8x16x128xbf16>
      %c0_93 = arith.constant 0 : index
      %c0_94 = arith.constant 0 : index
      %c0_95 = arith.constant 0 : index
      %c0_96 = arith.constant 0 : index
      %c0_97 = arith.constant 0 : index
      %110 = vector.load %arg8[%c0_93, %c0_94, %c0_95, %c0_96, %c0_97] : memref<1x1x8x16x128xbf16, #tpu.memory_space<vmem>>, vector<1x1x8x16x128xbf16>
      %111 = vector.shape_cast %110 : vector<1x1x8x16x128xbf16> to vector<8x16x128xbf16>
      %112 = vector.shape_cast %109 : vector<8x16x128xbf16> to vector<1x1x8x16x128xbf16>
      tpu.vector_store %arg8[%c0_93, %c0_94, %c0_95, %c0_96, %c0_97], %112 {strides = array<i32>} : memref<1x1x8x16x128xbf16, #tpu.memory_space<vmem>>, vector<1x1x8x16x128xbf16>,
    } else {
    }
    return
  }
  func.func @transform_0(%arg0: i32, %arg1: i32, %arg2: i32) -> (i32, i32, i32, i32, i32) {
    %c0_i32 = arith.constant 0 : i32
    %c0_i32_0 = arith.constant 0 : i32
    %c0_i32_1 = arith.constant 0 : i32
    %c0_i32_2 = arith.constant 0 : i32
    return %arg0, %arg1, %c0_i32, %c0_i32_0, %c0_i32_1 : i32, i32, i32, i32, i32
  }
  func.func @transform_1(%arg0: i32, %arg1: i32, %arg2: i32) -> (i32, i32, i32, i32) {
    %c0_i32 = arith.constant 0 : i32
    %c0_i32_0 = arith.constant 0 : i32
    %c0_i32_1 = arith.constant 0 : i32
    %c0_i32_2 = arith.constant 0 : i32
    return %arg2, %c0_i32, %c0_i32_0, %c0_i32_1 : i32, i32, i32, i32
  }
  func.func @transform_2(%arg0: i32, %arg1: i32, %arg2: i32) -> (i32, i32, i32) {
    %c0_i32 = arith.constant 0 : i32
    %c0_i32_0 = arith.constant 0 : i32
    %c0_i32_1 = arith.constant 0 : i32
    return %arg2, %c0_i32, %c0_i32_0 : i32, i32, i32
  }
  func.func @transform_3(%arg0: i32, %arg1: i32, %arg2: i32) -> (i32, i32, i32) {
    %c0_i32 = arith.constant 0 : i32
    %c0_i32_0 = arith.constant 0 : i32
    %c0_i32_1 = arith.constant 0 : i32
    return %arg2, %c0_i32, %c0_i32_0 : i32, i32, i32
  }
  func.func @transform_4(%arg0: i32, %arg1: i32, %arg2: i32) -> (i32, i32) {
    %c0_i32 = arith.constant 0 : i32
    %c0_i32_0 = arith.constant 0 : i32
    %c0_i32_1 = arith.constant 0 : i32
    return %c0_i32, %c0_i32_0 : i32, i32
  }
  func.func @transform_5(%arg0: i32, %arg1: i32, %arg2: i32) -> (i32, i32, i32, i32, i32) {
    %c0_i32 = arith.constant 0 : i32
    %c0_i32_0 = arith.constant 0 : i32
    %c0_i32_1 = arith.constant 0 : i32
    %c0_i32_2 = arith.constant 0 : i32
    return %arg0, %arg1, %c0_i32, %c0_i32_0, %c0_i32_1 : i32, i32, i32, i32, i32
  }
}

</mosaic_0001>

<llo_original>
// kernel: _lambda_.1
$region0: #{_lambda_.1}
  #allocation0 [shape = 'u32[]', space=smem, size = 0x4, offset = 0x4, fixed_abs, tag = 'smem constant byte address 0x4 - core index']
  #allocation1 [shape = 'u32[144,128]{1,0:T(1,128)}', space=vmem, size = 0x12000, scoped, tag = 'internal scratch']
  #allocation2 [shape = 'bf16[2,18,24,128]{3,2,1,0:T(8,128)(2,1)}', space=vmem, size = 0x36000, scoped, tag = 'scratch operand']
  %s0 = inlined_call_operand.vmem [shape: bf16[2,2,16,16,128], index: 0, kind: input, shape index: {}]
  %s1 = inlined_call_operand.hbm [shape: bf16[4,3,384,128], index: 1, kind: input, shape index: {}]
  %s2 = inlined_call_operand.hbm [shape: f32[4,1,128], index: 2, kind: input, shape index: {}]
  %s3 = inlined_call_operand.hbm [shape: f32[4,1,128], index: 3, kind: input, shape index: {}]
  %s4 = inlined_call_operand.hbm [shape: bf16[128,128], index: 4, kind: input, shape index: {}]
  %s5 = inlined_call_operand.vmem [shape: bf16[2,2,8,16,128], index: 5, kind: output, shape index: {}]
  %s6 = sld [smem:[#allocation0]]
  $region85: #{_lambda_.1} parent=0
    _
  %s8 = ssub.s32 1, %s6
  %s9 = scalar_select 0, %s8, %s6
  $region1: #{_lambda_.1} parent=0
    #allocation3 [shape = 'u8[589824]{0}', space=vmem, size = 0x90000, scoped, tag = 'input window, operand 1']
    #allocation4 [shape = 's32[2]{0}', space=sflag, size = 0x8, scoped, tag = 'scoped memory for _lambda_.1']
    #allocation5 [shape = 'u8[1024]{0}', space=vmem, size = 0x400, scoped, tag = 'input window, operand 2']
    #allocation6 [shape = 's32[2]{0}', space=sflag, size = 0x8, scoped, tag = 'scoped memory for _lambda_.1']
    #allocation7 [shape = 'u8[1024]{0}', space=vmem, size = 0x400, scoped, tag = 'input window, operand 3']
    #allocation8 [shape = 'u8[32768]{0}', space=vmem, size = 0x8000, scoped, tag = 'input window, operand 4, single buffered']
    #allocation9 [shape = 's32[1]{0}', space=sflag, size = 0x4, scoped, tag = 'scoped memory for _lambda_.1']
    %10 = vsyncpa [#allocation4], 0
    %s11 = scalar_lea.sflag [#allocation4], 1
    %12 = vsyncpa %s11, 0
    %13 = vsyncpa [#allocation6], 0
    %s14 = scalar_lea.sflag [#allocation6], 1
    %15 = vsyncpa %s14, 0
    %16 = vsyncpa [#allocation9], 0
    loop: start=0, step=1, limit=18
    $region2: #{_lambda_.1} parent=1 // loop_pre_header
      _
    $region3: #{_lambda_.1} parent=1 // loop_header
      %s18 = sphi 0, %s22
      %p19 = scmp.ge.s32.totalorder %s18, 18
      %s25 = sphi 0, %s44
      %s26 = sphi 0, %s40
      %s27 = sphi 0, %s36
      %s28 = sphi 0, %s25
      %s29 = sphi 0, %s26
      %s30 = sphi 0, %s27
      %s31 = sphi 0, %s28
      %s32 = sphi 0, %s29
      %s33 = sphi 0, %s30
      %s49 = sphi 0, %s51
      %s52 = sphi 0, %s49
      %s53 = sphi 0, %s52
      %s69 = sphi 0, %s53
      %s75 = sphi 0, %s77
      %s78 = sphi 0, %s75
      %s79 = sphi 0, %s78
      %s95 = sphi 0, %s79
      %s101 = sphi 0, %s103
      %s104 = sphi 0, %s101
      %s105 = sphi 0, %s104
      %s121 = sphi 0, %s105
      %s127 = sphi 0, %s129
      %s130 = sphi 0, %s127
      %s131 = sphi 0, %s130
      %s147 = sphi 0, %s131
      %s151 = sphi 0, %s151
      %s153 = sphi 0, %s151
      %s154 = sphi 0, %s153
      %s168 = sphi 0, %s154
      %s176 = sphi 0, %s178
      %s179 = sphi 0, %s176
      %s180 = sphi 0, %s179
      %s196 = sphi 0, %s180
    $region4: #{_lambda_.1} parent=1 // loop_header_branch
      %21 = sbr.rel (%p19) target = $region8
    $region5: #{_lambda_.1} parent=1 // loop_body
      %s23 = ssub.s32 %s18, 1
      %s24 = ssub.s32 %s18, 2
      %s34 = sadd.s32 1, %s27
      %p35 = scmp.ge.s32.totalorder %s34, 4
      %s36 = scalar_select %p35, 0, %s34
      %s37 = sadd.s32 1, %s26
      %s38 = scalar_select %p35, %s37, %s26
      %p39 = scmp.ge.s32.totalorder %s38, 2
      %s40 = scalar_select %p39, 0, %s38
      %s41 = sadd.s32 1, %s25
      %s42 = scalar_select %p39, %s41, %s25
      %p43 = scmp.ge.s32.totalorder %s42, 2
      %s44 = scalar_select %p43, 0, %s42
      %s45 = ssub.s32 %s25, %s44
      %s46 = ssub.s32 %s26, %s40
      %s47 = sor.u32 %s45, %s46
      %p48 = scmp.eq.s32.totalorder %s47, 0
      %s50 = sadd.s32 %s49, 1
      %s51 = scalar_select %p48, %s49, %s50
      %p54 = pneg %p48
      %p55 = scmp.eq.s32.totalorder %s18, 15
      %p56 = por %p54, %p55
      %p57 = scmp.ne.s32.totalorder %s49, %s52
      %p58 = scmp.eq.s32.totalorder %s18, 0
      %p59 = por %p57, %p58
      %p60 = scmp.ne.s32.totalorder %s49, %s52
      %p61 = scmp.eq.s32.totalorder %s23, 15
      %p62 = por %p60, %p61
      %p63 = scmp.ne.s32.totalorder %s52, %s53
      %p64 = scmp.eq.s32.totalorder %s23, 0
      %p65 = por %p63, %p64
      %p66 = scmp.ne.s32.totalorder %s52, %s53
      %p67 = scmp.eq.s32.totalorder %s24, 15
      %p68 = por %p66, %p67
      %p70 = scmp.ne.s32.totalorder %s53, %s69
      %p71 = scmp.eq.s32.totalorder %s24, 0
      %p72 = por %p70, %p71
      %s73 = ssub.s32 %s27, %s36
      %p74 = scmp.eq.s32.totalorder %s73, 0
      %s76 = sadd.s32 %s75, 1
      %s77 = scalar_select %p74, %s75, %s76
      %p80 = pneg %p74
      %p81 = scmp.eq.s32.totalorder %s18, 15
      %p82 = por %p80, %p81
      %p83 = scmp.ne.s32.totalorder %s75, %s78
      %p84 = scmp.eq.s32.totalorder %s18, 0
      %p85 = por %p83, %p84
      %p86 = scmp.ne.s32.totalorder %s75, %s78
      %p87 = scmp.eq.s32.totalorder %s23, 15
      %p88 = por %p86, %p87
      %p89 = scmp.ne.s32.totalorder %s78, %s79
      %p90 = scmp.eq.s32.totalorder %s23, 0
      %p91 = por %p89, %p90
      %p92 = scmp.ne.s32.totalorder %s78, %s79
      %p93 = scmp.eq.s32.totalorder %s24, 15
      %p94 = por %p92, %p93
      %p96 = scmp.ne.s32.totalorder %s79, %s95
      %p97 = scmp.eq.s32.totalorder %s24, 0
      %p98 = por %p96, %p97
      %s99 = ssub.s32 %s27, %s36
      %p100 = scmp.eq.s32.totalorder %s99, 0
      %s102 = sadd.s32 %s101, 1
      %s103 = scalar_select %p100, %s101, %s102
      %p106 = pneg %p100
      %p107 = scmp.eq.s32.totalorder %s18, 15
      %p108 = por %p106, %p107
      %p109 = scmp.ne.s32.totalorder %s101, %s104
      %p110 = scmp.eq.s32.totalorder %s18, 0
      %p111 = por %p109, %p110
      %p112 = scmp.ne.s32.totalorder %s101, %s104
      %p113 = scmp.eq.s32.totalorder %s23, 15
      %p114 = por %p112, %p113
      %p115 = scmp.ne.s32.totalorder %s104, %s105
      %p116 = scmp.eq.s32.totalorder %s23, 0
      %p117 = por %p115, %p116
      %p118 = scmp.ne.s32.totalorder %s104, %s105
      %p119 = scmp.eq.s32.totalorder %s24, 15
      %p120 = por %p118, %p119
      %p122 = scmp.ne.s32.totalorder %s105, %s121
      %p123 = scmp.eq.s32.totalorder %s24, 0
      %p124 = por %p122, %p123
      %s125 = ssub.s32 %s27, %s36
      %p126 = scmp.eq.s32.totalorder %s125, 0
      %s128 = sadd.s32 %s127, 1
      %s129 = scalar_select %p126, %s127, %s128
      %p132 = pneg %p126
      %p133 = scmp.eq.s32.totalorder %s18, 15
      %p134 = por %p132, %p133
      %p135 = scmp.ne.s32.totalorder %s127, %s130
      %p136 = scmp.eq.s32.totalorder %s18, 0
      %p137 = por %p135, %p136
      %p138 = scmp.ne.s32.totalorder %s127, %s130
      %p139 = scmp.eq.s32.totalorder %s23, 15
      %p140 = por %p138, %p139
      %p141 = scmp.ne.s32.totalorder %s130, %s131
      %p142 = scmp.eq.s32.totalorder %s23, 0
      %p143 = por %p141, %p142
      %p144 = scmp.ne.s32.totalorder %s130, %s131
      %p145 = scmp.eq.s32.totalorder %s24, 15
      %p146 = por %p144, %p145
      %p148 = scmp.ne.s32.totalorder %s131, %s147
      %p149 = scmp.eq.s32.totalorder %s24, 0
      %p150 = por %p148, %p149
      %s152 = sadd.s32 %s151, 1
      %p155 = scmp.eq.s32.totalorder %s18, 15
      %p156 = scmp.ne.s32.totalorder %s151, %s153
      %p157 = scmp.eq.s32.totalorder %s18, 0
      %p158 = por %p156, %p157
      %p159 = scmp.ne.s32.totalorder %s151, %s153
      %p160 = scmp.eq.s32.totalorder %s23, 15
      %p161 = por %p159, %p160
      %p162 = scmp.ne.s32.totalorder %s153, %s154
      %p163 = scmp.eq.s32.totalorder %s23, 0
      %p164 = por %p162, %p163
      %p165 = scmp.ne.s32.totalorder %s153, %s154
      %p166 = scmp.eq.s32.totalorder %s24, 15
      %p167 = por %p165, %p166
      %p169 = scmp.ne.s32.totalorder %s154, %s168
      %p170 = scmp.eq.s32.totalorder %s24, 0
      %p171 = por %p169, %p170
      %s172 = ssub.s32 %s25, %s44
      %s173 = ssub.s32 %s26, %s40
      %s174 = sor.u32 %s172, %s173
      %p175 = scmp.eq.s32.totalorder %s174, 0
      %s177 = sadd.s32 %s176, 1
      %s178 = scalar_select %p175, %s176, %s177
      %p181 = pneg %p175
      %p182 = scmp.eq.s32.totalorder %s18, 15
      %p183 = por %p181, %p182
      %p184 = scmp.ne.s32.totalorder %s176, %s179
      %p185 = scmp.eq.s32.totalorder %s18, 0
      %p186 = por %p184, %p185
      %p187 = scmp.ne.s32.totalorder %s176, %s179
      %p188 = scmp.eq.s32.totalorder %s23, 15
      %p189 = por %p187, %p188
      %p190 = scmp.ne.s32.totalorder %s179, %s180
      %p191 = scmp.eq.s32.totalorder %s23, 0
      %p192 = por %p190, %p191
      %p193 = scmp.ne.s32.totalorder %s179, %s180
      %p194 = scmp.eq.s32.totalorder %s24, 15
      %p195 = por %p193, %p194
      %p197 = scmp.ne.s32.totalorder %s180, %s196
      %p198 = scmp.eq.s32.totalorder %s24, 0
      %p199 = por %p197, %p198
      %p200 = scmp.le.s32.totalorder 1, %s18
      %p201 = scmp.lt.s32.totalorder %s18, 17
      %p202 = pnand %p200, %p201
      %p203 = pneg %p202
      // Predicated region
      $region9: #{_lambda_.1} parent=5 // pred_check
        _
      $region10: #{_lambda_.1} parent=5 // pred_check_branch
        %205 = sbr.rel (%p202) target = $region12
      $region11: #{_lambda_.1} parent=5 // pred_region
        %s206 = ssub.s32 %s18, 1
        // Predicated region
        $region13: #{_lambda_.1} parent=11 // pred_check
          %p207 = pneg %p164
        $region14: #{_lambda_.1} parent=11 // pred_check_branch
          %209 = sbr.rel (%p207) target = $region16
        $region15: #{_lambda_.1} parent=11 // pred_region
          %s211 = ssub.s32 1024, 1024
          %212 = vsyncadd [#allocation9], %s211
          %s213 = sshll.u32 [#allocation8], 4
          %s214 = int_to_ptr.vmem [resolvable:$true] %s213
          %219 = dma.hbm_to_vmem [thread:$0]  %s4, 1024, %s214, [#allocation9], 64, 64, 4
        $region16: #{_lambda_.1} parent=11 // pred_fallthru
          _
      $region12: #{_lambda_.1} parent=5 // pred_fallthru
        _
      %p220 = scmp.lt.s32.totalorder %s18, 16
      // Predicated region
      $region17: #{_lambda_.1} parent=5 // pred_check
        %p221 = pneg %p220
      $region18: #{_lambda_.1} parent=5 // pred_check_branch
        %223 = sbr.rel (%p221) target = $region20
      $region19: #{_lambda_.1} parent=5 // pred_region
        // Predicated region
        $region21: #{_lambda_.1} parent=19 // pred_check
          %p224 = pneg %p59
        $region22: #{_lambda_.1} parent=19 // pred_check_branch
          %226 = sbr.rel (%p224) target = $region24
        $region23: #{_lambda_.1} parent=19 // pred_region
          %p227 = scmp.lt.s32.totalorder %s25, 1
          %s228 = scalar_select %p227, %s25, 1
          %p229 = scmp.lt.s32.totalorder %s26, 1
          %s230 = scalar_select %p229, %s26, 1
          %s231 = smul.addr %s230, 32
          %s232 = smul.addr %s228, 64
          %s233 = sadd.s32 %s231, %s232
          %s234 = smul.addr %s233, 4
          %s235 = scalar_lea.vmem %s0, %s234
        $region24: #{_lambda_.1} parent=19 // pred_fallthru
          _
        // Predicated region
        $region25: #{_lambda_.1} parent=19 // pred_check
          %p236 = pneg %p85
        $region26: #{_lambda_.1} parent=19 // pred_check_branch
          %238 = sbr.rel (%p236) target = $region28
        $region27: #{_lambda_.1} parent=19 // pred_region
          %s239 = sand.u32 %s75, 1
          %s240 = scalar_lea.sflag [#allocation4], %s239
          %s241 = sand.u32 %s75, 1
          %s242 = smul.addr %s241, 576
          %s243 = scalar_lea.vmem [#allocation3], %s242
          %s245 = ssub.s32 9216, 9216
          %246 = vsyncadd %s240, %s245
          %s247 = smul.addr %s27, 144
          %s248 = smul.addr %s247, 64
          %s249 = scalar_lea.hbm %s1, %s248
          %s250 = sshll.u32 %s243, 4
          %s251 = int_to_ptr.vmem [resolvable:$true] %s250
          %256 = dma.hbm_to_vmem [thread:$0]  %s249, 9216, %s251, %s240, 64, 64, 4
        $region28: #{_lambda_.1} parent=19 // pred_fallthru
          _
        // Predicated region
        $region29: #{_lambda_.1} parent=19 // pred_check
          %p257 = pneg %p111
        $region30: #{_lambda_.1} parent=19 // pred_check_branch
          %259 = sbr.rel (%p257) target = $region32
        $region31: #{_lambda_.1} parent=19 // pred_region
          %s260 = sand.u32 %s18, 1
          %s261 = scalar_lea.sflag [#allocation6], %s260
          %s262 = sand.u32 %s101, 1
          %s263 = scalar_lea.vmem [#allocation5], %s262
          %s265 = ssub.s32 16, 16
          %266 = vsyncadd %s261, %s265
          %s267 = smul.addr %s27, 16
          %s268 = scalar_lea.hbm %s2, %s267
          %s270 = sshll.u32 %s263, 4
          %s271 = int_to_ptr.vmem [resolvable:$true] %s270
          %273 = dma.hbm_to_vmem [thread:$0]  %s268, 16, %s271, %s261
        $region32: #{_lambda_.1} parent=19 // pred_fallthru
          _
        // Predicated region
        $region33: #{_lambda_.1} parent=19 // pred_check
          %p274 = pneg %p137
        $region34: #{_lambda_.1} parent=19 // pred_check_branch
          %276 = sbr.rel (%p274) target = $region36
        $region35: #{_lambda_.1} parent=19 // pred_region
          %s277 = sand.u32 %s18, 1
          %s278 = scalar_lea.sflag [#allocation6], %s277
          %s279 = sand.u32 %s127, 1
          %s280 = scalar_lea.vmem [#allocation7], %s279
          %s282 = ssub.s32 16, 16
          %283 = vsyncadd %s278, %s282
          %s284 = smul.addr %s27, 16
          %s285 = scalar_lea.hbm %s3, %s284
          %s287 = sshll.u32 %s280, 4
          %s288 = int_to_ptr.vmem [resolvable:$true] %s287
          %290 = dma.hbm_to_vmem [thread:$0]  %s285, 16, %s288, %s278
        $region36: #{_lambda_.1} parent=19 // pred_fallthru
          _
      $region20: #{_lambda_.1} parent=5 // pred_fallthru
        _
      %p291 = scmp.le.s32.totalorder 1, %s18
      %p292 = scmp.lt.s32.totalorder %s18, 17
      %p293 = pnand %p291, %p292
      %p294 = pneg %p293
      // Predicated region
      $region37: #{_lambda_.1} parent=5 // pred_check
        _
      $region38: #{_lambda_.1} parent=5 // pred_check_branch
        %296 = sbr.rel (%p293) target = $region40
      $region39: #{_lambda_.1} parent=5 // pred_region
        %s297 = ssub.s32 %s18, 1
        %s298 = sand.u32 %s78, 1
        %s299 = scalar_lea.sflag [#allocation4], %s298
        %s300 = sand.u32 %s78, 1
        %s301 = smul.addr %s300, 576
        %s302 = scalar_lea.vmem [#allocation3], %s301
        // Predicated region
        $region41: #{_lambda_.1} parent=39 // pred_check
          %p303 = pneg %p91
        $region42: #{_lambda_.1} parent=39 // pred_check_branch
          %305 = sbr.rel (%p303) target = $region44
        $region43: #{_lambda_.1} parent=39 // pred_region
          %306 = dma.done %s299, 9216
        $region44: #{_lambda_.1} parent=39 // pred_fallthru
          _
        %s307 = sand.u32 %s23, 1
        %s308 = scalar_lea.sflag [#allocation6], %s307
        %s309 = sand.u32 %s104, 1
        %s310 = scalar_lea.vmem [#allocation5], %s309
        // Predicated region
        $region45: #{_lambda_.1} parent=39 // pred_check
          %p311 = pneg %p117
        $region46: #{_lambda_.1} parent=39 // pred_check_branch
          %313 = sbr.rel (%p311) target = $region48
        $region47: #{_lambda_.1} parent=39 // pred_region
          %314 = dma.done %s308, 16
        $region48: #{_lambda_.1} parent=39 // pred_fallthru
          _
        %s315 = sand.u32 %s23, 1
        %s316 = scalar_lea.sflag [#allocation6], %s315
        %s317 = sand.u32 %s130, 1
        %s318 = scalar_lea.vmem [#allocation7], %s317
        // Predicated region
        $region49: #{_lambda_.1} parent=39 // pred_check
          %p319 = pneg %p143
        $region50: #{_lambda_.1} parent=39 // pred_check_branch
          %321 = sbr.rel (%p319) target = $region52
        $region51: #{_lambda_.1} parent=39 // pred_region
          %322 = dma.done %s316, 16
        $region52: #{_lambda_.1} parent=39 // pred_fallthru
          _
        // Predicated region
        $region53: #{_lambda_.1} parent=39 // pred_check
          %p323 = pneg %p164
        $region54: #{_lambda_.1} parent=39 // pred_check_branch
          %325 = sbr.rel (%p323) target = $region56
        $region55: #{_lambda_.1} parent=39 // pred_region
          %326 = dma.done [#allocation9], 1024
        $region56: #{_lambda_.1} parent=39 // pred_fallthru
          _
        %p327 = scmp.lt.s32.totalorder %s28, 1
        %s328 = scalar_select %p327, %s28, 1
        %p329 = scmp.lt.s32.totalorder %s29, 1
        %s330 = scalar_select %p329, %s29, 1
        %s331 = smul.addr %s330, 32
        %s332 = smul.addr %s328, 64
        %s333 = sadd.s32 %s331, %s332
        %s334 = smul.addr %s333, 4
        %s335 = scalar_lea.vmem %s0, %s334
        %p336 = pneg %p65
        %p337 = pneg %p62
        %s338 = sand.u32 %s78, 1
        %s339 = scalar_lea.sflag [#allocation4], %s338
        %s340 = sand.u32 %s78, 1
        %s341 = smul.addr %s340, 576
        %s342 = scalar_lea.vmem [#allocation3], %s341
        %p343 = pneg %p91
        %p344 = pneg %p88
        %s345 = sand.u32 %s23, 1
        %s346 = scalar_lea.sflag [#allocation6], %s345
        %s347 = sand.u32 %s104, 1
        %s348 = scalar_lea.vmem [#allocation5], %s347
        %p349 = pneg %p117
        %p350 = pneg %p114
        %s351 = sand.u32 %s23, 1
        %s352 = scalar_lea.sflag [#allocation6], %s351
        %s353 = sand.u32 %s130, 1
        %s354 = scalar_lea.vmem [#allocation7], %s353
        %p355 = pneg %p143
        %p356 = pneg %p140
        %p357 = pneg %p164
        %p358 = pneg %p161
        %p359 = pneg %p192
        %p360 = pneg %p189
        %p361 = scmp.lt.s32.totalorder %s28, 1
        %s362 = scalar_select %p361, %s28, 1
        %p363 = scmp.lt.s32.totalorder %s29, 1
        %s364 = scalar_select %p363, %s29, 1
        %s365 = smul.addr %s364, 16
        %s366 = smul.addr %s362, 32
        %s367 = sadd.s32 %s365, %s366
        %s368 = smul.addr %s367, 4
        %s369 = scalar_lea.vmem %s5, %s368
        %p370 = scmp.lt.s32.totalorder %s28, 1
        %s371 = scalar_select %p370, %s28, 1
        %p372 = scmp.lt.s32.totalorder %s29, 1
        %s373 = scalar_select %p372, %s29, 1
        %s374 = smul.addr %s373, 32
        %s375 = smul.addr %s371, 64
        %s376 = sadd.s32 %s374, %s375
        %s377 = smul.addr %s376, 4
        %s378 = scalar_lea.vmem %s0, %s377
        %p379 = scmp.lt.s32.totalorder %s28, 1
        %s380 = scalar_select %p379, %s28, 1
        %p381 = scmp.lt.s32.totalorder %s29, 1
        %s382 = scalar_select %p381, %s29, 1
        %s383 = smul.addr %s382, 16
        %s384 = smul.addr %s380, 32
        %s385 = sadd.s32 %s383, %s384
        %s386 = smul.addr %s385, 4
        %s387 = scalar_lea.vmem %s5, %s386
        %p389 = scmp.lt.s32.totalorder %s30, 0
        %s390 = ssub.s32 0, %s30
        %s391 = scalar_select %p389, %s390, %s30
        %s392 = sand.u32 %s391, 1
        %s393 = ssub.s32 0, %s392
        %s394 = scalar_select %p389, %s393, %s392
        %p395 = scmp.ne.s32.totalorder %s394, 0
        %p396 = scmp.lt.s32.totalorder %s394, 0
        %p397 = pnand %p396, %p395
        %p398 = pneg %p397
        %s399 = sadd.s32 %s394, 2
        %s400 = scalar_select %p398, %s399, %s394
        %p401 = scmp.eq.s32.totalorder %s30, 0
        // Predicated region
        $region57: #{_lambda_.1} parent=39 // pred_check
          %p402 = pneg %p401
        $region58: #{_lambda_.1} parent=39 // pred_check_branch
          %404 = sbr.rel (%p402) target = $region60
        $region59: #{_lambda_.1} parent=39 // pred_region
          %405 = vst [vmem:[#allocation2] sm:$0xf] 0
          %406 = vst [vmem:[#allocation2 + $0x4] sm:$0xf] 0
          %407 = vst [vmem:[#allocation2 + $0x8] sm:$0xf] 0
          %408 = vst [vmem:[#allocation2 + $0xd8] sm:$0xf] 0
          %409 = vst [vmem:[#allocation2 + $0xdc] sm:$0xf] 0
          %410 = vst [vmem:[#allocation2 + $0xe0] sm:$0xf] 0
          %s411 = scalar_lea.vmem [#allocation2], 204
          %412 = vst [vmem:[%s411] sm:$0xf] 0
          %413 = vst [vmem:[%s411 + $0x4] sm:$0xf] 0
          %414 = vst [vmem:[%s411 + $0x8] sm:$0xf] 0
          %415 = vst [vmem:[%s411 + $0xd8] sm:$0xf] 0
          %416 = vst [vmem:[%s411 + $0xdc] sm:$0xf] 0
          %417 = vst [vmem:[%s411 + $0xe0] sm:$0xf] 0
          %vm418 = vcmask 1040384
          %vm419 = vsmask.f32 256
          %vm420 = vmand %vm418, %vm419
          %v421 = vld [vmem:[#allocation2] sm:$0x1]
          %v422 = vsel %vm420, 0, %v421
          %423 = vst [vmem:[#allocation2] sm:$0x1] %v422
          %v424 = vld [vmem:[#allocation2 + $0xc] sm:$0x1]
          %v425 = vsel %vm420, 0, %v424
          %426 = vst [vmem:[#allocation2 + $0xc] sm:$0x1] %v425
          %v427 = vld [vmem:[#allocation2 + $0x18] sm:$0x1]
          %v428 = vsel %vm420, 0, %v427
          %429 = vst [vmem:[#allocation2 + $0x18] sm:$0x1] %v428
          %v430 = vld [vmem:[#allocation2 + $0x24] sm:$0x1]
          %v431 = vsel %vm420, 0, %v430
          %432 = vst [vmem:[#allocation2 + $0x24] sm:$0x1] %v431
          %v433 = vld [vmem:[#allocation2 + $0x30] sm:$0x1]
          %v434 = vsel %vm420, 0, %v433
          %435 = vst [vmem:[#allocation2 + $0x30] sm:$0x1] %v434
          %v436 = vld [vmem:[#allocation2 + $0x3c] sm:$0x1]
          %v437 = vsel %vm420, 0, %v436
          %438 = vst [vmem:[#allocation2 + $0x3c] sm:$0x1] %v437
          %v439 = vld [vmem:[#allocation2 + $0x48] sm:$0x1]
          %v440 = vsel %vm420, 0, %v439
          %441 = vst [vmem:[#allocation2 + $0x48] sm:$0x1] %v440
          %v442 = vld [vmem:[#allocation2 + $0x54] sm:$0x1]
          %v443 = vsel %vm420, 0, %v442
          %444 = vst [vmem:[#allocation2 + $0x54] sm:$0x1] %v443
          %v445 = vld [vmem:[#allocation2 + $0x60] sm:$0x1]
          %v446 = vsel %vm420, 0, %v445
          %447 = vst [vmem:[#allocation2 + $0x60] sm:$0x1] %v446
          %v448 = vld [vmem:[#allocation2 + $0x6c] sm:$0x1]
          %v449 = vsel %vm420, 0, %v448
          %450 = vst [vmem:[#allocation2 + $0x6c] sm:$0x1] %v449
          %v451 = vld [vmem:[#allocation2 + $0x78] sm:$0x1]
          %v452 = vsel %vm420, 0, %v451
          %453 = vst [vmem:[#allocation2 + $0x78] sm:$0x1] %v452
          %v454 = vld [vmem:[#allocation2 + $0x84] sm:$0x1]
          %v455 = vsel %vm420, 0, %v454
          %456 = vst [vmem:[#allocation2 + $0x84] sm:$0x1] %v455
          %v457 = vld [vmem:[#allocation2 + $0x90] sm:$0x1]
          %v458 = vsel %vm420, 0, %v457
          %459 = vst [vmem:[#allocation2 + $0x90] sm:$0x1] %v458
          %v460 = vld [vmem:[#allocation2 + $0x9c] sm:$0x1]
          %v461 = vsel %vm420, 0, %v460
          %462 = vst [vmem:[#allocation2 + $0x9c] sm:$0x1] %v461
          %v463 = vld [vmem:[#allocation2 + $0xa8] sm:$0x1]
          %v464 = vsel %vm420, 0, %v463
          %465 = vst [vmem:[#allocation2 + $0xa8] sm:$0x1] %v464
          %v466 = vld [vmem:[#allocation2 + $0xb4] sm:$0x1]
          %v467 = vsel %vm420, 0, %v466
          %468 = vst [vmem:[#allocation2 + $0xb4] sm:$0x1] %v467
          %v469 = vld [vmem:[#allocation2 + $0xc0] sm:$0x1]
          %v470 = vsel %vm420, 0, %v469
          %471 = vst [vmem:[#allocation2 + $0xc0] sm:$0x1] %v470
          %v472 = vld [vmem:[#allocation2 + $0xcc] sm:$0x1]
          %v473 = vsel %vm420, 0, %v472
          %474 = vst [vmem:[#allocation2 + $0xcc] sm:$0x1] %v473
          %v475 = vld [vmem:[#allocation2 + $0xd8] sm:$0x1]
          %v476 = vsel %vm420, 0, %v475
          %477 = vst [vmem:[#allocation2 + $0xd8] sm:$0x1] %v476
          %v478 = vld [vmem:[#allocation2 + $0xe4] sm:$0x1]
          %v479 = vsel %vm420, 0, %v478
          %480 = vst [vmem:[#allocation2 + $0xe4] sm:$0x1] %v479
          %v481 = vld [vmem:[#allocation2 + $0xf0] sm:$0x1]
          %v482 = vsel %vm420, 0, %v481
          %483 = vst [vmem:[#allocation2 + $0xf0] sm:$0x1] %v482
          %v484 = vld [vmem:[#allocation2 + $0xfc] sm:$0x1]
          %v485 = vsel %vm420, 0, %v484
          %486 = vst [vmem:[#allocation2 + $0xfc] sm:$0x1] %v485
          %v487 = vld [vmem:[#allocation2 + $0x108] sm:$0x1]
          %v488 = vsel %vm420, 0, %v487
          %489 = vst [vmem:[#allocation2 + $0x108] sm:$0x1] %v488
          %v490 = vld [vmem:[#allocation2 + $0x114] sm:$0x1]
          %v491 = vsel %vm420, 0, %v490
          %492 = vst [vmem:[#allocation2 + $0x114] sm:$0x1] %v491
          %v493 = vld [vmem:[#allocation2 + $0x120] sm:$0x1]
          %v494 = vsel %vm420, 0, %v493
          %495 = vst [vmem:[#allocation2 + $0x120] sm:$0x1] %v494
          %v496 = vld [vmem:[#allocation2 + $0x12c] sm:$0x1]
          %v497 = vsel %vm420, 0, %v496
          %498 = vst [vmem:[#allocation2 + $0x12c] sm:$0x1] %v497
          %v499 = vld [vmem:[#allocation2 + $0x138] sm:$0x1]
          %v500 = vsel %vm420, 0, %v499
          %501 = vst [vmem:[#allocation2 + $0x138] sm:$0x1] %v500
          %v502 = vld [vmem:[#allocation2 + $0x144] sm:$0x1]
          %v503 = vsel %vm420, 0, %v502
          %504 = vst [vmem:[#allocation2 + $0x144] sm:$0x1] %v503
          %v505 = vld [vmem:[#allocation2 + $0x150] sm:$0x1]
          %v506 = vsel %vm420, 0, %v505
          %507 = vst [vmem:[#allocation2 + $0x150] sm:$0x1] %v506
          %v508 = vld [vmem:[#allocation2 + $0x15c] sm:$0x1]
          %v509 = vsel %vm420, 0, %v508
          %510 = vst [vmem:[#allocation2 + $0x15c] sm:$0x1] %v509
          %v511 = vld [vmem:[#allocation2 + $0x168] sm:$0x1]
          %v512 = vsel %vm420, 0, %v511
          %513 = vst [vmem:[#allocation2 + $0x168] sm:$0x1] %v512
          %v514 = vld [vmem:[#allocation2 + $0x174] sm:$0x1]
          %v515 = vsel %vm420, 0, %v514
          %516 = vst [vmem:[#allocation2 + $0x174] sm:$0x1] %v515
          %v517 = vld [vmem:[#allocation2 + $0x180] sm:$0x1]
          %v518 = vsel %vm420, 0, %v517
          %519 = vst [vmem:[#allocation2 + $0x180] sm:$0x1] %v518
          %v520 = vld [vmem:[#allocation2 + $0x18c] sm:$0x1]
          %v521 = vsel %vm420, 0, %v520
          %522 = vst [vmem:[#allocation2 + $0x18c] sm:$0x1] %v521
          %v523 = vld [vmem:[#allocation2 + $0x198] sm:$0x1]
          %v524 = vsel %vm420, 0, %v523
          %525 = vst [vmem:[#allocation2 + $0x198] sm:$0x1] %v524
          %v526 = vld [vmem:[#allocation2 + $0x1a4] sm:$0x1]
          %v527 = vsel %vm420, 0, %v526
          %528 = vst [vmem:[#allocation2 + $0x1a4] sm:$0x1] %v527
          %vm529 = vcmask 1043456
          %vm530 = vsmask.f32 7938
          %vm531 = vmand %vm529, %vm530
          %v532 = vld [vmem:[#allocation2 + $0x8] sm:$0xf]
          %v533 = vsel %vm531, 0, %v532
          %534 = vst [vmem:[#allocation2 + $0x8] sm:$0xf] %v533
          %v535 = vld [vmem:[#allocation2 + $0x14] sm:$0xf]
          %v536 = vsel %vm531, 0, %v535
          %537 = vst [vmem:[#allocation2 + $0x14] sm:$0xf] %v536
          %v538 = vld [vmem:[#allocation2 + $0x20] sm:$0xf]
          %v539 = vsel %vm531, 0, %v538
          %540 = vst [vmem:[#allocation2 + $0x20] sm:$0xf] %v539
          %v541 = vld [vmem:[#allocation2 + $0x2c] sm:$0xf]
          %v542 = vsel %vm531, 0, %v541
          %543 = vst [vmem:[#allocation2 + $0x2c] sm:$0xf] %v542
          %v544 = vld [vmem:[#allocation2 + $0x38] sm:$0xf]
          %v545 = vsel %vm531, 0, %v544
          %546 = vst [vmem:[#allocation2 + $0x38] sm:$0xf] %v545
          %v547 = vld [vmem:[#allocation2 + $0x44] sm:$0xf]
          %v548 = vsel %vm531, 0, %v547
          %549 = vst [vmem:[#allocation2 + $0x44] sm:$0xf] %v548
          %v550 = vld [vmem:[#allocation2 + $0x50] sm:$0xf]
          %v551 = vsel %vm531, 0, %v550
          %552 = vst [vmem:[#allocation2 + $0x50] sm:$0xf] %v551
          %v553 = vld [vmem:[#allocation2 + $0x5c] sm:$0xf]
          %v554 = vsel %vm531, 0, %v553
          %555 = vst [vmem:[#allocation2 + $0x5c] sm:$0xf] %v554
          %v556 = vld [vmem:[#allocation2 + $0x68] sm:$0xf]
          %v557 = vsel %vm531, 0, %v556
          %558 = vst [vmem:[#allocation2 + $0x68] sm:$0xf] %v557
          %v559 = vld [vmem:[#allocation2 + $0x74] sm:$0xf]
          %v560 = vsel %vm531, 0, %v559
          %561 = vst [vmem:[#allocation2 + $0x74] sm:$0xf] %v560
          %v562 = vld [vmem:[#allocation2 + $0x80] sm:$0xf]
          %v563 = vsel %vm531, 0, %v562
          %564 = vst [vmem:[#allocation2 + $0x80] sm:$0xf] %v563
          %v565 = vld [vmem:[#allocation2 + $0x8c] sm:$0xf]
          %v566 = vsel %vm531, 0, %v565
          %567 = vst [vmem:[#allocation2 + $0x8c] sm:$0xf] %v566
          %v568 = vld [vmem:[#allocation2 + $0x98] sm:$0xf]
          %v569 = vsel %vm531, 0, %v568
          %570 = vst [vmem:[#allocation2 + $0x98] sm:$0xf] %v569
          %v571 = vld [vmem:[#allocation2 + $0xa4] sm:$0xf]
          %v572 = vsel %vm531, 0, %v571
          %573 = vst [vmem:[#allocation2 + $0xa4] sm:$0xf] %v572
          %v574 = vld [vmem:[#allocation2 + $0xb0] sm:$0xf]
          %v575 = vsel %vm531, 0, %v574
          %576 = vst [vmem:[#allocation2 + $0xb0] sm:$0xf] %v575
          %v577 = vld [vmem:[#allocation2 + $0xbc] sm:$0xf]
          %v578 = vsel %vm531, 0, %v577
          %579 = vst [vmem:[#allocation2 + $0xbc] sm:$0xf] %v578
          %v580 = vld [vmem:[#allocation2 + $0xc8] sm:$0xf]
          %v581 = vsel %vm531, 0, %v580
          %582 = vst [vmem:[#allocation2 + $0xc8] sm:$0xf] %v581
          %v583 = vld [vmem:[#allocation2 + $0xd4] sm:$0xf]
          %v584 = vsel %vm531, 0, %v583
          %585 = vst [vmem:[#allocation2 + $0xd4] sm:$0xf] %v584
          %v586 = vld [vmem:[#allocation2 + $0xe0] sm:$0xf]
          %v587 = vsel %vm531, 0, %v586
          %588 = vst [vmem:[#allocation2 + $0xe0] sm:$0xf] %v587
          %v589 = vld [vmem:[#allocation2 + $0xec] sm:$0xf]
          %v590 = vsel %vm531, 0, %v589
          %591 = vst [vmem:[#allocation2 + $0xec] sm:$0xf] %v590
          %v592 = vld [vmem:[#allocation2 + $0xf8] sm:$0xf]
          %v593 = vsel %vm531, 0, %v592
          %594 = vst [vmem:[#allocation2 + $0xf8] sm:$0xf] %v593
          %v595 = vld [vmem:[#allocation2 + $0x104] sm:$0xf]
          %v596 = vsel %vm531, 0, %v595
          %597 = vst [vmem:[#allocation2 + $0x104] sm:$0xf] %v596
          %v598 = vld [vmem:[#allocation2 + $0x110] sm:$0xf]
          %v599 = vsel %vm531, 0, %v598
          %600 = vst [vmem:[#allocation2 + $0x110] sm:$0xf] %v599
          %v601 = vld [vmem:[#allocation2 + $0x11c] sm:$0xf]
          %v602 = vsel %vm531, 0, %v601
          %603 = vst [vmem:[#allocation2 + $0x11c] sm:$0xf] %v602
          %v604 = vld [vmem:[#allocation2 + $0x128] sm:$0xf]
          %v605 = vsel %vm531, 0, %v604
          %606 = vst [vmem:[#allocation2 + $0x128] sm:$0xf] %v605
          %v607 = vld [vmem:[#allocation2 + $0x134] sm:$0xf]
          %v608 = vsel %vm531, 0, %v607
          %609 = vst [vmem:[#allocation2 + $0x134] sm:$0xf] %v608
          %v610 = vld [vmem:[#allocation2 + $0x140] sm:$0xf]
          %v611 = vsel %vm531, 0, %v610
          %612 = vst [vmem:[#allocation2 + $0x140] sm:$0xf] %v611
          %v613 = vld [vmem:[#allocation2 + $0x14c] sm:$0xf]
          %v614 = vsel %vm531, 0, %v613
          %615 = vst [vmem:[#allocation2 + $0x14c] sm:$0xf] %v614
          %v616 = vld [vmem:[#allocation2 + $0x158] sm:$0xf]
          %v617 = vsel %vm531, 0, %v616
          %618 = vst [vmem:[#allocation2 + $0x158] sm:$0xf] %v617
          %v619 = vld [vmem:[#allocation2 + $0x164] sm:$0xf]
          %v620 = vsel %vm531, 0, %v619
          %621 = vst [vmem:[#allocation2 + $0x164] sm:$0xf] %v620
          %v622 = vld [vmem:[#allocation2 + $0x170] sm:$0xf]
          %v623 = vsel %vm531, 0, %v622
          %624 = vst [vmem:[#allocation2 + $0x170] sm:$0xf] %v623
          %v625 = vld [vmem:[#allocation2 + $0x17c] sm:$0xf]
          %v626 = vsel %vm531, 0, %v625
          %627 = vst [vmem:[#allocation2 + $0x17c] sm:$0xf] %v626
          %v628 = vld [vmem:[#allocation2 + $0x188] sm:$0xf]
          %v629 = vsel %vm531, 0, %v628
          %630 = vst [vmem:[#allocation2 + $0x188] sm:$0xf] %v629
          %v631 = vld [vmem:[#allocation2 + $0x194] sm:$0xf]
          %v632 = vsel %vm531, 0, %v631
          %633 = vst [vmem:[#allocation2 + $0x194] sm:$0xf] %v632
          %v634 = vld [vmem:[#allocation2 + $0x1a0] sm:$0xf]
          %v635 = vsel %vm531, 0, %v634
          %636 = vst [vmem:[#allocation2 + $0x1a0] sm:$0xf] %v635
          %v637 = vld [vmem:[#allocation2 + $0x1ac] sm:$0xf]
          %v638 = vsel %vm531, 0, %v637
          %639 = vst [vmem:[#allocation2 + $0x1ac] sm:$0xf] %v638
          %v640 = vld [vmem:[%s378] sm:$0xf]
          %v641 = vld [vmem:[%s378 + $0x4] sm:$0xf]
          %v642 = vld [vmem:[%s378 + $0x8] sm:$0xf]
          %v643 = vld [vmem:[%s378 + $0xc] sm:$0xf]
          %v644 = vld [vmem:[%s378 + $0x10] sm:$0xf]
          %v645 = vld [vmem:[%s378 + $0x14] sm:$0xf]
          %v646 = vld [vmem:[%s378 + $0x18] sm:$0xf]
          %v647 = vld [vmem:[%s378 + $0x1c] sm:$0xf]
          %v648 = vld [vmem:[%s378 + $0x20] sm:$0xf]
          %v649 = vld [vmem:[%s378 + $0x24] sm:$0xf]
          %v650 = vld [vmem:[%s378 + $0x28] sm:$0xf]
          %v651 = vld [vmem:[%s378 + $0x2c] sm:$0xf]
          %v652 = vld [vmem:[%s378 + $0x30] sm:$0xf]
          %v653 = vld [vmem:[%s378 + $0x34] sm:$0xf]
          %v654 = vld [vmem:[%s378 + $0x38] sm:$0xf]
          %v655 = vld [vmem:[%s378 + $0x3c] sm:$0xf]
          %v656 = vld [vmem:[%s378 + $0x40] sm:$0xf]
          %v657 = vld [vmem:[%s378 + $0x44] sm:$0xf]
          %v658 = vld [vmem:[%s378 + $0x48] sm:$0xf]
          %v659 = vld [vmem:[%s378 + $0x4c] sm:$0xf]
          %v660 = vld [vmem:[%s378 + $0x50] sm:$0xf]
          %v661 = vld [vmem:[%s378 + $0x54] sm:$0xf]
          %v662 = vld [vmem:[%s378 + $0x58] sm:$0xf]
          %v663 = vld [vmem:[%s378 + $0x5c] sm:$0xf]
          %v664 = vld [vmem:[%s378 + $0x60] sm:$0xf]
          %v665 = vld [vmem:[%s378 + $0x64] sm:$0xf]
          %v666 = vld [vmem:[%s378 + $0x68] sm:$0xf]
          %v667 = vld [vmem:[%s378 + $0x6c] sm:$0xf]
          %v668 = vld [vmem:[%s378 + $0x70] sm:$0xf]
          %v669 = vld [vmem:[%s378 + $0x74] sm:$0xf]
          %v670 = vld [vmem:[%s378 + $0x78] sm:$0xf]
          %v671 = vld [vmem:[%s378 + $0x7c] sm:$0xf]
          %vm672 = vsmask.f32 4368
          %vm673 = vmor %vm419, %vm672
          %v675 = vshrl.u32 %v640, 16
          %v677 = vrot.slane %v675, 7
          %v678 = vshll.u32 %v640, 16
          %v680 = vor.u32 %v677, %v678
          %v681 = vrot.slane %v677, 4
          %v683 = vshrl.u32 %v641, 16
          %v685 = vrot.slane %v683, 7
          %v686 = vshll.u32 %v641, 16
          %v688 = vor.u32 %v685, %v686
          %v689 = vsel %vm673, %v681, %v688
          %v690 = vrot.slane %v685, 4
          %v692 = vshrl.u32 %v642, 16
          %v694 = vrot.slane %v692, 7
          %v695 = vshll.u32 %v642, 16
          %v697 = vor.u32 %v694, %v695
          %v698 = vrot.slane %v694, 4
          %v700 = vshrl.u32 %v643, 16
          %v702 = vrot.slane %v700, 7
          %v703 = vshll.u32 %v643, 16
          %v705 = vor.u32 %v702, %v703
          %v706 = vsel %vm673, %v698, %v705
          %v707 = vrot.slane %v702, 4
          %v709 = vshrl.u32 %v644, 16
          %v711 = vrot.slane %v709, 7
          %v712 = vshll.u32 %v644, 16
          %v714 = vor.u32 %v711, %v712
          %v715 = vrot.slane %v711, 4
          %v717 = vshrl.u32 %v645, 16
          %v719 = vrot.slane %v717, 7
          %v720 = vshll.u32 %v645, 16
          %v722 = vor.u32 %v719, %v720
          %v723 = vsel %vm673, %v715, %v722
          %v724 = vrot.slane %v719, 4
          %v726 = vshrl.u32 %v646, 16
          %v728 = vrot.slane %v726, 7
          %v729 = vshll.u32 %v646, 16
          %v731 = vor.u32 %v728, %v729
          %v732 = vrot.slane %v728, 4
          %v734 = vshrl.u32 %v647, 16
          %v736 = vrot.slane %v734, 7
          %v737 = vshll.u32 %v647, 16
          %v739 = vor.u32 %v736, %v737
          %v740 = vsel %vm673, %v732, %v739
          %v741 = vrot.slane %v736, 4
          %v743 = vshrl.u32 %v648, 16
          %v745 = vrot.slane %v743, 7
          %v746 = vshll.u32 %v648, 16
          %v748 = vor.u32 %v745, %v746
          %v749 = vrot.slane %v745, 4
          %v751 = vshrl.u32 %v649, 16
          %v753 = vrot.slane %v751, 7
          %v754 = vshll.u32 %v649, 16
          %v756 = vor.u32 %v753, %v754
          %v757 = vsel %vm673, %v749, %v756
          %v758 = vrot.slane %v753, 4
          %v760 = vshrl.u32 %v650, 16
          %v762 = vrot.slane %v760, 7
          %v763 = vshll.u32 %v650, 16
          %v765 = vor.u32 %v762, %v763
          %v766 = vrot.slane %v762, 4
          %v768 = vshrl.u32 %v651, 16
          %v770 = vrot.slane %v768, 7
          %v771 = vshll.u32 %v651, 16
          %v773 = vor.u32 %v770, %v771
          %v774 = vsel %vm673, %v766, %v773
          %v775 = vrot.slane %v770, 4
          %v777 = vshrl.u32 %v652, 16
          %v779 = vrot.slane %v777, 7
          %v780 = vshll.u32 %v652, 16
          %v782 = vor.u32 %v779, %v780
          %v783 = vrot.slane %v779, 4
          %v785 = vshrl.u32 %v653, 16
          %v787 = vrot.slane %v785, 7
          %v788 = vshll.u32 %v653, 16
          %v790 = vor.u32 %v787, %v788
          %v791 = vsel %vm673, %v783, %v790
          %v792 = vrot.slane %v787, 4
          %v794 = vshrl.u32 %v654, 16
          %v796 = vrot.slane %v794, 7
          %v797 = vshll.u32 %v654, 16
          %v799 = vor.u32 %v796, %v797
          %v800 = vrot.slane %v796, 4
          %v802 = vshrl.u32 %v655, 16
          %v804 = vrot.slane %v802, 7
          %v805 = vshll.u32 %v655, 16
          %v807 = vor.u32 %v804, %v805
          %v808 = vsel %vm673, %v800, %v807
          %v809 = vrot.slane %v804, 4
          %v811 = vshrl.u32 %v656, 16
          %v813 = vrot.slane %v811, 7
          %v814 = vshll.u32 %v656, 16
          %v816 = vor.u32 %v813, %v814
          %v817 = vrot.slane %v813, 4
          %v819 = vshrl.u32 %v657, 16
          %v821 = vrot.slane %v819, 7
          %v822 = vshll.u32 %v657, 16
          %v824 = vor.u32 %v821, %v822
          %v825 = vsel %vm673, %v817, %v824
          %v826 = vrot.slane %v821, 4
          %v828 = vshrl.u32 %v658, 16
          %v830 = vrot.slane %v828, 7
          %v831 = vshll.u32 %v658, 16
          %v833 = vor.u32 %v830, %v831
          %v834 = vrot.slane %v830, 4
          %v836 = vshrl.u32 %v659, 16
          %v838 = vrot.slane %v836, 7
          %v839 = vshll.u32 %v659, 16
          %v841 = vor.u32 %v838, %v839
          %v842 = vsel %vm673, %v834, %v841
          %v843 = vrot.slane %v838, 4
          %v845 = vshrl.u32 %v660, 16
          %v847 = vrot.slane %v845, 7
          %v848 = vshll.u32 %v660, 16
          %v850 = vor.u32 %v847, %v848
          %v851 = vrot.slane %v847, 4
          %v853 = vshrl.u32 %v661, 16
          %v855 = vrot.slane %v853, 7
          %v856 = vshll.u32 %v661, 16
          %v858 = vor.u32 %v855, %v856
          %v859 = vsel %vm673, %v851, %v858
          %v860 = vrot.slane %v855, 4
          %v862 = vshrl.u32 %v662, 16
          %v864 = vrot.slane %v862, 7
          %v865 = vshll.u32 %v662, 16
          %v867 = vor.u32 %v864, %v865
          %v868 = vrot.slane %v864, 4
          %v870 = vshrl.u32 %v663, 16
          %v872 = vrot.slane %v870, 7
          %v873 = vshll.u32 %v663, 16
          %v875 = vor.u32 %v872, %v873
          %v876 = vsel %vm673, %v868, %v875
          %v877 = vrot.slane %v872, 4
          %v879 = vshrl.u32 %v664, 16
          %v881 = vrot.slane %v879, 7
          %v882 = vshll.u32 %v664, 16
          %v884 = vor.u32 %v881, %v882
          %v885 = vrot.slane %v881, 4
          %v887 = vshrl.u32 %v665, 16
          %v889 = vrot.slane %v887, 7
          %v890 = vshll.u32 %v665, 16
          %v892 = vor.u32 %v889, %v890
          %v893 = vsel %vm673, %v885, %v892
          %v894 = vrot.slane %v889, 4
          %v896 = vshrl.u32 %v666, 16
          %v898 = vrot.slane %v896, 7
          %v899 = vshll.u32 %v666, 16
          %v901 = vor.u32 %v898, %v899
          %v902 = vrot.slane %v898, 4
          %v904 = vshrl.u32 %v667, 16
          %v906 = vrot.slane %v904, 7
          %v907 = vshll.u32 %v667, 16
          %v909 = vor.u32 %v906, %v907
          %v910 = vsel %vm673, %v902, %v909
          %v911 = vrot.slane %v906, 4
          %v913 = vshrl.u32 %v668, 16
          %v915 = vrot.slane %v913, 7
          %v916 = vshll.u32 %v668, 16
          %v918 = vor.u32 %v915, %v916
          %v919 = vrot.slane %v915, 4
          %v921 = vshrl.u32 %v669, 16
          %v923 = vrot.slane %v921, 7
          %v924 = vshll.u32 %v669, 16
          %v926 = vor.u32 %v923, %v924
          %v927 = vsel %vm673, %v919, %v926
          %v928 = vrot.slane %v923, 4
          %v930 = vshrl.u32 %v670, 16
          %v932 = vrot.slane %v930, 7
          %v933 = vshll.u32 %v670, 16
          %v935 = vor.u32 %v932, %v933
          %v936 = vrot.slane %v932, 4
          %v938 = vshrl.u32 %v671, 16
          %v940 = vrot.slane %v938, 7
          %v941 = vshll.u32 %v671, 16
          %v943 = vor.u32 %v940, %v941
          %v944 = vsel %vm673, %v936, %v943
          %v945 = vrot.slane %v940, 4
          %s994 = scalar_lea.vmem [#allocation2], 12
          %v995 = vld [vmem:[%s994] sm:$0xf]
          %v996 = vsel %vm531, %v680, %v995
          %997 = vst [vmem:[%s994] sm:$0xf] %v996
          %998 = vst [vmem:[%s994 + $0x4] sm:$0xf] %v689
          %v999 = vld [vmem:[%s994 + $0x8] sm:$0x1]
          %v1000 = vsel %vm420, %v690, %v999
          %1001 = vst [vmem:[%s994 + $0x8] sm:$0x1] %v1000
          %v1002 = vld [vmem:[%s994 + $0xc] sm:$0xf]
          %v1003 = vsel %vm531, %v697, %v1002
          %1004 = vst [vmem:[%s994 + $0xc] sm:$0xf] %v1003
          %1005 = vst [vmem:[%s994 + $0x10] sm:$0xf] %v706
          %v1006 = vld [vmem:[%s994 + $0x14] sm:$0x1]
          %v1007 = vsel %vm420, %v707, %v1006
          %1008 = vst [vmem:[%s994 + $0x14] sm:$0x1] %v1007
          %v1009 = vld [vmem:[%s994 + $0x18] sm:$0xf]
          %v1010 = vsel %vm531, %v714, %v1009
          %1011 = vst [vmem:[%s994 + $0x18] sm:$0xf] %v1010
          %1012 = vst [vmem:[%s994 + $0x1c] sm:$0xf] %v723
          %v1013 = vld [vmem:[%s994 + $0x20] sm:$0x1]
          %v1014 = vsel %vm420, %v724, %v1013
          %1015 = vst [vmem:[%s994 + $0x20] sm:$0x1] %v1014
          %v1016 = vld [vmem:[%s994 + $0x24] sm:$0xf]
          %v1017 = vsel %vm531, %v731, %v1016
          %1018 = vst [vmem:[%s994 + $0x24] sm:$0xf] %v1017
          %1019 = vst [vmem:[%s994 + $0x28] sm:$0xf] %v740
          %v1020 = vld [vmem:[%s994 + $0x2c] sm:$0x1]
          %v1021 = vsel %vm420, %v741, %v1020
          %1022 = vst [vmem:[%s994 + $0x2c] sm:$0x1] %v1021
          %v1023 = vld [vmem:[%s994 + $0x30] sm:$0xf]
          %v1024 = vsel %vm531, %v748, %v1023
          %1025 = vst [vmem:[%s994 + $0x30] sm:$0xf] %v1024
          %1026 = vst [vmem:[%s994 + $0x34] sm:$0xf] %v757
          %v1027 = vld [vmem:[%s994 + $0x38] sm:$0x1]
          %v1028 = vsel %vm420, %v758, %v1027
          %1029 = vst [vmem:[%s994 + $0x38] sm:$0x1] %v1028
          %v1030 = vld [vmem:[%s994 + $0x3c] sm:$0xf]
          %v1031 = vsel %vm531, %v765, %v1030
          %1032 = vst [vmem:[%s994 + $0x3c] sm:$0xf] %v1031
          %1033 = vst [vmem:[%s994 + $0x40] sm:$0xf] %v774
          %v1034 = vld [vmem:[%s994 + $0x44] sm:$0x1]
          %v1035 = vsel %vm420, %v775, %v1034
          %1036 = vst [vmem:[%s994 + $0x44] sm:$0x1] %v1035
          %v1037 = vld [vmem:[%s994 + $0x48] sm:$0xf]
          %v1038 = vsel %vm531, %v782, %v1037
          %1039 = vst [vmem:[%s994 + $0x48] sm:$0xf] %v1038
          %1040 = vst [vmem:[%s994 + $0x4c] sm:$0xf] %v791
          %v1041 = vld [vmem:[%s994 + $0x50] sm:$0x1]
          %v1042 = vsel %vm420, %v792, %v1041
          %1043 = vst [vmem:[%s994 + $0x50] sm:$0x1] %v1042
          %v1044 = vld [vmem:[%s994 + $0x54] sm:$0xf]
          %v1045 = vsel %vm531, %v799, %v1044
          %1046 = vst [vmem:[%s994 + $0x54] sm:$0xf] %v1045
          %1047 = vst [vmem:[%s994 + $0x58] sm:$0xf] %v808
          %v1048 = vld [vmem:[%s994 + $0x5c] sm:$0x1]
          %v1049 = vsel %vm420, %v809, %v1048
          %1050 = vst [vmem:[%s994 + $0x5c] sm:$0x1] %v1049
          %v1051 = vld [vmem:[%s994 + $0x60] sm:$0xf]
          %v1052 = vsel %vm531, %v816, %v1051
          %1053 = vst [vmem:[%s994 + $0x60] sm:$0xf] %v1052
          %1054 = vst [vmem:[%s994 + $0x64] sm:$0xf] %v825
          %v1055 = vld [vmem:[%s994 + $0x68] sm:$0x1]
          %v1056 = vsel %vm420, %v826, %v1055
          %1057 = vst [vmem:[%s994 + $0x68] sm:$0x1] %v1056
          %v1058 = vld [vmem:[%s994 + $0x6c] sm:$0xf]
          %v1059 = vsel %vm531, %v833, %v1058
          %1060 = vst [vmem:[%s994 + $0x6c] sm:$0xf] %v1059
          %1061 = vst [vmem:[%s994 + $0x70] sm:$0xf] %v842
          %v1062 = vld [vmem:[%s994 + $0x74] sm:$0x1]
          %v1063 = vsel %vm420, %v843, %v1062
          %1064 = vst [vmem:[%s994 + $0x74] sm:$0x1] %v1063
          %v1065 = vld [vmem:[%s994 + $0x78] sm:$0xf]
          %v1066 = vsel %vm531, %v850, %v1065
          %1067 = vst [vmem:[%s994 + $0x78] sm:$0xf] %v1066
          %1068 = vst [vmem:[%s994 + $0x7c] sm:$0xf] %v859
          %v1069 = vld [vmem:[%s994 + $0x80] sm:$0x1]
          %v1070 = vsel %vm420, %v860, %v1069
          %1071 = vst [vmem:[%s994 + $0x80] sm:$0x1] %v1070
          %v1072 = vld [vmem:[%s994 + $0x84] sm:$0xf]
          %v1073 = vsel %vm531, %v867, %v1072
          %1074 = vst [vmem:[%s994 + $0x84] sm:$0xf] %v1073
          %1075 = vst [vmem:[%s994 + $0x88] sm:$0xf] %v876
          %v1076 = vld [vmem:[%s994 + $0x8c] sm:$0x1]
          %v1077 = vsel %vm420, %v877, %v1076
          %1078 = vst [vmem:[%s994 + $0x8c] sm:$0x1] %v1077
          %v1079 = vld [vmem:[%s994 + $0x90] sm:$0xf]
          %v1080 = vsel %vm531, %v884, %v1079
          %1081 = vst [vmem:[%s994 + $0x90] sm:$0xf] %v1080
          %1082 = vst [vmem:[%s994 + $0x94] sm:$0xf] %v893
          %v1083 = vld [vmem:[%s994 + $0x98] sm:$0x1]
          %v1084 = vsel %vm420, %v894, %v1083
          %1085 = vst [vmem:[%s994 + $0x98] sm:$0x1] %v1084
          %v1086 = vld [vmem:[%s994 + $0x9c] sm:$0xf]
          %v1087 = vsel %vm531, %v901, %v1086
          %1088 = vst [vmem:[%s994 + $0x9c] sm:$0xf] %v1087
          %1089 = vst [vmem:[%s994 + $0xa0] sm:$0xf] %v910
          %v1090 = vld [vmem:[%s994 + $0xa4] sm:$0x1]
          %v1091 = vsel %vm420, %v911, %v1090
          %1092 = vst [vmem:[%s994 + $0xa4] sm:$0x1] %v1091
          %v1093 = vld [vmem:[%s994 + $0xa8] sm:$0xf]
          %v1094 = vsel %vm531, %v918, %v1093
          %1095 = vst [vmem:[%s994 + $0xa8] sm:$0xf] %v1094
          %1096 = vst [vmem:[%s994 + $0xac] sm:$0xf] %v927
          %v1097 = vld [vmem:[%s994 + $0xb0] sm:$0x1]
          %v1098 = vsel %vm420, %v928, %v1097
          %1099 = vst [vmem:[%s994 + $0xb0] sm:$0x1] %v1098
          %v1100 = vld [vmem:[%s994 + $0xb4] sm:$0xf]
          %v1101 = vsel %vm531, %v935, %v1100
          %1102 = vst [vmem:[%s994 + $0xb4] sm:$0xf] %v1101
          %1103 = vst [vmem:[%s994 + $0xb8] sm:$0xf] %v944
          %v1104 = vld [vmem:[%s994 + $0xbc] sm:$0x1]
          %v1105 = vsel %vm420, %v945, %v1104
          %1106 = vst [vmem:[%s994 + $0xbc] sm:$0x1] %v1105
        $region60: #{_lambda_.1} parent=39 // pred_fallthru
          _
        %s1107 = smul.u32 %s400, 54
        %s1108 = smul.addr %s1107, 4
        %s1109 = scalar_lea.vmem [#allocation2], %s1108
        %v1110 = vld [vmem:[%s1109] sm:$0xf]
        %v1111 = vld [vmem:[%s1109 + $0x4] sm:$0xf]
        %v1112 = vld [vmem:[%s1109 + $0xc] sm:$0xf]
        %v1113 = vld [vmem:[%s1109 + $0x10] sm:$0xf]
        %v1114 = vld [vmem:[%s1109 + $0x18] sm:$0xf]
        %v1115 = vld [vmem:[%s1109 + $0x1c] sm:$0xf]
        %v1116 = vld [vmem:[%s1109 + $0x24] sm:$0xf]
        %v1117 = vld [vmem:[%s1109 + $0x28] sm:$0xf]
        %v1118 = vld [vmem:[%s1109 + $0x30] sm:$0xf]
        %v1119 = vld [vmem:[%s1109 + $0x34] sm:$0xf]
        %v1120 = vld [vmem:[%s1109 + $0x3c] sm:$0xf]
        %v1121 = vld [vmem:[%s1109 + $0x40] sm:$0xf]
        %v1122 = vld [vmem:[%s1109 + $0x48] sm:$0xf]
        %v1123 = vld [vmem:[%s1109 + $0x4c] sm:$0xf]
        %v1124 = vld [vmem:[%s1109 + $0x54] sm:$0xf]
        %v1125 = vld [vmem:[%s1109 + $0x58] sm:$0xf]
        %v1126 = vld [vmem:[%s1109 + $0x60] sm:$0xf]
        %v1127 = vld [vmem:[%s1109 + $0x64] sm:$0xf]
        %v1128 = vld [vmem:[%s1109 + $0x6c] sm:$0xf]
        %v1129 = vld [vmem:[%s1109 + $0x70] sm:$0xf]
        %v1130 = vld [vmem:[%s1109 + $0x78] sm:$0xf]
        %v1131 = vld [vmem:[%s1109 + $0x7c] sm:$0xf]
        %v1132 = vld [vmem:[%s1109 + $0x84] sm:$0xf]
        %v1133 = vld [vmem:[%s1109 + $0x88] sm:$0xf]
        %v1134 = vld [vmem:[%s1109 + $0x90] sm:$0xf]
        %v1135 = vld [vmem:[%s1109 + $0x94] sm:$0xf]
        %v1136 = vld [vmem:[%s1109 + $0x9c] sm:$0xf]
        %v1137 = vld [vmem:[%s1109 + $0xa0] sm:$0xf]
        %v1138 = vld [vmem:[%s1109 + $0xa8] sm:$0xf]
        %v1139 = vld [vmem:[%s1109 + $0xac] sm:$0xf]
        %v1140 = vld [vmem:[%s1109 + $0xb4] sm:$0xf]
        %v1141 = vld [vmem:[%s1109 + $0xb8] sm:$0xf]
        %v1142 = vld [vmem:[%s1109 + $0x8] sm:$0x1]
        %v1143 = vld [vmem:[%s1109 + $0x14] sm:$0x1]
        %v1144 = vld [vmem:[%s1109 + $0x20] sm:$0x1]
        %v1145 = vld [vmem:[%s1109 + $0x2c] sm:$0x1]
        %v1146 = vld [vmem:[%s1109 + $0x38] sm:$0x1]
        %v1147 = vld [vmem:[%s1109 + $0x44] sm:$0x1]
        %v1148 = vld [vmem:[%s1109 + $0x50] sm:$0x1]
        %v1149 = vld [vmem:[%s1109 + $0x5c] sm:$0x1]
        %v1150 = vld [vmem:[%s1109 + $0x68] sm:$0x1]
        %v1151 = vld [vmem:[%s1109 + $0x74] sm:$0x1]
        %v1152 = vld [vmem:[%s1109 + $0x80] sm:$0x1]
        %v1153 = vld [vmem:[%s1109 + $0x8c] sm:$0x1]
        %v1154 = vld [vmem:[%s1109 + $0x98] sm:$0x1]
        %v1155 = vld [vmem:[%s1109 + $0xa4] sm:$0x1]
        %v1156 = vld [vmem:[%s1109 + $0xb0] sm:$0x1]
        %v1157 = vld [vmem:[%s1109 + $0xbc] sm:$0x1]
        %v1158 = vld [vmem:[%s1109] sm:$0xe]
        %v1159 = vld [vmem:[%s1109 + $0xc] sm:$0xe]
        %v1160 = vld [vmem:[%s1109 + $0x18] sm:$0xe]
        %v1161 = vld [vmem:[%s1109 + $0x24] sm:$0xe]
        %v1162 = vld [vmem:[%s1109 + $0x30] sm:$0xe]
        %v1163 = vld [vmem:[%s1109 + $0x3c] sm:$0xe]
        %v1164 = vld [vmem:[%s1109 + $0x48] sm:$0xe]
        %v1165 = vld [vmem:[%s1109 + $0x54] sm:$0xe]
        %v1166 = vld [vmem:[%s1109 + $0x60] sm:$0xe]
        %v1167 = vld [vmem:[%s1109 + $0x6c] sm:$0xe]
        %v1168 = vld [vmem:[%s1109 + $0x78] sm:$0xe]
        %v1169 = vld [vmem:[%s1109 + $0x84] sm:$0xe]
        %v1170 = vld [vmem:[%s1109 + $0x90] sm:$0xe]
        %v1171 = vld [vmem:[%s1109 + $0x9c] sm:$0xe]
        %v1172 = vld [vmem:[%s1109 + $0xa8] sm:$0xe]
        %v1173 = vld [vmem:[%s1109 + $0xb4] sm:$0xe]
        %v1206 = vunpack.c.l.b16 %v1110
        %v1207 = vunpack.c.l.b16 %v1111
        %v1208 = vunpack.c.l.b16 %v1112
        %v1209 = vunpack.c.l.b16 %v1113
        %v1210 = vunpack.c.l.b16 %v1114
        %v1211 = vunpack.c.l.b16 %v1115
        %v1212 = vunpack.c.l.b16 %v1116
        %v1213 = vunpack.c.l.b16 %v1117
        %v1214 = vunpack.c.l.b16 %v1118
        %v1215 = vunpack.c.l.b16 %v1119
        %v1216 = vunpack.c.l.b16 %v1120
        %v1217 = vunpack.c.l.b16 %v1121
        %v1218 = vunpack.c.l.b16 %v1122
        %v1219 = vunpack.c.l.b16 %v1123
        %v1220 = vunpack.c.l.b16 %v1124
        %v1221 = vunpack.c.l.b16 %v1125
        %v1222 = vunpack.c.l.b16 %v1126
        %v1223 = vunpack.c.l.b16 %v1127
        %v1224 = vunpack.c.l.b16 %v1128
        %v1225 = vunpack.c.l.b16 %v1129
        %v1226 = vunpack.c.l.b16 %v1130
        %v1227 = vunpack.c.l.b16 %v1131
        %v1228 = vunpack.c.l.b16 %v1132
        %v1229 = vunpack.c.l.b16 %v1133
        %v1230 = vunpack.c.l.b16 %v1134
        %v1231 = vunpack.c.l.b16 %v1135
        %v1232 = vunpack.c.l.b16 %v1136
        %v1233 = vunpack.c.l.b16 %v1137
        %v1234 = vunpack.c.l.b16 %v1138
        %v1235 = vunpack.c.l.b16 %v1139
        %v1236 = vunpack.c.l.b16 %v1140
        %v1237 = vunpack.c.l.b16 %v1141
        %v1238 = vpack.c.b16 %v1207, %v1206
        %v1239 = vpack.c.b16 %v1209, %v1208
        %v1240 = vpack.c.b16 %v1211, %v1210
        %v1241 = vpack.c.b16 %v1213, %v1212
        %v1242 = vpack.c.b16 %v1215, %v1214
        %v1243 = vpack.c.b16 %v1217, %v1216
        %v1244 = vpack.c.b16 %v1219, %v1218
        %v1245 = vpack.c.b16 %v1221, %v1220
        %v1246 = vpack.c.b16 %v1223, %v1222
        %v1247 = vpack.c.b16 %v1225, %v1224
        %v1248 = vpack.c.b16 %v1227, %v1226
        %v1249 = vpack.c.b16 %v1229, %v1228
        %v1250 = vpack.c.b16 %v1231, %v1230
        %v1251 = vpack.c.b16 %v1233, %v1232
        %v1252 = vpack.c.b16 %v1235, %v1234
        %v1253 = vpack.c.b16 %v1237, %v1236
        %v1286 = vunpack.c.l.b16 %v1142
        %v1287 = vunpack.c.l.b16 %v1143
        %v1288 = vunpack.c.l.b16 %v1144
        %v1289 = vunpack.c.l.b16 %v1145
        %v1290 = vunpack.c.l.b16 %v1146
        %v1291 = vunpack.c.l.b16 %v1147
        %v1292 = vunpack.c.l.b16 %v1148
        %v1293 = vunpack.c.l.b16 %v1149
        %v1294 = vunpack.c.l.b16 %v1150
        %v1295 = vunpack.c.l.b16 %v1151
        %v1296 = vunpack.c.l.b16 %v1152
        %v1297 = vunpack.c.l.b16 %v1153
        %v1298 = vunpack.c.l.b16 %v1154
        %v1299 = vunpack.c.l.b16 %v1155
        %v1300 = vunpack.c.l.b16 %v1156
        %v1301 = vunpack.c.l.b16 %v1157
        %v1302 = vpack.c.b16 %v1286, %v1286
        %v1303 = vpack.c.b16 %v1287, %v1287
        %v1304 = vpack.c.b16 %v1288, %v1288
        %v1305 = vpack.c.b16 %v1289, %v1289
        %v1306 = vpack.c.b16 %v1290, %v1290
        %v1307 = vpack.c.b16 %v1291, %v1291
        %v1308 = vpack.c.b16 %v1292, %v1292
        %v1309 = vpack.c.b16 %v1293, %v1293
        %v1310 = vpack.c.b16 %v1294, %v1294
        %v1311 = vpack.c.b16 %v1295, %v1295
        %v1312 = vpack.c.b16 %v1296, %v1296
        %v1313 = vpack.c.b16 %v1297, %v1297
        %v1314 = vpack.c.b16 %v1298, %v1298
        %v1315 = vpack.c.b16 %v1299, %v1299
        %v1316 = vpack.c.b16 %v1300, %v1300
        %v1317 = vpack.c.b16 %v1301, %v1301
        %vm1318 = vsmask.f32 7424
        %v1320 = vshrl.u32 %v1238, 16
        %v1322 = vshll.u32 %v1238, 16
        %v1324 = vrot.slane %v1322, 1
        %v1325 = vor.u32 %v1320, %v1324
        %v1327 = vshll.u32 %v1302, 16
        %v1329 = vrot.slane %v1327, 1
        %v1330 = vsel %vm1318, %v1325, %v1329
        %v1332 = vshrl.u32 %v1239, 16
        %v1334 = vshll.u32 %v1239, 16
        %v1336 = vrot.slane %v1334, 1
        %v1337 = vor.u32 %v1332, %v1336
        %v1339 = vshll.u32 %v1303, 16
        %v1341 = vrot.slane %v1339, 1
        %v1342 = vsel %vm1318, %v1337, %v1341
        %v1344 = vshrl.u32 %v1240, 16
        %v1346 = vshll.u32 %v1240, 16
        %v1348 = vrot.slane %v1346, 1
        %v1349 = vor.u32 %v1344, %v1348
        %v1351 = vshll.u32 %v1304, 16
        %v1353 = vrot.slane %v1351, 1
        %v1354 = vsel %vm1318, %v1349, %v1353
        %v1356 = vshrl.u32 %v1241, 16
        %v1358 = vshll.u32 %v1241, 16
        %v1360 = vrot.slane %v1358, 1
        %v1361 = vor.u32 %v1356, %v1360
        %v1363 = vshll.u32 %v1305, 16
        %v1365 = vrot.slane %v1363, 1
        %v1366 = vsel %vm1318, %v1361, %v1365
        %v1368 = vshrl.u32 %v1242, 16
        %v1370 = vshll.u32 %v1242, 16
        %v1372 = vrot.slane %v1370, 1
        %v1373 = vor.u32 %v1368, %v1372
        %v1375 = vshll.u32 %v1306, 16
        %v1377 = vrot.slane %v1375, 1
        %v1378 = vsel %vm1318, %v1373, %v1377
        %v1380 = vshrl.u32 %v1243, 16
        %v1382 = vshll.u32 %v1243, 16
        %v1384 = vrot.slane %v1382, 1
        %v1385 = vor.u32 %v1380, %v1384
        %v1387 = vshll.u32 %v1307, 16
        %v1389 = vrot.slane %v1387, 1
        %v1390 = vsel %vm1318, %v1385, %v1389
        %v1392 = vshrl.u32 %v1244, 16
        %v1394 = vshll.u32 %v1244, 16
        %v1396 = vrot.slane %v1394, 1
        %v1397 = vor.u32 %v1392, %v1396
        %v1399 = vshll.u32 %v1308, 16
        %v1401 = vrot.slane %v1399, 1
        %v1402 = vsel %vm1318, %v1397, %v1401
        %v1404 = vshrl.u32 %v1245, 16
        %v1406 = vshll.u32 %v1245, 16
        %v1408 = vrot.slane %v1406, 1
        %v1409 = vor.u32 %v1404, %v1408
        %v1411 = vshll.u32 %v1309, 16
        %v1413 = vrot.slane %v1411, 1
        %v1414 = vsel %vm1318, %v1409, %v1413
        %v1416 = vshrl.u32 %v1246, 16
        %v1418 = vshll.u32 %v1246, 16
        %v1420 = vrot.slane %v1418, 1
        %v1421 = vor.u32 %v1416, %v1420
        %v1423 = vshll.u32 %v1310, 16
        %v1425 = vrot.slane %v1423, 1
        %v1426 = vsel %vm1318, %v1421, %v1425
        %v1428 = vshrl.u32 %v1247, 16
        %v1430 = vshll.u32 %v1247, 16
        %v1432 = vrot.slane %v1430, 1
        %v1433 = vor.u32 %v1428, %v1432
        %v1435 = vshll.u32 %v1311, 16
        %v1437 = vrot.slane %v1435, 1
        %v1438 = vsel %vm1318, %v1433, %v1437
        %v1440 = vshrl.u32 %v1248, 16
        %v1442 = vshll.u32 %v1248, 16
        %v1444 = vrot.slane %v1442, 1
        %v1445 = vor.u32 %v1440, %v1444
        %v1447 = vshll.u32 %v1312, 16
        %v1449 = vrot.slane %v1447, 1
        %v1450 = vsel %vm1318, %v1445, %v1449
        %v1452 = vshrl.u32 %v1249, 16
        %v1454 = vshll.u32 %v1249, 16
        %v1456 = vrot.slane %v1454, 1
        %v1457 = vor.u32 %v1452, %v1456
        %v1459 = vshll.u32 %v1313, 16
        %v1461 = vrot.slane %v1459, 1
        %v1462 = vsel %vm1318, %v1457, %v1461
        %v1464 = vshrl.u32 %v1250, 16
        %v1466 = vshll.u32 %v1250, 16
        %v1468 = vrot.slane %v1466, 1
        %v1469 = vor.u32 %v1464, %v1468
        %v1471 = vshll.u32 %v1314, 16
        %v1473 = vrot.slane %v1471, 1
        %v1474 = vsel %vm1318, %v1469, %v1473
        %v1476 = vshrl.u32 %v1251, 16
        %v1478 = vshll.u32 %v1251, 16
        %v1480 = vrot.slane %v1478, 1
        %v1481 = vor.u32 %v1476, %v1480
        %v1483 = vshll.u32 %v1315, 16
        %v1485 = vrot.slane %v1483, 1
        %v1486 = vsel %vm1318, %v1481, %v1485
        %v1488 = vshrl.u32 %v1252, 16
        %v1490 = vshll.u32 %v1252, 16
        %v1492 = vrot.slane %v1490, 1
        %v1493 = vor.u32 %v1488, %v1492
        %v1495 = vshll.u32 %v1316, 16
        %v1497 = vrot.slane %v1495, 1
        %v1498 = vsel %vm1318, %v1493, %v1497
        %v1500 = vshrl.u32 %v1253, 16
        %v1502 = vshll.u32 %v1253, 16
        %v1504 = vrot.slane %v1502, 1
        %v1505 = vor.u32 %v1500, %v1504
        %v1507 = vshll.u32 %v1317, 16
        %v1509 = vrot.slane %v1507, 1
        %v1510 = vsel %vm1318, %v1505, %v1509
        %v1543 = vunpack.c.l.b16 %v1158
        %v1544 = vunpack.c.l.b16 %v1159
        %v1545 = vunpack.c.l.b16 %v1160
        %v1546 = vunpack.c.l.b16 %v1161
        %v1547 = vunpack.c.l.b16 %v1162
        %v1548 = vunpack.c.l.b16 %v1163
        %v1549 = vunpack.c.l.b16 %v1164
        %v1550 = vunpack.c.l.b16 %v1165
        %v1551 = vunpack.c.l.b16 %v1166
        %v1552 = vunpack.c.l.b16 %v1167
        %v1553 = vunpack.c.l.b16 %v1168
        %v1554 = vunpack.c.l.b16 %v1169
        %v1555 = vunpack.c.l.b16 %v1170
        %v1556 = vunpack.c.l.b16 %v1171
        %v1557 = vunpack.c.l.b16 %v1172
        %v1558 = vunpack.c.l.b16 %v1173
        %v1559 = vpack.c.b16 %v1207, %v1543
        %v1560 = vpack.c.b16 %v1209, %v1544
        %v1561 = vpack.c.b16 %v1211, %v1545
        %v1562 = vpack.c.b16 %v1213, %v1546
        %v1563 = vpack.c.b16 %v1215, %v1547
        %v1564 = vpack.c.b16 %v1217, %v1548
        %v1565 = vpack.c.b16 %v1219, %v1549
        %v1566 = vpack.c.b16 %v1221, %v1550
        %v1567 = vpack.c.b16 %v1223, %v1551
        %v1568 = vpack.c.b16 %v1225, %v1552
        %v1569 = vpack.c.b16 %v1227, %v1553
        %v1570 = vpack.c.b16 %v1229, %v1554
        %v1571 = vpack.c.b16 %v1231, %v1555
        %v1572 = vpack.c.b16 %v1233, %v1556
        %v1573 = vpack.c.b16 %v1235, %v1557
        %v1574 = vpack.c.b16 %v1237, %v1558
        %vm1575 = vcmask 1046528
        %v1576 = vrot.slane %v1559, 1
        %v1577 = vrot.slane %v1302, 1
        %v1578 = vsel %vm1575, %v1576, %v1577
        %v1579 = vrot.slane %v1560, 1
        %v1580 = vrot.slane %v1303, 1
        %v1581 = vsel %vm1575, %v1579, %v1580
        %v1582 = vrot.slane %v1561, 1
        %v1583 = vrot.slane %v1304, 1
        %v1584 = vsel %vm1575, %v1582, %v1583
        %v1585 = vrot.slane %v1562, 1
        %v1586 = vrot.slane %v1305, 1
        %v1587 = vsel %vm1575, %v1585, %v1586
        %v1588 = vrot.slane %v1563, 1
        %v1589 = vrot.slane %v1306, 1
        %v1590 = vsel %vm1575, %v1588, %v1589
        %v1591 = vrot.slane %v1564, 1
        %v1592 = vrot.slane %v1307, 1
        %v1593 = vsel %vm1575, %v1591, %v1592
        %v1594 = vrot.slane %v1565, 1
        %v1595 = vrot.slane %v1308, 1
        %v1596 = vsel %vm1575, %v1594, %v1595
        %v1597 = vrot.slane %v1566, 1
        %v1598 = vrot.slane %v1309, 1
        %v1599 = vsel %vm1575, %v1597, %v1598
        %v1600 = vrot.slane %v1567, 1
        %v1601 = vrot.slane %v1310, 1
        %v1602 = vsel %vm1575, %v1600, %v1601
        %v1603 = vrot.slane %v1568, 1
        %v1604 = vrot.slane %v1311, 1
        %v1605 = vsel %vm1575, %v1603, %v1604
        %v1606 = vrot.slane %v1569, 1
        %v1607 = vrot.slane %v1312, 1
        %v1608 = vsel %vm1575, %v1606, %v1607
        %v1609 = vrot.slane %v1570, 1
        %v1610 = vrot.slane %v1313, 1
        %v1611 = vsel %vm1575, %v1609, %v1610
        %v1612 = vrot.slane %v1571, 1
        %v1613 = vrot.slane %v1314, 1
        %v1614 = vsel %vm1575, %v1612, %v1613
        %v1615 = vrot.slane %v1572, 1
        %v1616 = vrot.slane %v1315, 1
        %v1617 = vsel %vm1575, %v1615, %v1616
        %v1618 = vrot.slane %v1573, 1
        %v1619 = vrot.slane %v1316, 1
        %v1620 = vsel %vm1575, %v1618, %v1619
        %v1621 = vrot.slane %v1574, 1
        %v1622 = vrot.slane %v1317, 1
        %v1623 = vsel %vm1575, %v1621, %v1622
        %v1640 = vld [vmem:[%s302] sm:$0xf]
        %v1641 = vld [vmem:[%s302 + $0x4] sm:$0xf]
        %v1642 = vld [vmem:[%s302 + $0x8] sm:$0xf]
        %v1643 = vld [vmem:[%s302 + $0xc] sm:$0xf]
        %v1644 = vld [vmem:[%s302 + $0x10] sm:$0xf]
        %v1645 = vld [vmem:[%s302 + $0x14] sm:$0xf]
        %v1646 = vld [vmem:[%s302 + $0x18] sm:$0xf]
        %v1647 = vld [vmem:[%s302 + $0x1c] sm:$0xf]
        %v1648 = vld [vmem:[%s302 + $0x20] sm:$0xf]
        %v1649 = vld [vmem:[%s302 + $0x24] sm:$0xf]
        %v1650 = vld [vmem:[%s302 + $0x28] sm:$0xf]
        %v1651 = vld [vmem:[%s302 + $0x2c] sm:$0xf]
        %v1652 = vld [vmem:[%s302 + $0x30] sm:$0xf]
        %v1653 = vld [vmem:[%s302 + $0x34] sm:$0xf]
        %v1654 = vld [vmem:[%s302 + $0x38] sm:$0xf]
        %v1655 = vld [vmem:[%s302 + $0x3c] sm:$0xf]
        %v1656 = vld [vmem:[%s302 + $0x40] sm:$0xf]
        %v1657 = vld [vmem:[%s302 + $0x44] sm:$0xf]
        %v1658 = vld [vmem:[%s302 + $0x48] sm:$0xf]
        %v1659 = vld [vmem:[%s302 + $0x4c] sm:$0xf]
        %v1660 = vld [vmem:[%s302 + $0x50] sm:$0xf]
        %v1661 = vld [vmem:[%s302 + $0x54] sm:$0xf]
        %v1662 = vld [vmem:[%s302 + $0x58] sm:$0xf]
        %v1663 = vld [vmem:[%s302 + $0x5c] sm:$0xf]
        %v1664 = vld [vmem:[%s302 + $0x60] sm:$0xf]
        %v1665 = vld [vmem:[%s302 + $0x64] sm:$0xf]
        %v1666 = vld [vmem:[%s302 + $0x68] sm:$0xf]
        %v1667 = vld [vmem:[%s302 + $0x6c] sm:$0xf]
        %v1668 = vld [vmem:[%s302 + $0x70] sm:$0xf]
        %v1669 = vld [vmem:[%s302 + $0x74] sm:$0xf]
        %v1670 = vld [vmem:[%s302 + $0x78] sm:$0xf]
        %v1671 = vld [vmem:[%s302 + $0x7c] sm:$0xf]
        %v1672 = vld [vmem:[%s302 + $0x80] sm:$0xf]
        %v1673 = vld [vmem:[%s302 + $0x84] sm:$0xf]
        %v1674 = vld [vmem:[%s302 + $0x88] sm:$0xf]
        %v1675 = vld [vmem:[%s302 + $0x8c] sm:$0xf]
        %v1676 = vld [vmem:[%s302 + $0x90] sm:$0xf]
        %v1677 = vld [vmem:[%s302 + $0x94] sm:$0xf]
        %v1678 = vld [vmem:[%s302 + $0x98] sm:$0xf]
        %v1679 = vld [vmem:[%s302 + $0x9c] sm:$0xf]
        %v1680 = vld [vmem:[%s302 + $0xa0] sm:$0xf]
        %v1681 = vld [vmem:[%s302 + $0xa4] sm:$0xf]
        %v1682 = vld [vmem:[%s302 + $0xa8] sm:$0xf]
        %v1683 = vld [vmem:[%s302 + $0xac] sm:$0xf]
        %v1684 = vld [vmem:[%s302 + $0xb0] sm:$0xf]
        %v1685 = vld [vmem:[%s302 + $0xb4] sm:$0xf]
        %v1686 = vld [vmem:[%s302 + $0xb8] sm:$0xf]
        %v1687 = vld [vmem:[%s302 + $0xbc] sm:$0xf]
        %s1688 = scalar_lea.vmem %s1109, 12 [#allocation2]
        %v1689 = vld [vmem:[%s1688] sm:$0xf]
        %v1690 = vld [vmem:[%s1688 + $0x4] sm:$0xf]
        %v1691 = vld [vmem:[%s1688 + $0xc] sm:$0xf]
        %v1692 = vld [vmem:[%s1688 + $0x10] sm:$0xf]
        %v1693 = vld [vmem:[%s1688 + $0x18] sm:$0xf]
        %v1694 = vld [vmem:[%s1688 + $0x1c] sm:$0xf]
        %v1695 = vld [vmem:[%s1688 + $0x24] sm:$0xf]
        %v1696 = vld [vmem:[%s1688 + $0x28] sm:$0xf]
        %v1697 = vld [vmem:[%s1688 + $0x30] sm:$0xf]
        %v1698 = vld [vmem:[%s1688 + $0x34] sm:$0xf]
        %v1699 = vld [vmem:[%s1688 + $0x3c] sm:$0xf]
        %v1700 = vld [vmem:[%s1688 + $0x40] sm:$0xf]
        %v1701 = vld [vmem:[%s1688 + $0x48] sm:$0xf]
        %v1702 = vld [vmem:[%s1688 + $0x4c] sm:$0xf]
        %v1703 = vld [vmem:[%s1688 + $0x54] sm:$0xf]
        %v1704 = vld [vmem:[%s1688 + $0x58] sm:$0xf]
        %v1705 = vld [vmem:[%s1688 + $0x60] sm:$0xf]
        %v1706 = vld [vmem:[%s1688 + $0x64] sm:$0xf]
        %v1707 = vld [vmem:[%s1688 + $0x6c] sm:$0xf]
        %v1708 = vld [vmem:[%s1688 + $0x70] sm:$0xf]
        %v1709 = vld [vmem:[%s1688 + $0x78] sm:$0xf]
        %v1710 = vld [vmem:[%s1688 + $0x7c] sm:$0xf]
        %v1711 = vld [vmem:[%s1688 + $0x84] sm:$0xf]
        %v1712 = vld [vmem:[%s1688 + $0x88] sm:$0xf]
        %v1713 = vld [vmem:[%s1688 + $0x90] sm:$0xf]
        %v1714 = vld [vmem:[%s1688 + $0x94] sm:$0xf]
        %v1715 = vld [vmem:[%s1688 + $0x9c] sm:$0xf]
        %v1716 = vld [vmem:[%s1688 + $0xa0] sm:$0xf]
        %v1717 = vld [vmem:[%s1688 + $0xa8] sm:$0xf]
        %v1718 = vld [vmem:[%s1688 + $0xac] sm:$0xf]
        %v1719 = vld [vmem:[%s1688 + $0xb4] sm:$0xf]
        %v1720 = vld [vmem:[%s1688 + $0xb8] sm:$0xf]
        %v1721 = vld [vmem:[%s1688 + $0x8] sm:$0x1]
        %v1722 = vld [vmem:[%s1688 + $0x14] sm:$0x1]
        %v1723 = vld [vmem:[%s1688 + $0x20] sm:$0x1]
        %v1724 = vld [vmem:[%s1688 + $0x2c] sm:$0x1]
        %v1725 = vld [vmem:[%s1688 + $0x38] sm:$0x1]
        %v1726 = vld [vmem:[%s1688 + $0x44] sm:$0x1]
        %v1727 = vld [vmem:[%s1688 + $0x50] sm:$0x1]
        %v1728 = vld [vmem:[%s1688 + $0x5c] sm:$0x1]
        %v1729 = vld [vmem:[%s1688 + $0x68] sm:$0x1]
        %v1730 = vld [vmem:[%s1688 + $0x74] sm:$0x1]
        %v1731 = vld [vmem:[%s1688 + $0x80] sm:$0x1]
        %v1732 = vld [vmem:[%s1688 + $0x8c] sm:$0x1]
        %v1733 = vld [vmem:[%s1688 + $0x98] sm:$0x1]
        %v1734 = vld [vmem:[%s1688 + $0xa4] sm:$0x1]
        %v1735 = vld [vmem:[%s1688 + $0xb0] sm:$0x1]
        %v1736 = vld [vmem:[%s1688 + $0xbc] sm:$0x1]
        %v1737 = vld [vmem:[%s1688] sm:$0xe]
        %v1738 = vld [vmem:[%s1688 + $0xc] sm:$0xe]
        %v1739 = vld [vmem:[%s1688 + $0x18] sm:$0xe]
        %v1740 = vld [vmem:[%s1688 + $0x24] sm:$0xe]
        %v1741 = vld [vmem:[%s1688 + $0x30] sm:$0xe]
        %v1742 = vld [vmem:[%s1688 + $0x3c] sm:$0xe]
        %v1743 = vld [vmem:[%s1688 + $0x48] sm:$0xe]
        %v1744 = vld [vmem:[%s1688 + $0x54] sm:$0xe]
        %v1745 = vld [vmem:[%s1688 + $0x60] sm:$0xe]
        %v1746 = vld [vmem:[%s1688 + $0x6c] sm:$0xe]
        %v1747 = vld [vmem:[%s1688 + $0x78] sm:$0xe]
        %v1748 = vld [vmem:[%s1688 + $0x84] sm:$0xe]
        %v1749 = vld [vmem:[%s1688 + $0x90] sm:$0xe]
        %v1750 = vld [vmem:[%s1688 + $0x9c] sm:$0xe]
        %v1751 = vld [vmem:[%s1688 + $0xa8] sm:$0xe]
        %v1752 = vld [vmem:[%s1688 + $0xb4] sm:$0xe]
        %v1785 = vunpack.c.l.b16 %v1689
        %v1786 = vunpack.c.l.b16 %v1690
        %v1787 = vunpack.c.l.b16 %v1691
        %v1788 = vunpack.c.l.b16 %v1692
        %v1789 = vunpack.c.l.b16 %v1693
        %v1790 = vunpack.c.l.b16 %v1694
        %v1791 = vunpack.c.l.b16 %v1695
        %v1792 = vunpack.c.l.b16 %v1696
        %v1793 = vunpack.c.l.b16 %v1697
        %v1794 = vunpack.c.l.b16 %v1698
        %v1795 = vunpack.c.l.b16 %v1699
        %v1796 = vunpack.c.l.b16 %v1700
        %v1797 = vunpack.c.l.b16 %v1701
        %v1798 = vunpack.c.l.b16 %v1702
        %v1799 = vunpack.c.l.b16 %v1703
        %v1800 = vunpack.c.l.b16 %v1704
        %v1801 = vunpack.c.l.b16 %v1705
        %v1802 = vunpack.c.l.b16 %v1706
        %v1803 = vunpack.c.l.b16 %v1707
        %v1804 = vunpack.c.l.b16 %v1708
        %v1805 = vunpack.c.l.b16 %v1709
        %v1806 = vunpack.c.l.b16 %v1710
        %v1807 = vunpack.c.l.b16 %v1711
        %v1808 = vunpack.c.l.b16 %v1712
        %v1809 = vunpack.c.l.b16 %v1713
        %v1810 = vunpack.c.l.b16 %v1714
        %v1811 = vunpack.c.l.b16 %v1715
        %v1812 = vunpack.c.l.b16 %v1716
        %v1813 = vunpack.c.l.b16 %v1717
        %v1814 = vunpack.c.l.b16 %v1718
        %v1815 = vunpack.c.l.b16 %v1719
        %v1816 = vunpack.c.l.b16 %v1720
        %v1817 = vpack.c.b16 %v1786, %v1785
        %v1818 = vpack.c.b16 %v1788, %v1787
        %v1819 = vpack.c.b16 %v1790, %v1789
        %v1820 = vpack.c.b16 %v1792, %v1791
        %v1821 = vpack.c.b16 %v1794, %v1793
        %v1822 = vpack.c.b16 %v1796, %v1795
        %v1823 = vpack.c.b16 %v1798, %v1797
        %v1824 = vpack.c.b16 %v1800, %v1799
        %v1825 = vpack.c.b16 %v1802, %v1801
        %v1826 = vpack.c.b16 %v1804, %v1803
        %v1827 = vpack.c.b16 %v1806, %v1805
        %v1828 = vpack.c.b16 %v1808, %v1807
        %v1829 = vpack.c.b16 %v1810, %v1809
        %v1830 = vpack.c.b16 %v1812, %v1811
        %v1831 = vpack.c.b16 %v1814, %v1813
        %v1832 = vpack.c.b16 %v1816, %v1815
        %v1865 = vunpack.c.l.b16 %v1721
        %v1866 = vunpack.c.l.b16 %v1722
        %v1867 = vunpack.c.l.b16 %v1723
        %v1868 = vunpack.c.l.b16 %v1724
        %v1869 = vunpack.c.l.b16 %v1725
        %v1870 = vunpack.c.l.b16 %v1726
        %v1871 = vunpack.c.l.b16 %v1727
        %v1872 = vunpack.c.l.b16 %v1728
        %v1873 = vunpack.c.l.b16 %v1729
        %v1874 = vunpack.c.l.b16 %v1730
        %v1875 = vunpack.c.l.b16 %v1731
        %v1876 = vunpack.c.l.b16 %v1732
        %v1877 = vunpack.c.l.b16 %v1733
        %v1878 = vunpack.c.l.b16 %v1734
        %v1879 = vunpack.c.l.b16 %v1735
        %v1880 = vunpack.c.l.b16 %v1736
        %v1881 = vpack.c.b16 %v1865, %v1865
        %v1882 = vpack.c.b16 %v1866, %v1866
        %v1883 = vpack.c.b16 %v1867, %v1867
        %v1884 = vpack.c.b16 %v1868, %v1868
        %v1885 = vpack.c.b16 %v1869, %v1869
        %v1886 = vpack.c.b16 %v1870, %v1870
        %v1887 = vpack.c.b16 %v1871, %v1871
        %v1888 = vpack.c.b16 %v1872, %v1872
        %v1889 = vpack.c.b16 %v1873, %v1873
        %v1890 = vpack.c.b16 %v1874, %v1874
        %v1891 = vpack.c.b16 %v1875, %v1875
        %v1892 = vpack.c.b16 %v1876, %v1876
        %v1893 = vpack.c.b16 %v1877, %v1877
        %v1894 = vpack.c.b16 %v1878, %v1878
        %v1895 = vpack.c.b16 %v1879, %v1879
        %v1896 = vpack.c.b16 %v1880, %v1880
        %v1898 = vshrl.u32 %v1817, 16
        %v1900 = vshll.u32 %v1817, 16
        %v1902 = vrot.slane %v1900, 1
        %v1903 = vor.u32 %v1898, %v1902
        %v1905 = vshll.u32 %v1881, 16
        %v1907 = vrot.slane %v1905, 1
        %v1908 = vsel %vm1318, %v1903, %v1907
        %v1910 = vshrl.u32 %v1818, 16
        %v1912 = vshll.u32 %v1818, 16
        %v1914 = vrot.slane %v1912, 1
        %v1915 = vor.u32 %v1910, %v1914
        %v1917 = vshll.u32 %v1882, 16
        %v1919 = vrot.slane %v1917, 1
        %v1920 = vsel %vm1318, %v1915, %v1919
        %v1922 = vshrl.u32 %v1819, 16
        %v1924 = vshll.u32 %v1819, 16
        %v1926 = vrot.slane %v1924, 1
        %v1927 = vor.u32 %v1922, %v1926
        %v1929 = vshll.u32 %v1883, 16
        %v1931 = vrot.slane %v1929, 1
        %v1932 = vsel %vm1318, %v1927, %v1931
        %v1934 = vshrl.u32 %v1820, 16
        %v1936 = vshll.u32 %v1820, 16
        %v1938 = vrot.slane %v1936, 1
        %v1939 = vor.u32 %v1934, %v1938
        %v1941 = vshll.u32 %v1884, 16
        %v1943 = vrot.slane %v1941, 1
        %v1944 = vsel %vm1318, %v1939, %v1943
        %v1946 = vshrl.u32 %v1821, 16
        %v1948 = vshll.u32 %v1821, 16
        %v1950 = vrot.slane %v1948, 1
        %v1951 = vor.u32 %v1946, %v1950
        %v1953 = vshll.u32 %v1885, 16
        %v1955 = vrot.slane %v1953, 1
        %v1956 = vsel %vm1318, %v1951, %v1955
        %v1958 = vshrl.u32 %v1822, 16
        %v1960 = vshll.u32 %v1822, 16
        %v1962 = vrot.slane %v1960, 1
        %v1963 = vor.u32 %v1958, %v1962
        %v1965 = vshll.u32 %v1886, 16
        %v1967 = vrot.slane %v1965, 1
        %v1968 = vsel %vm1318, %v1963, %v1967
        %v1970 = vshrl.u32 %v1823, 16
        %v1972 = vshll.u32 %v1823, 16
        %v1974 = vrot.slane %v1972, 1
        %v1975 = vor.u32 %v1970, %v1974
        %v1977 = vshll.u32 %v1887, 16
        %v1979 = vrot.slane %v1977, 1
        %v1980 = vsel %vm1318, %v1975, %v1979
        %v1982 = vshrl.u32 %v1824, 16
        %v1984 = vshll.u32 %v1824, 16
        %v1986 = vrot.slane %v1984, 1
        %v1987 = vor.u32 %v1982, %v1986
        %v1989 = vshll.u32 %v1888, 16
        %v1991 = vrot.slane %v1989, 1
        %v1992 = vsel %vm1318, %v1987, %v1991
        %v1994 = vshrl.u32 %v1825, 16
        %v1996 = vshll.u32 %v1825, 16
        %v1998 = vrot.slane %v1996, 1
        %v1999 = vor.u32 %v1994, %v1998
        %v2001 = vshll.u32 %v1889, 16
        %v2003 = vrot.slane %v2001, 1
        %v2004 = vsel %vm1318, %v1999, %v2003
        %v2006 = vshrl.u32 %v1826, 16
        %v2008 = vshll.u32 %v1826, 16
        %v2010 = vrot.slane %v2008, 1
        %v2011 = vor.u32 %v2006, %v2010
        %v2013 = vshll.u32 %v1890, 16
        %v2015 = vrot.slane %v2013, 1
        %v2016 = vsel %vm1318, %v2011, %v2015
        %v2018 = vshrl.u32 %v1827, 16
        %v2020 = vshll.u32 %v1827, 16
        %v2022 = vrot.slane %v2020, 1
        %v2023 = vor.u32 %v2018, %v2022
        %v2025 = vshll.u32 %v1891, 16
        %v2027 = vrot.slane %v2025, 1
        %v2028 = vsel %vm1318, %v2023, %v2027
        %v2030 = vshrl.u32 %v1828, 16
        %v2032 = vshll.u32 %v1828, 16
        %v2034 = vrot.slane %v2032, 1
        %v2035 = vor.u32 %v2030, %v2034
        %v2037 = vshll.u32 %v1892, 16
        %v2039 = vrot.slane %v2037, 1
        %v2040 = vsel %vm1318, %v2035, %v2039
        %v2042 = vshrl.u32 %v1829, 16
        %v2044 = vshll.u32 %v1829, 16
        %v2046 = vrot.slane %v2044, 1
        %v2047 = vor.u32 %v2042, %v2046
        %v2049 = vshll.u32 %v1893, 16
        %v2051 = vrot.slane %v2049, 1
        %v2052 = vsel %vm1318, %v2047, %v2051
        %v2054 = vshrl.u32 %v1830, 16
        %v2056 = vshll.u32 %v1830, 16
        %v2058 = vrot.slane %v2056, 1
        %v2059 = vor.u32 %v2054, %v2058
        %v2061 = vshll.u32 %v1894, 16
        %v2063 = vrot.slane %v2061, 1
        %v2064 = vsel %vm1318, %v2059, %v2063
        %v2066 = vshrl.u32 %v1831, 16
        %v2068 = vshll.u32 %v1831, 16
        %v2070 = vrot.slane %v2068, 1
        %v2071 = vor.u32 %v2066, %v2070
        %v2073 = vshll.u32 %v1895, 16
        %v2075 = vrot.slane %v2073, 1
        %v2076 = vsel %vm1318, %v2071, %v2075
        %v2078 = vshrl.u32 %v1832, 16
        %v2080 = vshll.u32 %v1832, 16
        %v2082 = vrot.slane %v2080, 1
        %v2083 = vor.u32 %v2078, %v2082
        %v2085 = vshll.u32 %v1896, 16
        %v2087 = vrot.slane %v2085, 1
        %v2088 = vsel %vm1318, %v2083, %v2087
        %v2121 = vunpack.c.l.b16 %v1737
        %v2122 = vunpack.c.l.b16 %v1738
        %v2123 = vunpack.c.l.b16 %v1739
        %v2124 = vunpack.c.l.b16 %v1740
        %v2125 = vunpack.c.l.b16 %v1741
        %v2126 = vunpack.c.l.b16 %v1742
        %v2127 = vunpack.c.l.b16 %v1743
        %v2128 = vunpack.c.l.b16 %v1744
        %v2129 = vunpack.c.l.b16 %v1745
        %v2130 = vunpack.c.l.b16 %v1746
        %v2131 = vunpack.c.l.b16 %v1747
        %v2132 = vunpack.c.l.b16 %v1748
        %v2133 = vunpack.c.l.b16 %v1749
        %v2134 = vunpack.c.l.b16 %v1750
        %v2135 = vunpack.c.l.b16 %v1751
        %v2136 = vunpack.c.l.b16 %v1752
        %v2137 = vpack.c.b16 %v1786, %v2121
        %v2138 = vpack.c.b16 %v1788, %v2122
        %v2139 = vpack.c.b16 %v1790, %v2123
        %v2140 = vpack.c.b16 %v1792, %v2124
        %v2141 = vpack.c.b16 %v1794, %v2125
        %v2142 = vpack.c.b16 %v1796, %v2126
        %v2143 = vpack.c.b16 %v1798, %v2127
        %v2144 = vpack.c.b16 %v1800, %v2128
        %v2145 = vpack.c.b16 %v1802, %v2129
        %v2146 = vpack.c.b16 %v1804, %v2130
        %v2147 = vpack.c.b16 %v1806, %v2131
        %v2148 = vpack.c.b16 %v1808, %v2132
        %v2149 = vpack.c.b16 %v1810, %v2133
        %v2150 = vpack.c.b16 %v1812, %v2134
        %v2151 = vpack.c.b16 %v1814, %v2135
        %v2152 = vpack.c.b16 %v1816, %v2136
        %v2153 = vrot.slane %v2137, 1
        %v2154 = vrot.slane %v1881, 1
        %v2155 = vsel %vm1575, %v2153, %v2154
        %v2156 = vrot.slane %v2138, 1
        %v2157 = vrot.slane %v1882, 1
        %v2158 = vsel %vm1575, %v2156, %v2157
        %v2159 = vrot.slane %v2139, 1
        %v2160 = vrot.slane %v1883, 1
        %v2161 = vsel %vm1575, %v2159, %v2160
        %v2162 = vrot.slane %v2140, 1
        %v2163 = vrot.slane %v1884, 1
        %v2164 = vsel %vm1575, %v2162, %v2163
        %v2165 = vrot.slane %v2141, 1
        %v2166 = vrot.slane %v1885, 1
        %v2167 = vsel %vm1575, %v2165, %v2166
        %v2168 = vrot.slane %v2142, 1
        %v2169 = vrot.slane %v1886, 1
        %v2170 = vsel %vm1575, %v2168, %v2169
        %v2171 = vrot.slane %v2143, 1
        %v2172 = vrot.slane %v1887, 1
        %v2173 = vsel %vm1575, %v2171, %v2172
        %v2174 = vrot.slane %v2144, 1
        %v2175 = vrot.slane %v1888, 1
        %v2176 = vsel %vm1575, %v2174, %v2175
        %v2177 = vrot.slane %v2145, 1
        %v2178 = vrot.slane %v1889, 1
        %v2179 = vsel %vm1575, %v2177, %v2178
        %v2180 = vrot.slane %v2146, 1
        %v2181 = vrot.slane %v1890, 1
        %v2182 = vsel %vm1575, %v2180, %v2181
        %v2183 = vrot.slane %v2147, 1
        %v2184 = vrot.slane %v1891, 1
        %v2185 = vsel %vm1575, %v2183, %v2184
        %v2186 = vrot.slane %v2148, 1
        %v2187 = vrot.slane %v1892, 1
        %v2188 = vsel %vm1575, %v2186, %v2187
        %v2189 = vrot.slane %v2149, 1
        %v2190 = vrot.slane %v1893, 1
        %v2191 = vsel %vm1575, %v2189, %v2190
        %v2192 = vrot.slane %v2150, 1
        %v2193 = vrot.slane %v1894, 1
        %v2194 = vsel %vm1575, %v2192, %v2193
        %v2195 = vrot.slane %v2151, 1
        %v2196 = vrot.slane %v1895, 1
        %v2197 = vsel %vm1575, %v2195, %v2196
        %v2198 = vrot.slane %v2152, 1
        %v2199 = vrot.slane %v1896, 1
        %v2200 = vsel %vm1575, %v2198, %v2199
        %s2217 = scalar_lea.vmem %s302, 192 [#allocation3]
        %v2218 = vld [vmem:[%s2217] sm:$0xf]
        %v2219 = vld [vmem:[%s2217 + $0x4] sm:$0xf]
        %v2220 = vld [vmem:[%s2217 + $0x8] sm:$0xf]
        %v2221 = vld [vmem:[%s2217 + $0xc] sm:$0xf]
        %v2222 = vld [vmem:[%s2217 + $0x10] sm:$0xf]
        %v2223 = vld [vmem:[%s2217 + $0x14] sm:$0xf]
        %v2224 = vld [vmem:[%s2217 + $0x18] sm:$0xf]
        %v2225 = vld [vmem:[%s2217 + $0x1c] sm:$0xf]
        %v2226 = vld [vmem:[%s2217 + $0x20] sm:$0xf]
        %v2227 = vld [vmem:[%s2217 + $0x24] sm:$0xf]
        %v2228 = vld [vmem:[%s2217 + $0x28] sm:$0xf]
        %v2229 = vld [vmem:[%s2217 + $0x2c] sm:$0xf]
        %v2230 = vld [vmem:[%s2217 + $0x30] sm:$0xf]
        %v2231 = vld [vmem:[%s2217 + $0x34] sm:$0xf]
        %v2232 = vld [vmem:[%s2217 + $0x38] sm:$0xf]
        %v2233 = vld [vmem:[%s2217 + $0x3c] sm:$0xf]
        %v2234 = vld [vmem:[%s2217 + $0x40] sm:$0xf]
        %v2235 = vld [vmem:[%s2217 + $0x44] sm:$0xf]
        %v2236 = vld [vmem:[%s2217 + $0x48] sm:$0xf]
        %v2237 = vld [vmem:[%s2217 + $0x4c] sm:$0xf]
        %v2238 = vld [vmem:[%s2217 + $0x50] sm:$0xf]
        %v2239 = vld [vmem:[%s2217 + $0x54] sm:$0xf]
        %v2240 = vld [vmem:[%s2217 + $0x58] sm:$0xf]
        %v2241 = vld [vmem:[%s2217 + $0x5c] sm:$0xf]
        %v2242 = vld [vmem:[%s2217 + $0x60] sm:$0xf]
        %v2243 = vld [vmem:[%s2217 + $0x64] sm:$0xf]
        %v2244 = vld [vmem:[%s2217 + $0x68] sm:$0xf]
        %v2245 = vld [vmem:[%s2217 + $0x6c] sm:$0xf]
        %v2246 = vld [vmem:[%s2217 + $0x70] sm:$0xf]
        %v2247 = vld [vmem:[%s2217 + $0x74] sm:$0xf]
        %v2248 = vld [vmem:[%s2217 + $0x78] sm:$0xf]
        %v2249 = vld [vmem:[%s2217 + $0x7c] sm:$0xf]
        %v2250 = vld [vmem:[%s2217 + $0x80] sm:$0xf]
        %v2251 = vld [vmem:[%s2217 + $0x84] sm:$0xf]
        %v2252 = vld [vmem:[%s2217 + $0x88] sm:$0xf]
        %v2253 = vld [vmem:[%s2217 + $0x8c] sm:$0xf]
        %v2254 = vld [vmem:[%s2217 + $0x90] sm:$0xf]
        %v2255 = vld [vmem:[%s2217 + $0x94] sm:$0xf]
        %v2256 = vld [vmem:[%s2217 + $0x98] sm:$0xf]
        %v2257 = vld [vmem:[%s2217 + $0x9c] sm:$0xf]
        %v2258 = vld [vmem:[%s2217 + $0xa0] sm:$0xf]
        %v2259 = vld [vmem:[%s2217 + $0xa4] sm:$0xf]
        %v2260 = vld [vmem:[%s2217 + $0xa8] sm:$0xf]
        %v2261 = vld [vmem:[%s2217 + $0xac] sm:$0xf]
        %v2262 = vld [vmem:[%s2217 + $0xb0] sm:$0xf]
        %v2263 = vld [vmem:[%s2217 + $0xb4] sm:$0xf]
        %v2264 = vld [vmem:[%s2217 + $0xb8] sm:$0xf]
        %v2265 = vld [vmem:[%s2217 + $0xbc] sm:$0xf]
        %v2314 = vunpack.c.l.b16 %v2218
        %v2315 = vunpack.c.l.b16 %v2219
        %v2316 = vunpack.c.l.b16 %v2220
        %v2317 = vunpack.c.l.b16 %v2221
        %v2318 = vunpack.c.l.b16 %v2222
        %v2319 = vunpack.c.l.b16 %v2223
        %v2320 = vunpack.c.l.b16 %v2224
        %v2321 = vunpack.c.l.b16 %v2225
        %v2322 = vunpack.c.l.b16 %v2226
        %v2323 = vunpack.c.l.b16 %v2227
        %v2324 = vunpack.c.l.b16 %v2228
        %v2325 = vunpack.c.l.b16 %v2229
        %v2326 = vunpack.c.l.b16 %v2230
        %v2327 = vunpack.c.l.b16 %v2231
        %v2328 = vunpack.c.l.b16 %v2232
        %v2329 = vunpack.c.l.b16 %v2233
        %v2330 = vunpack.c.l.b16 %v2234
        %v2331 = vunpack.c.l.b16 %v2235
        %v2332 = vunpack.c.l.b16 %v2236
        %v2333 = vunpack.c.l.b16 %v2237
        %v2334 = vunpack.c.l.b16 %v2238
        %v2335 = vunpack.c.l.b16 %v2239
        %v2336 = vunpack.c.l.b16 %v2240
        %v2337 = vunpack.c.l.b16 %v2241
        %v2338 = vunpack.c.l.b16 %v2242
        %v2339 = vunpack.c.l.b16 %v2243
        %v2340 = vunpack.c.l.b16 %v2244
        %v2341 = vunpack.c.l.b16 %v2245
        %v2342 = vunpack.c.l.b16 %v2246
        %v2343 = vunpack.c.l.b16 %v2247
        %v2344 = vunpack.c.l.b16 %v2248
        %v2345 = vunpack.c.l.b16 %v2249
        %v2346 = vunpack.c.l.b16 %v2250
        %v2347 = vunpack.c.l.b16 %v2251
        %v2348 = vunpack.c.l.b16 %v2252
        %v2349 = vunpack.c.l.b16 %v2253
        %v2350 = vunpack.c.l.b16 %v2254
        %v2351 = vunpack.c.l.b16 %v2255
        %v2352 = vunpack.c.l.b16 %v2256
        %v2353 = vunpack.c.l.b16 %v2257
        %v2354 = vunpack.c.l.b16 %v2258
        %v2355 = vunpack.c.l.b16 %v2259
        %v2356 = vunpack.c.l.b16 %v2260
        %v2357 = vunpack.c.l.b16 %v2261
        %v2358 = vunpack.c.l.b16 %v2262
        %v2359 = vunpack.c.l.b16 %v2263
        %v2360 = vunpack.c.l.b16 %v2264
        %v2361 = vunpack.c.l.b16 %v2265
        %v2362 = vpack.c.b16 %v2315, %v2314
        %v2363 = vpack.c.b16 %v2317, %v2316
        %v2364 = vpack.c.b16 %v2319, %v2318
        %v2365 = vpack.c.b16 %v2321, %v2320
        %v2366 = vpack.c.b16 %v2323, %v2322
        %v2367 = vpack.c.b16 %v2325, %v2324
        %v2368 = vpack.c.b16 %v2327, %v2326
        %v2369 = vpack.c.b16 %v2329, %v2328
        %v2370 = vpack.c.b16 %v2331, %v2330
        %v2371 = vpack.c.b16 %v2333, %v2332
        %v2372 = vpack.c.b16 %v2335, %v2334
        %v2373 = vpack.c.b16 %v2337, %v2336
        %v2374 = vpack.c.b16 %v2339, %v2338
        %v2375 = vpack.c.b16 %v2341, %v2340
        %v2376 = vpack.c.b16 %v2343, %v2342
        %v2377 = vpack.c.b16 %v2345, %v2344
        %v2378 = vpack.c.b16 %v2347, %v2346
        %v2379 = vpack.c.b16 %v2349, %v2348
        %v2380 = vpack.c.b16 %v2351, %v2350
        %v2381 = vpack.c.b16 %v2353, %v2352
        %v2382 = vpack.c.b16 %v2355, %v2354
        %v2383 = vpack.c.b16 %v2357, %v2356
        %v2384 = vpack.c.b16 %v2359, %v2358
        %v2385 = vpack.c.b16 %v2361, %v2360
        %2410 = vmatprep.subr.bf16.mxu0 0
        %2411 = vmatpush1.bf16.msra.mxu0 %v2362
        %2412 = vmatprep.subr.bf16.mxu0 0
        %2413 = vmatpush1.bf16.msra.mxu0 %v2363
        %2414 = vmatprep.subr.bf16.mxu0 0
        %2415 = vmatpush1.bf16.msra.mxu0 %v2364
        %2416 = vmatprep.subr.bf16.mxu0 0
        %2417 = vmatpush1.bf16.msra.mxu0 %v2365
        %2418 = vmatprep.subr.bf16.mxu0 0
        %2419 = vmatpush1.bf16.msra.mxu0 %v2366
        %2420 = vmatprep.subr.bf16.mxu0 0
        %2421 = vmatpush1.bf16.msra.mxu0 %v2367
        %2422 = vmatprep.subr.bf16.mxu0 0
        %2423 = vmatpush1.bf16.msra.mxu0 %v2368
        %2424 = vmatprep.subr.bf16.mxu0 0
        %2425 = vmatpush1.bf16.msra.mxu0 %v2369
        %2426 = vmatprep.subr.bf16.mxu0 0
        %2427 = vmatpush1.bf16.msra.mxu0 %v2370
        %2428 = vmatprep.subr.bf16.mxu0 0
        %2429 = vmatpush1.bf16.msra.mxu0 %v2371
        %2430 = vmatprep.subr.bf16.mxu0 0
        %2431 = vmatpush1.bf16.msra.mxu0 %v2372
        %2432 = vmatprep.subr.bf16.mxu0 0
        %2433 = vmatpush1.bf16.msra.mxu0 %v2373
        %2434 = vmatprep.subr.bf16.mxu0 0
        %2435 = vmatpush1.bf16.msra.mxu0 %v2374
        %2436 = vmatprep.subr.bf16.mxu0 0
        %2437 = vmatpush1.bf16.msra.mxu0 %v2375
        %2438 = vmatprep.subr.bf16.mxu0 0
        %2439 = vmatpush1.bf16.msra.mxu0 %v2376
        %2440 = vmatprep.subr.bf16.mxu0 0
        %2441 = vmatpush1.bf16.msra.mxu0 %v2377
        %2442 = vmatprep.mubr.bf16.mxu0 %v1908
        %2443 = vmatmul.mubr.bf16.gmra.mrb[0].mxu0 %v1817
        %v2444 = vpop.f32.mrb[0].mxu0
        %v2445 = vadd.f32 0.0, %v2444
        %v2446 = vpop.f32.mrb[0].mxu0
        %v2447 = vpop.f32.mrb[0].mxu0
        %v2448 = vadd.f32 0.0, %v2447
        %v2449 = vpop.f32.mrb[0].mxu0
        %2450 = vmatprep.mubr.bf16.mxu0 %v1920
        %2451 = vmatmul.mubr.bf16.gmra.mrb[0].mxu0 %v1818
        %v2452 = vpop.f32.mrb[0].mxu0
        %v2453 = vadd.f32 0.0, %v2452
        %v2454 = vpop.f32.mrb[0].mxu0
        %v2455 = vpop.f32.mrb[0].mxu0
        %v2456 = vadd.f32 0.0, %v2455
        %v2457 = vpop.f32.mrb[0].mxu0
        %2458 = vmatprep.mubr.bf16.mxu0 %v1932
        %2459 = vmatmul.mubr.bf16.gmra.mrb[0].mxu0 %v1819
        %v2460 = vpop.f32.mrb[0].mxu0
        %v2461 = vadd.f32 0.0, %v2460
        %v2462 = vpop.f32.mrb[0].mxu0
        %v2463 = vpop.f32.mrb[0].mxu0
        %v2464 = vadd.f32 0.0, %v2463
        %v2465 = vpop.f32.mrb[0].mxu0
        %2466 = vmatprep.mubr.bf16.mxu0 %v1944
        %2467 = vmatmul.mubr.bf16.gmra.mrb[0].mxu0 %v1820
        %v2468 = vpop.f32.mrb[0].mxu0
        %v2469 = vadd.f32 0.0, %v2468
        %v2470 = vpop.f32.mrb[0].mxu0
        %v2471 = vpop.f32.mrb[0].mxu0
        %v2472 = vadd.f32 0.0, %v2471
        %v2473 = vpop.f32.mrb[0].mxu0
        %2474 = vmatprep.mubr.bf16.mxu0 %v1956
        %2475 = vmatmul.mubr.bf16.gmra.mrb[0].mxu0 %v1821
        %v2476 = vpop.f32.mrb[0].mxu0
        %v2477 = vadd.f32 0.0, %v2476
        %v2478 = vpop.f32.mrb[0].mxu0
        %v2479 = vpop.f32.mrb[0].mxu0
        %v2480 = vadd.f32 0.0, %v2479
        %v2481 = vpop.f32.mrb[0].mxu0
        %2482 = vmatprep.mubr.bf16.mxu0 %v1968
        %2483 = vmatmul.mubr.bf16.gmra.mrb[0].mxu0 %v1822
        %v2484 = vpop.f32.mrb[0].mxu0
        %v2485 = vadd.f32 0.0, %v2484
        %v2486 = vpop.f32.mrb[0].mxu0
        %v2487 = vpop.f32.mrb[0].mxu0
        %v2488 = vadd.f32 0.0, %v2487
        %v2489 = vpop.f32.mrb[0].mxu0
        %2490 = vmatprep.mubr.bf16.mxu0 %v1980
        %2491 = vmatmul.mubr.bf16.gmra.mrb[0].mxu0 %v1823
        %v2492 = vpop.f32.mrb[0].mxu0
        %v2493 = vadd.f32 0.0, %v2492
        %v2494 = vpop.f32.mrb[0].mxu0
        %v2495 = vpop.f32.mrb[0].mxu0
        %v2496 = vadd.f32 0.0, %v2495
        %v2497 = vpop.f32.mrb[0].mxu0
        %2498 = vmatprep.mubr.bf16.mxu0 %v1992
        %2499 = vmatmul.mubr.bf16.gmra.mrb[0].mxu0 %v1824
        %v2500 = vpop.f32.mrb[0].mxu0
        %v2501 = vadd.f32 0.0, %v2500
        %v2502 = vpop.f32.mrb[0].mxu0
        %v2503 = vpop.f32.mrb[0].mxu0
        %v2504 = vadd.f32 0.0, %v2503
        %v2505 = vpop.f32.mrb[0].mxu0
        %2506 = vmatprep.mubr.bf16.mxu0 %v2004
        %2507 = vmatmul.mubr.bf16.gmra.mrb[0].mxu0 %v1825
        %v2508 = vpop.f32.mrb[0].mxu0
        %v2509 = vadd.f32 0.0, %v2508
        %v2510 = vpop.f32.mrb[0].mxu0
        %v2511 = vpop.f32.mrb[0].mxu0
        %v2512 = vadd.f32 0.0, %v2511
        %v2513 = vpop.f32.mrb[0].mxu0
        %2514 = vmatprep.mubr.bf16.mxu0 %v2016
        %2515 = vmatmul.mubr.bf16.gmra.mrb[0].mxu0 %v1826
        %v2516 = vpop.f32.mrb[0].mxu0
        %v2517 = vadd.f32 0.0, %v2516
        %v2518 = vpop.f32.mrb[0].mxu0
        %v2519 = vpop.f32.mrb[0].mxu0
        %v2520 = vadd.f32 0.0, %v2519
        %v2521 = vpop.f32.mrb[0].mxu0
        %2522 = vmatprep.mubr.bf16.mxu0 %v2028
        %2523 = vmatmul.mubr.bf16.gmra.mrb[0].mxu0 %v1827
        %v2524 = vpop.f32.mrb[0].mxu0
        %v2525 = vadd.f32 0.0, %v2524
        %v2526 = vpop.f32.mrb[0].mxu0
        %v2527 = vpop.f32.mrb[0].mxu0
        %v2528 = vadd.f32 0.0, %v2527
        %v2529 = vpop.f32.mrb[0].mxu0
        %2530 = vmatprep.mubr.bf16.mxu0 %v2040
        %2531 = vmatmul.mubr.bf16.gmra.mrb[0].mxu0 %v1828
        %v2532 = vpop.f32.mrb[0].mxu0
        %v2533 = vadd.f32 0.0, %v2532
        %v2534 = vpop.f32.mrb[0].mxu0
        %v2535 = vpop.f32.mrb[0].mxu0
        %v2536 = vadd.f32 0.0, %v2535
        %v2537 = vpop.f32.mrb[0].mxu0
        %2538 = vmatprep.mubr.bf16.mxu0 %v2052
        %2539 = vmatmul.mubr.bf16.gmra.mrb[0].mxu0 %v1829
        %v2540 = vpop.f32.mrb[0].mxu0
        %v2541 = vadd.f32 0.0, %v2540
        %v2542 = vpop.f32.mrb[0].mxu0
        %v2543 = vpop.f32.mrb[0].mxu0
        %v2544 = vadd.f32 0.0, %v2543
        %v2545 = vpop.f32.mrb[0].mxu0
        %2546 = vmatprep.mubr.bf16.mxu0 %v2064
        %2547 = vmatmul.mubr.bf16.gmra.mrb[0].mxu0 %v1830
        %v2548 = vpop.f32.mrb[0].mxu0
        %v2549 = vadd.f32 0.0, %v2548
        %v2550 = vpop.f32.mrb[0].mxu0
        %v2551 = vpop.f32.mrb[0].mxu0
        %v2552 = vadd.f32 0.0, %v2551
        %v2553 = vpop.f32.mrb[0].mxu0
        %2554 = vmatprep.mubr.bf16.mxu0 %v2076
        %2555 = vmatmul.mubr.bf16.gmra.mrb[0].mxu0 %v1831
        %v2556 = vpop.f32.mrb[0].mxu0
        %v2557 = vadd.f32 0.0, %v2556
        %v2558 = vpop.f32.mrb[0].mxu0
        %v2559 = vpop.f32.mrb[0].mxu0
        %v2560 = vadd.f32 0.0, %v2559
        %v2561 = vpop.f32.mrb[0].mxu0
        %2562 = vmatprep.mubr.bf16.mxu0 %v2088
        %2563 = vmatmul.mubr.bf16.gmra.mrb[0].mxu0 %v1832
        %v2564 = vpop.f32.mrb[0].mxu0
        %v2565 = vadd.f32 0.0, %v2564
        %v2566 = vpop.f32.mrb[0].mxu0
        %v2567 = vpop.f32.mrb[0].mxu0
        %v2568 = vadd.f32 0.0, %v2567
        %v2569 = vpop.f32.mrb[0].mxu0
        %2570 = vdwg.mxu0
        %2571 = vmatprep.subr.bf16.mxu0 0
        %2572 = vmatpush1.bf16.msra.mxu0 %v2378
        %2573 = vmatprep.subr.bf16.mxu0 0
        %2574 = vmatpush1.bf16.msra.mxu0 %v2379
        %2575 = vmatprep.subr.bf16.mxu0 0
        %2576 = vmatpush1.bf16.msra.mxu0 %v2380
        %2577 = vmatprep.subr.bf16.mxu0 0
        %2578 = vmatpush1.bf16.msra.mxu0 %v2381
        %2579 = vmatprep.subr.bf16.mxu0 0
        %2580 = vmatpush1.bf16.msra.mxu0 %v2382
        %2581 = vmatprep.subr.bf16.mxu0 0
        %2582 = vmatpush1.bf16.msra.mxu0 %v2383
        %2583 = vmatprep.subr.bf16.mxu0 0
        %2584 = vmatpush1.bf16.msra.mxu0 %v2384
        %2585 = vmatprep.subr.bf16.mxu0 0
        %2586 = vmatpush1.bf16.msra.mxu0 %v2385
        %2587 = vmatprep.subr.bf16.mxu0 0
        %2588 = vmatpush1.bf16.msra.mxu0 0
        %2589 = vmatprep.subr.bf16.mxu0 0
        %2590 = vmatpush1.bf16.msra.mxu0 0
        %2591 = vmatprep.subr.bf16.mxu0 0
        %2592 = vmatpush1.bf16.msra.mxu0 0
        %2593 = vmatprep.subr.bf16.mxu0 0
        %2594 = vmatpush1.bf16.msra.mxu0 0
        %2595 = vmatprep.subr.bf16.mxu0 0
        %2596 = vmatpush1.bf16.msra.mxu0 0
        %2597 = vmatprep.subr.bf16.mxu0 0
        %2598 = vmatpush1.bf16.msra.mxu0 0
        %2599 = vmatprep.subr.bf16.mxu0 0
        %2600 = vmatpush1.bf16.msra.mxu0 0
        %2601 = vmatprep.subr.bf16.mxu0 0
        %2602 = vmatpush1.bf16.msra.mxu0 0
        %2603 = vmatprep.mubr.bf16.mxu0 0
        %2604 = vmatmul.mubr.bf16.gmra.mrb[0].mxu0 %v2155
        %v2605 = vpop.f32.mrb[0].mxu0
        %v2606 = vadd.f32 %v2445, %v2605
        %v2607 = vpop.f32.mrb[0].mxu0
        %v2608 = vpop.f32.mrb[0].mxu0
        %v2609 = vadd.f32 %v2448, %v2608
        %v2610 = vpop.f32.mrb[0].mxu0
        %2611 = vmatprep.mubr.bf16.mxu0 0
        %2612 = vmatmul.mubr.bf16.gmra.mrb[0].mxu0 %v2158
        %v2613 = vpop.f32.mrb[0].mxu0
        %v2614 = vadd.f32 %v2453, %v2613
        %v2615 = vpop.f32.mrb[0].mxu0
        %v2616 = vpop.f32.mrb[0].mxu0
        %v2617 = vadd.f32 %v2456, %v2616
        %v2618 = vpop.f32.mrb[0].mxu0
        %2619 = vmatprep.mubr.bf16.mxu0 0
        %2620 = vmatmul.mubr.bf16.gmra.mrb[0].mxu0 %v2161
        %v2621 = vpop.f32.mrb[0].mxu0
        %v2622 = vadd.f32 %v2461, %v2621
        %v2623 = vpop.f32.mrb[0].mxu0
        %v2624 = vpop.f32.mrb[0].mxu0
        %v2625 = vadd.f32 %v2464, %v2624
        %v2626 = vpop.f32.mrb[0].mxu0
        %2627 = vmatprep.mubr.bf16.mxu0 0
        %2628 = vmatmul.mubr.bf16.gmra.mrb[0].mxu0 %v2164
        %v2629 = vpop.f32.mrb[0].mxu0
        %v2630 = vadd.f32 %v2469, %v2629
        %v2631 = vpop.f32.mrb[0].mxu0
        %v2632 = vpop.f32.mrb[0].mxu0
        %v2633 = vadd.f32 %v2472, %v2632
        %v2634 = vpop.f32.mrb[0].mxu0
        %2635 = vmatprep.mubr.bf16.mxu0 0
        %2636 = vmatmul.mubr.bf16.gmra.mrb[0].mxu0 %v2167
        %v2637 = vpop.f32.mrb[0].mxu0
        %v2638 = vadd.f32 %v2477, %v2637
        %v2639 = vpop.f32.mrb[0].mxu0
        %v2640 = vpop.f32.mrb[0].mxu0
        %v2641 = vadd.f32 %v2480, %v2640
        %v2642 = vpop.f32.mrb[0].mxu0
        %2643 = vmatprep.mubr.bf16.mxu0 0
        %2644 = vmatmul.mubr.bf16.gmra.mrb[0].mxu0 %v2170
        %v2645 = vpop.f32.mrb[0].mxu0
        %v2646 = vadd.f32 %v2485, %v2645
        %v2647 = vpop.f32.mrb[0].mxu0
        %v2648 = vpop.f32.mrb[0].mxu0
        %v2649 = vadd.f32 %v2488, %v2648
        %v2650 = vpop.f32.mrb[0].mxu0
        %2651 = vmatprep.mubr.bf16.mxu0 0
        %2652 = vmatmul.mubr.bf16.gmra.mrb[0].mxu0 %v2173
        %v2653 = vpop.f32.mrb[0].mxu0
        %v2654 = vadd.f32 %v2493, %v2653
        %v2655 = vpop.f32.mrb[0].mxu0
        %v2656 = vpop.f32.mrb[0].mxu0
        %v2657 = vadd.f32 %v2496, %v2656
        %v2658 = vpop.f32.mrb[0].mxu0
        %2659 = vmatprep.mubr.bf16.mxu0 0
        %2660 = vmatmul.mubr.bf16.gmra.mrb[0].mxu0 %v2176
        %v2661 = vpop.f32.mrb[0].mxu0
        %v2662 = vadd.f32 %v2501, %v2661
        %v2663 = vpop.f32.mrb[0].mxu0
        %v2664 = vpop.f32.mrb[0].mxu0
        %v2665 = vadd.f32 %v2504, %v2664
        %v2666 = vpop.f32.mrb[0].mxu0
        %2667 = vmatprep.mubr.bf16.mxu0 0
        %2668 = vmatmul.mubr.bf16.gmra.mrb[0].mxu0 %v2179
        %v2669 = vpop.f32.mrb[0].mxu0
        %v2670 = vadd.f32 %v2509, %v2669
        %v2671 = vpop.f32.mrb[0].mxu0
        %v2672 = vpop.f32.mrb[0].mxu0
        %v2673 = vadd.f32 %v2512, %v2672
        %v2674 = vpop.f32.mrb[0].mxu0
        %2675 = vmatprep.mubr.bf16.mxu0 0
        %2676 = vmatmul.mubr.bf16.gmra.mrb[0].mxu0 %v2182
        %v2677 = vpop.f32.mrb[0].mxu0
        %v2678 = vadd.f32 %v2517, %v2677
        %v2679 = vpop.f32.mrb[0].mxu0
        %v2680 = vpop.f32.mrb[0].mxu0
        %v2681 = vadd.f32 %v2520, %v2680
        %v2682 = vpop.f32.mrb[0].mxu0
        %2683 = vmatprep.mubr.bf16.mxu0 0
        %2684 = vmatmul.mubr.bf16.gmra.mrb[0].mxu0 %v2185
        %v2685 = vpop.f32.mrb[0].mxu0
        %v2686 = vadd.f32 %v2525, %v2685
        %v2687 = vpop.f32.mrb[0].mxu0
        %v2688 = vpop.f32.mrb[0].mxu0
        %v2689 = vadd.f32 %v2528, %v2688
        %v2690 = vpop.f32.mrb[0].mxu0
        %2691 = vmatprep.mubr.bf16.mxu0 0
        %2692 = vmatmul.mubr.bf16.gmra.mrb[0].mxu0 %v2188
        %v2693 = vpop.f32.mrb[0].mxu0
        %v2694 = vadd.f32 %v2533, %v2693
        %v2695 = vpop.f32.mrb[0].mxu0
        %v2696 = vpop.f32.mrb[0].mxu0
        %v2697 = vadd.f32 %v2536, %v2696
        %v2698 = vpop.f32.mrb[0].mxu0
        %2699 = vmatprep.mubr.bf16.mxu0 0
        %2700 = vmatmul.mubr.bf16.gmra.mrb[0].mxu0 %v2191
        %v2701 = vpop.f32.mrb[0].mxu0
        %v2702 = vadd.f32 %v2541, %v2701
        %v2703 = vpop.f32.mrb[0].mxu0
        %v2704 = vpop.f32.mrb[0].mxu0
        %v2705 = vadd.f32 %v2544, %v2704
        %v2706 = vpop.f32.mrb[0].mxu0
        %2707 = vmatprep.mubr.bf16.mxu0 0
        %2708 = vmatmul.mubr.bf16.gmra.mrb[0].mxu0 %v2194
        %v2709 = vpop.f32.mrb[0].mxu0
        %v2710 = vadd.f32 %v2549, %v2709
        %v2711 = vpop.f32.mrb[0].mxu0
        %v2712 = vpop.f32.mrb[0].mxu0
        %v2713 = vadd.f32 %v2552, %v2712
        %v2714 = vpop.f32.mrb[0].mxu0
        %2715 = vmatprep.mubr.bf16.mxu0 0
        %2716 = vmatmul.mubr.bf16.gmra.mrb[0].mxu0 %v2197
        %v2717 = vpop.f32.mrb[0].mxu0
        %v2718 = vadd.f32 %v2557, %v2717
        %v2719 = vpop.f32.mrb[0].mxu0
        %v2720 = vpop.f32.mrb[0].mxu0
        %v2721 = vadd.f32 %v2560, %v2720
        %v2722 = vpop.f32.mrb[0].mxu0
        %2723 = vmatprep.mubr.bf16.mxu0 0
        %2724 = vmatmul.mubr.bf16.gmra.mrb[0].mxu0 %v2200
        %v2725 = vpop.f32.mrb[0].mxu0
        %v2726 = vadd.f32 %v2565, %v2725
        %v2727 = vpop.f32.mrb[0].mxu0
        %v2728 = vpop.f32.mrb[0].mxu0
        %v2729 = vadd.f32 %v2568, %v2728
        %v2730 = vpop.f32.mrb[0].mxu0
        %2731 = vdwg.mxu0
        %v2780 = vunpack.c.l.b16 %v1640
        %v2781 = vunpack.c.l.b16 %v1641
        %v2782 = vunpack.c.l.b16 %v1642
        %v2783 = vunpack.c.l.b16 %v1643
        %v2784 = vunpack.c.l.b16 %v1644
        %v2785 = vunpack.c.l.b16 %v1645
        %v2786 = vunpack.c.l.b16 %v1646
        %v2787 = vunpack.c.l.b16 %v1647
        %v2788 = vunpack.c.l.b16 %v1648
        %v2789 = vunpack.c.l.b16 %v1649
        %v2790 = vunpack.c.l.b16 %v1650
        %v2791 = vunpack.c.l.b16 %v1651
        %v2792 = vunpack.c.l.b16 %v1652
        %v2793 = vunpack.c.l.b16 %v1653
        %v2794 = vunpack.c.l.b16 %v1654
        %v2795 = vunpack.c.l.b16 %v1655
        %v2796 = vunpack.c.l.b16 %v1656
        %v2797 = vunpack.c.l.b16 %v1657
        %v2798 = vunpack.c.l.b16 %v1658
        %v2799 = vunpack.c.l.b16 %v1659
        %v2800 = vunpack.c.l.b16 %v1660
        %v2801 = vunpack.c.l.b16 %v1661
        %v2802 = vunpack.c.l.b16 %v1662
        %v2803 = vunpack.c.l.b16 %v1663
        %v2804 = vunpack.c.l.b16 %v1664
        %v2805 = vunpack.c.l.b16 %v1665
        %v2806 = vunpack.c.l.b16 %v1666
        %v2807 = vunpack.c.l.b16 %v1667
        %v2808 = vunpack.c.l.b16 %v1668
        %v2809 = vunpack.c.l.b16 %v1669
        %v2810 = vunpack.c.l.b16 %v1670
        %v2811 = vunpack.c.l.b16 %v1671
        %v2812 = vunpack.c.l.b16 %v1672
        %v2813 = vunpack.c.l.b16 %v1673
        %v2814 = vunpack.c.l.b16 %v1674
        %v2815 = vunpack.c.l.b16 %v1675
        %v2816 = vunpack.c.l.b16 %v1676
        %v2817 = vunpack.c.l.b16 %v1677
        %v2818 = vunpack.c.l.b16 %v1678
        %v2819 = vunpack.c.l.b16 %v1679
        %v2820 = vunpack.c.l.b16 %v1680
        %v2821 = vunpack.c.l.b16 %v1681
        %v2822 = vunpack.c.l.b16 %v1682
        %v2823 = vunpack.c.l.b16 %v1683
        %v2824 = vunpack.c.l.b16 %v1684
        %v2825 = vunpack.c.l.b16 %v1685
        %v2826 = vunpack.c.l.b16 %v1686
        %v2827 = vunpack.c.l.b16 %v1687
        %v2828 = vpack.c.b16 %v2781, %v2780
        %v2829 = vpack.c.b16 %v2783, %v2782
        %v2830 = vpack.c.b16 %v2785, %v2784
        %v2831 = vpack.c.b16 %v2787, %v2786
        %v2832 = vpack.c.b16 %v2789, %v2788
        %v2833 = vpack.c.b16 %v2791, %v2790
        %v2834 = vpack.c.b16 %v2793, %v2792
        %v2835 = vpack.c.b16 %v2795, %v2794
        %v2836 = vpack.c.b16 %v2797, %v2796
        %v2837 = vpack.c.b16 %v2799, %v2798
        %v2838 = vpack.c.b16 %v2801, %v2800
        %v2839 = vpack.c.b16 %v2803, %v2802
        %v2840 = vpack.c.b16 %v2805, %v2804
        %v2841 = vpack.c.b16 %v2807, %v2806
        %v2842 = vpack.c.b16 %v2809, %v2808
        %v2843 = vpack.c.b16 %v2811, %v2810
        %v2844 = vpack.c.b16 %v2813, %v2812
        %v2845 = vpack.c.b16 %v2815, %v2814
        %v2846 = vpack.c.b16 %v2817, %v2816
        %v2847 = vpack.c.b16 %v2819, %v2818
        %v2848 = vpack.c.b16 %v2821, %v2820
        %v2849 = vpack.c.b16 %v2823, %v2822
        %v2850 = vpack.c.b16 %v2825, %v2824
        %v2851 = vpack.c.b16 %v2827, %v2826
        %2876 = vmatprep.subr.bf16.mxu0 0
        %2877 = vmatpush1.bf16.msra.mxu0 %v2828
        %2878 = vmatprep.subr.bf16.mxu0 0
        %2879 = vmatpush1.bf16.msra.mxu0 %v2829
        %2880 = vmatprep.subr.bf16.mxu0 0
        %2881 = vmatpush1.bf16.msra.mxu0 %v2830
        %2882 = vmatprep.subr.bf16.mxu0 0
        %2883 = vmatpush1.bf16.msra.mxu0 %v2831
        %2884 = vmatprep.subr.bf16.mxu0 0
        %2885 = vmatpush1.bf16.msra.mxu0 %v2832
        %2886 = vmatprep.subr.bf16.mxu0 0
        %2887 = vmatpush1.bf16.msra.mxu0 %v2833
        %2888 = vmatprep.subr.bf16.mxu0 0
        %2889 = vmatpush1.bf16.msra.mxu0 %v2834
        %2890 = vmatprep.subr.bf16.mxu0 0
        %2891 = vmatpush1.bf16.msra.mxu0 %v2835
        %2892 = vmatprep.subr.bf16.mxu0 0
        %2893 = vmatpush1.bf16.msra.mxu0 %v2836
        %2894 = vmatprep.subr.bf16.mxu0 0
        %2895 = vmatpush1.bf16.msra.mxu0 %v2837
        %2896 = vmatprep.subr.bf16.mxu0 0
        %2897 = vmatpush1.bf16.msra.mxu0 %v2838
        %2898 = vmatprep.subr.bf16.mxu0 0
        %2899 = vmatpush1.bf16.msra.mxu0 %v2839
        %2900 = vmatprep.subr.bf16.mxu0 0
        %2901 = vmatpush1.bf16.msra.mxu0 %v2840
        %2902 = vmatprep.subr.bf16.mxu0 0
        %2903 = vmatpush1.bf16.msra.mxu0 %v2841
        %2904 = vmatprep.subr.bf16.mxu0 0
        %2905 = vmatpush1.bf16.msra.mxu0 %v2842
        %2906 = vmatprep.subr.bf16.mxu0 0
        %2907 = vmatpush1.bf16.msra.mxu0 %v2843
        %2908 = vmatprep.mubr.bf16.mxu0 %v1330
        %2909 = vmatmul.mubr.bf16.gmra.mrb[0].mxu0 %v1238
        %v2910 = vpop.f32.mrb[0].mxu0
        %v2911 = vadd.f32 %v2606, %v2910
        %v2912 = vpop.f32.mrb[0].mxu0
        %v2913 = vpop.f32.mrb[0].mxu0
        %v2914 = vadd.f32 %v2609, %v2913
        %v2915 = vpop.f32.mrb[0].mxu0
        %2916 = vmatprep.mubr.bf16.mxu0 %v1342
        %2917 = vmatmul.mubr.bf16.gmra.mrb[0].mxu0 %v1239
        %v2918 = vpop.f32.mrb[0].mxu0
        %v2919 = vadd.f32 %v2614, %v2918
        %v2920 = vpop.f32.mrb[0].mxu0
        %v2921 = vpop.f32.mrb[0].mxu0
        %v2922 = vadd.f32 %v2617, %v2921
        %v2923 = vpop.f32.mrb[0].mxu0
        %2924 = vmatprep.mubr.bf16.mxu0 %v1354
        %2925 = vmatmul.mubr.bf16.gmra.mrb[0].mxu0 %v1240
        %v2926 = vpop.f32.mrb[0].mxu0
        %v2927 = vadd.f32 %v2622, %v2926
        %v2928 = vpop.f32.mrb[0].mxu0
        %v2929 = vpop.f32.mrb[0].mxu0
        %v2930 = vadd.f32 %v2625, %v2929
        %v2931 = vpop.f32.mrb[0].mxu0
        %2932 = vmatprep.mubr.bf16.mxu0 %v1366
        %2933 = vmatmul.mubr.bf16.gmra.mrb[0].mxu0 %v1241
        %v2934 = vpop.f32.mrb[0].mxu0
        %v2935 = vadd.f32 %v2630, %v2934
        %v2936 = vpop.f32.mrb[0].mxu0
        %v2937 = vpop.f32.mrb[0].mxu0
        %v2938 = vadd.f32 %v2633, %v2937
        %v2939 = vpop.f32.mrb[0].mxu0
        %2940 = vmatprep.mubr.bf16.mxu0 %v1378
        %2941 = vmatmul.mubr.bf16.gmra.mrb[0].mxu0 %v1242
        %v2942 = vpop.f32.mrb[0].mxu0
        %v2943 = vadd.f32 %v2638, %v2942
        %v2944 = vpop.f32.mrb[0].mxu0
        %v2945 = vpop.f32.mrb[0].mxu0
        %v2946 = vadd.f32 %v2641, %v2945
        %v2947 = vpop.f32.mrb[0].mxu0
        %2948 = vmatprep.mubr.bf16.mxu0 %v1390
        %2949 = vmatmul.mubr.bf16.gmra.mrb[0].mxu0 %v1243
        %v2950 = vpop.f32.mrb[0].mxu0
        %v2951 = vadd.f32 %v2646, %v2950
        %v2952 = vpop.f32.mrb[0].mxu0
        %v2953 = vpop.f32.mrb[0].mxu0
        %v2954 = vadd.f32 %v2649, %v2953
        %v2955 = vpop.f32.mrb[0].mxu0
        %2956 = vmatprep.mubr.bf16.mxu0 %v1402
        %2957 = vmatmul.mubr.bf16.gmra.mrb[0].mxu0 %v1244
        %v2958 = vpop.f32.mrb[0].mxu0
        %v2959 = vadd.f32 %v2654, %v2958
        %v2960 = vpop.f32.mrb[0].mxu0
        %v2961 = vpop.f32.mrb[0].mxu0
        %v2962 = vadd.f32 %v2657, %v2961
        %v2963 = vpop.f32.mrb[0].mxu0
        %2964 = vmatprep.mubr.bf16.mxu0 %v1414
        %2965 = vmatmul.mubr.bf16.gmra.mrb[0].mxu0 %v1245
        %v2966 = vpop.f32.mrb[0].mxu0
        %v2967 = vadd.f32 %v2662, %v2966
        %v2968 = vpop.f32.mrb[0].mxu0
        %v2969 = vpop.f32.mrb[0].mxu0
        %v2970 = vadd.f32 %v2665, %v2969
        %v2971 = vpop.f32.mrb[0].mxu0
        %2972 = vmatprep.mubr.bf16.mxu0 %v1426
        %2973 = vmatmul.mubr.bf16.gmra.mrb[0].mxu0 %v1246
        %v2974 = vpop.f32.mrb[0].mxu0
        %v2975 = vadd.f32 %v2670, %v2974
        %v2976 = vpop.f32.mrb[0].mxu0
        %v2977 = vpop.f32.mrb[0].mxu0
        %v2978 = vadd.f32 %v2673, %v2977
        %v2979 = vpop.f32.mrb[0].mxu0
        %2980 = vmatprep.mubr.bf16.mxu0 %v1438
        %2981 = vmatmul.mubr.bf16.gmra.mrb[0].mxu0 %v1247
        %v2982 = vpop.f32.mrb[0].mxu0
        %v2983 = vadd.f32 %v2678, %v2982
        %v2984 = vpop.f32.mrb[0].mxu0
        %v2985 = vpop.f32.mrb[0].mxu0
        %v2986 = vadd.f32 %v2681, %v2985
        %v2987 = vpop.f32.mrb[0].mxu0
        %2988 = vmatprep.mubr.bf16.mxu0 %v1450
        %2989 = vmatmul.mubr.bf16.gmra.mrb[0].mxu0 %v1248
        %v2990 = vpop.f32.mrb[0].mxu0
        %v2991 = vadd.f32 %v2686, %v2990
        %v2992 = vpop.f32.mrb[0].mxu0
        %v2993 = vpop.f32.mrb[0].mxu0
        %v2994 = vadd.f32 %v2689, %v2993
        %v2995 = vpop.f32.mrb[0].mxu0
        %2996 = vmatprep.mubr.bf16.mxu0 %v1462
        %2997 = vmatmul.mubr.bf16.gmra.mrb[0].mxu0 %v1249
        %v2998 = vpop.f32.mrb[0].mxu0
        %v2999 = vadd.f32 %v2694, %v2998
        %v3000 = vpop.f32.mrb[0].mxu0
        %v3001 = vpop.f32.mrb[0].mxu0
        %v3002 = vadd.f32 %v2697, %v3001
        %v3003 = vpop.f32.mrb[0].mxu0
        %3004 = vmatprep.mubr.bf16.mxu0 %v1474
        %3005 = vmatmul.mubr.bf16.gmra.mrb[0].mxu0 %v1250
        %v3006 = vpop.f32.mrb[0].mxu0
        %v3007 = vadd.f32 %v2702, %v3006
        %v3008 = vpop.f32.mrb[0].mxu0
        %v3009 = vpop.f32.mrb[0].mxu0
        %v3010 = vadd.f32 %v2705, %v3009
        %v3011 = vpop.f32.mrb[0].mxu0
        %3012 = vmatprep.mubr.bf16.mxu0 %v1486
        %3013 = vmatmul.mubr.bf16.gmra.mrb[0].mxu0 %v1251
        %v3014 = vpop.f32.mrb[0].mxu0
        %v3015 = vadd.f32 %v2710, %v3014
        %v3016 = vpop.f32.mrb[0].mxu0
        %v3017 = vpop.f32.mrb[0].mxu0
        %v3018 = vadd.f32 %v2713, %v3017
        %v3019 = vpop.f32.mrb[0].mxu0
        %3020 = vmatprep.mubr.bf16.mxu0 %v1498
        %3021 = vmatmul.mubr.bf16.gmra.mrb[0].mxu0 %v1252
        %v3022 = vpop.f32.mrb[0].mxu0
        %v3023 = vadd.f32 %v2718, %v3022
        %v3024 = vpop.f32.mrb[0].mxu0
        %v3025 = vpop.f32.mrb[0].mxu0
        %v3026 = vadd.f32 %v2721, %v3025
        %v3027 = vpop.f32.mrb[0].mxu0
        %3028 = vmatprep.mubr.bf16.mxu0 %v1510
        %3029 = vmatmul.mubr.bf16.gmra.mrb[0].mxu0 %v1253
        %v3030 = vpop.f32.mrb[0].mxu0
        %v3031 = vadd.f32 %v2726, %v3030
        %v3032 = vpop.f32.mrb[0].mxu0
        %v3033 = vpop.f32.mrb[0].mxu0
        %v3034 = vadd.f32 %v2729, %v3033
        %v3035 = vpop.f32.mrb[0].mxu0
        %3036 = vdwg.mxu0
        %3037 = vmatprep.subr.bf16.mxu0 0
        %3038 = vmatpush1.bf16.msra.mxu0 %v2844
        %3039 = vmatprep.subr.bf16.mxu0 0
        %3040 = vmatpush1.bf16.msra.mxu0 %v2845
        %3041 = vmatprep.subr.bf16.mxu0 0
        %3042 = vmatpush1.bf16.msra.mxu0 %v2846
        %3043 = vmatprep.subr.bf16.mxu0 0
        %3044 = vmatpush1.bf16.msra.mxu0 %v2847
        %3045 = vmatprep.subr.bf16.mxu0 0
        %3046 = vmatpush1.bf16.msra.mxu0 %v2848
        %3047 = vmatprep.subr.bf16.mxu0 0
        %3048 = vmatpush1.bf16.msra.mxu0 %v2849
        %3049 = vmatprep.subr.bf16.mxu0 0
        %3050 = vmatpush1.bf16.msra.mxu0 %v2850
        %3051 = vmatprep.subr.bf16.mxu0 0
        %3052 = vmatpush1.bf16.msra.mxu0 %v2851
        %3053 = vmatprep.subr.bf16.mxu0 0
        %3054 = vmatpush1.bf16.msra.mxu0 0
        %3055 = vmatprep.subr.bf16.mxu0 0
        %3056 = vmatpush1.bf16.msra.mxu0 0
        %3057 = vmatprep.subr.bf16.mxu0 0
        %3058 = vmatpush1.bf16.msra.mxu0 0
        %3059 = vmatprep.subr.bf16.mxu0 0
        %3060 = vmatpush1.bf16.msra.mxu0 0
        %3061 = vmatprep.subr.bf16.mxu0 0
        %3062 = vmatpush1.bf16.msra.mxu0 0
        %3063 = vmatprep.subr.bf16.mxu0 0
        %3064 = vmatpush1.bf16.msra.mxu0 0
        %3065 = vmatprep.subr.bf16.mxu0 0
        %3066 = vmatpush1.bf16.msra.mxu0 0
        %3067 = vmatprep.subr.bf16.mxu0 0
        %3068 = vmatpush1.bf16.msra.mxu0 0
        %3069 = vmatprep.mubr.bf16.mxu0 0
        %3070 = vmatmul.mubr.bf16.gmra.mrb[0].mxu0 %v1578
        %v3071 = vpop.f32.mrb[0].mxu0
        %v3072 = vadd.f32 %v2911, %v3071
        %v3073 = vpop.f32.mrb[0].mxu0
        %v3074 = vpop.f32.mrb[0].mxu0
        %v3075 = vadd.f32 %v2914, %v3074
        %v3076 = vpop.f32.mrb[0].mxu0
        %3077 = vmatprep.mubr.bf16.mxu0 0
        %3078 = vmatmul.mubr.bf16.gmra.mrb[0].mxu0 %v1581
        %v3079 = vpop.f32.mrb[0].mxu0
        %v3080 = vadd.f32 %v2919, %v3079
        %v3081 = vpop.f32.mrb[0].mxu0
        %v3082 = vpop.f32.mrb[0].mxu0
        %v3083 = vadd.f32 %v2922, %v3082
        %v3084 = vpop.f32.mrb[0].mxu0
        %3085 = vmatprep.mubr.bf16.mxu0 0
        %3086 = vmatmul.mubr.bf16.gmra.mrb[0].mxu0 %v1584
        %v3087 = vpop.f32.mrb[0].mxu0
        %v3088 = vadd.f32 %v2927, %v3087
        %v3089 = vpop.f32.mrb[0].mxu0
        %v3090 = vpop.f32.mrb[0].mxu0
        %v3091 = vadd.f32 %v2930, %v3090
        %v3092 = vpop.f32.mrb[0].mxu0
        %3093 = vmatprep.mubr.bf16.mxu0 0
        %3094 = vmatmul.mubr.bf16.gmra.mrb[0].mxu0 %v1587
        %v3095 = vpop.f32.mrb[0].mxu0
        %v3096 = vadd.f32 %v2935, %v3095
        %v3097 = vpop.f32.mrb[0].mxu0
        %v3098 = vpop.f32.mrb[0].mxu0
        %v3099 = vadd.f32 %v2938, %v3098
        %v3100 = vpop.f32.mrb[0].mxu0
        %3101 = vmatprep.mubr.bf16.mxu0 0
        %3102 = vmatmul.mubr.bf16.gmra.mrb[0].mxu0 %v1590
        %v3103 = vpop.f32.mrb[0].mxu0
        %v3104 = vadd.f32 %v2943, %v3103
        %v3105 = vpop.f32.mrb[0].mxu0
        %v3106 = vpop.f32.mrb[0].mxu0
        %v3107 = vadd.f32 %v2946, %v3106
        %v3108 = vpop.f32.mrb[0].mxu0
        %3109 = vmatprep.mubr.bf16.mxu0 0
        %3110 = vmatmul.mubr.bf16.gmra.mrb[0].mxu0 %v1593
        %v3111 = vpop.f32.mrb[0].mxu0
        %v3112 = vadd.f32 %v2951, %v3111
        %v3113 = vpop.f32.mrb[0].mxu0
        %v3114 = vpop.f32.mrb[0].mxu0
        %v3115 = vadd.f32 %v2954, %v3114
        %v3116 = vpop.f32.mrb[0].mxu0
        %3117 = vmatprep.mubr.bf16.mxu0 0
        %3118 = vmatmul.mubr.bf16.gmra.mrb[0].mxu0 %v1596
        %v3119 = vpop.f32.mrb[0].mxu0
        %v3120 = vadd.f32 %v2959, %v3119
        %v3121 = vpop.f32.mrb[0].mxu0
        %v3122 = vpop.f32.mrb[0].mxu0
        %v3123 = vadd.f32 %v2962, %v3122
        %v3124 = vpop.f32.mrb[0].mxu0
        %3125 = vmatprep.mubr.bf16.mxu0 0
        %3126 = vmatmul.mubr.bf16.gmra.mrb[0].mxu0 %v1599
        %v3127 = vpop.f32.mrb[0].mxu0
        %v3128 = vadd.f32 %v2967, %v3127
        %v3129 = vpop.f32.mrb[0].mxu0
        %v3130 = vpop.f32.mrb[0].mxu0
        %v3131 = vadd.f32 %v2970, %v3130
        %v3132 = vpop.f32.mrb[0].mxu0
        %3133 = vmatprep.mubr.bf16.mxu0 0
        %3134 = vmatmul.mubr.bf16.gmra.mrb[0].mxu0 %v1602
        %v3135 = vpop.f32.mrb[0].mxu0
        %v3136 = vadd.f32 %v2975, %v3135
        %v3137 = vpop.f32.mrb[0].mxu0
        %v3138 = vpop.f32.mrb[0].mxu0
        %v3139 = vadd.f32 %v2978, %v3138
        %v3140 = vpop.f32.mrb[0].mxu0
        %3141 = vmatprep.mubr.bf16.mxu0 0
        %3142 = vmatmul.mubr.bf16.gmra.mrb[0].mxu0 %v1605
        %v3143 = vpop.f32.mrb[0].mxu0
        %v3144 = vadd.f32 %v2983, %v3143
        %v3145 = vpop.f32.mrb[0].mxu0
        %v3146 = vpop.f32.mrb[0].mxu0
        %v3147 = vadd.f32 %v2986, %v3146
        %v3148 = vpop.f32.mrb[0].mxu0
        %3149 = vmatprep.mubr.bf16.mxu0 0
        %3150 = vmatmul.mubr.bf16.gmra.mrb[0].mxu0 %v1608
        %v3151 = vpop.f32.mrb[0].mxu0
        %v3152 = vadd.f32 %v2991, %v3151
        %v3153 = vpop.f32.mrb[0].mxu0
        %v3154 = vpop.f32.mrb[0].mxu0
        %v3155 = vadd.f32 %v2994, %v3154
        %v3156 = vpop.f32.mrb[0].mxu0
        %3157 = vmatprep.mubr.bf16.mxu0 0
        %3158 = vmatmul.mubr.bf16.gmra.mrb[0].mxu0 %v1611
        %v3159 = vpop.f32.mrb[0].mxu0
        %v3160 = vadd.f32 %v2999, %v3159
        %v3161 = vpop.f32.mrb[0].mxu0
        %v3162 = vpop.f32.mrb[0].mxu0
        %v3163 = vadd.f32 %v3002, %v3162
        %v3164 = vpop.f32.mrb[0].mxu0
        %3165 = vmatprep.mubr.bf16.mxu0 0
        %3166 = vmatmul.mubr.bf16.gmra.mrb[0].mxu0 %v1614
        %v3167 = vpop.f32.mrb[0].mxu0
        %v3168 = vadd.f32 %v3007, %v3167
        %v3169 = vpop.f32.mrb[0].mxu0
        %v3170 = vpop.f32.mrb[0].mxu0
        %v3171 = vadd.f32 %v3010, %v3170
        %v3172 = vpop.f32.mrb[0].mxu0
        %3173 = vmatprep.mubr.bf16.mxu0 0
        %3174 = vmatmul.mubr.bf16.gmra.mrb[0].mxu0 %v1617
        %v3175 = vpop.f32.mrb[0].mxu0
        %v3176 = vadd.f32 %v3015, %v3175
        %v3177 = vpop.f32.mrb[0].mxu0
        %v3178 = vpop.f32.mrb[0].mxu0
        %v3179 = vadd.f32 %v3018, %v3178
        %v3180 = vpop.f32.mrb[0].mxu0
        %3181 = vmatprep.mubr.bf16.mxu0 0
        %3182 = vmatmul.mubr.bf16.gmra.mrb[0].mxu0 %v1620
        %v3183 = vpop.f32.mrb[0].mxu0
        %v3184 = vadd.f32 %v3023, %v3183
        %v3185 = vpop.f32.mrb[0].mxu0
        %v3186 = vpop.f32.mrb[0].mxu0
        %v3187 = vadd.f32 %v3026, %v3186
        %v3188 = vpop.f32.mrb[0].mxu0
        %3189 = vmatprep.mubr.bf16.mxu0 0
        %3190 = vmatmul.mubr.bf16.gmra.mrb[0].mxu0 %v1623
        %v3191 = vpop.f32.mrb[0].mxu0
        %v3192 = vadd.f32 %v3031, %v3191
        %v3193 = vpop.f32.mrb[0].mxu0
        %v3194 = vpop.f32.mrb[0].mxu0
        %v3195 = vadd.f32 %v3034, %v3194
        %v3196 = vpop.f32.mrb[0].mxu0
        %3197 = vdwg.mxu0
        %s3198 = scalar_lea.vmem %s1109, 24 [#allocation2]
        %v3199 = vld [vmem:[%s3198] sm:$0xf]
        %v3200 = vld [vmem:[%s3198 + $0x4] sm:$0xf]
        %v3201 = vld [vmem:[%s3198 + $0xc] sm:$0xf]
        %v3202 = vld [vmem:[%s3198 + $0x10] sm:$0xf]
        %v3203 = vld [vmem:[%s3198 + $0x18] sm:$0xf]
        %v3204 = vld [vmem:[%s3198 + $0x1c] sm:$0xf]
        %v3205 = vld [vmem:[%s3198 + $0x24] sm:$0xf]
        %v3206 = vld [vmem:[%s3198 + $0x28] sm:$0xf]
        %v3207 = vld [vmem:[%s3198 + $0x30] sm:$0xf]
        %v3208 = vld [vmem:[%s3198 + $0x34] sm:$0xf]
        %v3209 = vld [vmem:[%s3198 + $0x3c] sm:$0xf]
        %v3210 = vld [vmem:[%s3198 + $0x40] sm:$0xf]
        %v3211 = vld [vmem:[%s3198 + $0x48] sm:$0xf]
        %v3212 = vld [vmem:[%s3198 + $0x4c] sm:$0xf]
        %v3213 = vld [vmem:[%s3198 + $0x54] sm:$0xf]
        %v3214 = vld [vmem:[%s3198 + $0x58] sm:$0xf]
        %v3215 = vld [vmem:[%s3198 + $0x60] sm:$0xf]
        %v3216 = vld [vmem:[%s3198 + $0x64] sm:$0xf]
        %v3217 = vld [vmem:[%s3198 + $0x6c] sm:$0xf]
        %v3218 = vld [vmem:[%s3198 + $0x70] sm:$0xf]
        %v3219 = vld [vmem:[%s3198 + $0x78] sm:$0xf]
        %v3220 = vld [vmem:[%s3198 + $0x7c] sm:$0xf]
        %v3221 = vld [vmem:[%s3198 + $0x84] sm:$0xf]
        %v3222 = vld [vmem:[%s3198 + $0x88] sm:$0xf]
        %v3223 = vld [vmem:[%s3198 + $0x90] sm:$0xf]
        %v3224 = vld [vmem:[%s3198 + $0x94] sm:$0xf]
        %v3225 = vld [vmem:[%s3198 + $0x9c] sm:$0xf]
        %v3226 = vld [vmem:[%s3198 + $0xa0] sm:$0xf]
        %v3227 = vld [vmem:[%s3198 + $0xa8] sm:$0xf]
        %v3228 = vld [vmem:[%s3198 + $0xac] sm:$0xf]
        %v3229 = vld [vmem:[%s3198 + $0xb4] sm:$0xf]
        %v3230 = vld [vmem:[%s3198 + $0xb8] sm:$0xf]
        %v3231 = vld [vmem:[%s3198 + $0x8] sm:$0x1]
        %v3232 = vld [vmem:[%s3198 + $0x14] sm:$0x1]
        %v3233 = vld [vmem:[%s3198 + $0x20] sm:$0x1]
        %v3234 = vld [vmem:[%s3198 + $0x2c] sm:$0x1]
        %v3235 = vld [vmem:[%s3198 + $0x38] sm:$0x1]
        %v3236 = vld [vmem:[%s3198 + $0x44] sm:$0x1]
        %v3237 = vld [vmem:[%s3198 + $0x50] sm:$0x1]
        %v3238 = vld [vmem:[%s3198 + $0x5c] sm:$0x1]
        %v3239 = vld [vmem:[%s3198 + $0x68] sm:$0x1]
        %v3240 = vld [vmem:[%s3198 + $0x74] sm:$0x1]
        %v3241 = vld [vmem:[%s3198 + $0x80] sm:$0x1]
        %v3242 = vld [vmem:[%s3198 + $0x8c] sm:$0x1]
        %v3243 = vld [vmem:[%s3198 + $0x98] sm:$0x1]
        %v3244 = vld [vmem:[%s3198 + $0xa4] sm:$0x1]
        %v3245 = vld [vmem:[%s3198 + $0xb0] sm:$0x1]
        %v3246 = vld [vmem:[%s3198 + $0xbc] sm:$0x1]
        %v3247 = vld [vmem:[%s3198] sm:$0xe]
        %v3248 = vld [vmem:[%s3198 + $0xc] sm:$0xe]
        %v3249 = vld [vmem:[%s3198 + $0x18] sm:$0xe]
        %v3250 = vld [vmem:[%s3198 + $0x24] sm:$0xe]
        %v3251 = vld [vmem:[%s3198 + $0x30] sm:$0xe]
        %v3252 = vld [vmem:[%s3198 + $0x3c] sm:$0xe]
        %v3253 = vld [vmem:[%s3198 + $0x48] sm:$0xe]
        %v3254 = vld [vmem:[%s3198 + $0x54] sm:$0xe]
        %v3255 = vld [vmem:[%s3198 + $0x60] sm:$0xe]
        %v3256 = vld [vmem:[%s3198 + $0x6c] sm:$0xe]
        %v3257 = vld [vmem:[%s3198 + $0x78] sm:$0xe]
        %v3258 = vld [vmem:[%s3198 + $0x84] sm:$0xe]
        %v3259 = vld [vmem:[%s3198 + $0x90] sm:$0xe]
        %v3260 = vld [vmem:[%s3198 + $0x9c] sm:$0xe]
        %v3261 = vld [vmem:[%s3198 + $0xa8] sm:$0xe]
        %v3262 = vld [vmem:[%s3198 + $0xb4] sm:$0xe]
        %v3295 = vunpack.c.l.b16 %v3199
        %v3296 = vunpack.c.l.b16 %v3200
        %v3297 = vunpack.c.l.b16 %v3201
        %v3298 = vunpack.c.l.b16 %v3202
        %v3299 = vunpack.c.l.b16 %v3203
        %v3300 = vunpack.c.l.b16 %v3204
        %v3301 = vunpack.c.l.b16 %v3205
        %v3302 = vunpack.c.l.b16 %v3206
        %v3303 = vunpack.c.l.b16 %v3207
        %v3304 = vunpack.c.l.b16 %v3208
        %v3305 = vunpack.c.l.b16 %v3209
        %v3306 = vunpack.c.l.b16 %v3210
        %v3307 = vunpack.c.l.b16 %v3211
        %v3308 = vunpack.c.l.b16 %v3212
        %v3309 = vunpack.c.l.b16 %v3213
        %v3310 = vunpack.c.l.b16 %v3214
        %v3311 = vunpack.c.l.b16 %v3215
        %v3312 = vunpack.c.l.b16 %v3216
        %v3313 = vunpack.c.l.b16 %v3217
        %v3314 = vunpack.c.l.b16 %v3218
        %v3315 = vunpack.c.l.b16 %v3219
        %v3316 = vunpack.c.l.b16 %v3220
        %v3317 = vunpack.c.l.b16 %v3221
        %v3318 = vunpack.c.l.b16 %v3222
        %v3319 = vunpack.c.l.b16 %v3223
        %v3320 = vunpack.c.l.b16 %v3224
        %v3321 = vunpack.c.l.b16 %v3225
        %v3322 = vunpack.c.l.b16 %v3226
        %v3323 = vunpack.c.l.b16 %v3227
        %v3324 = vunpack.c.l.b16 %v3228
        %v3325 = vunpack.c.l.b16 %v3229
        %v3326 = vunpack.c.l.b16 %v3230
        %v3327 = vpack.c.b16 %v3296, %v3295
        %v3328 = vpack.c.b16 %v3298, %v3297
        %v3329 = vpack.c.b16 %v3300, %v3299
        %v3330 = vpack.c.b16 %v3302, %v3301
        %v3331 = vpack.c.b16 %v3304, %v3303
        %v3332 = vpack.c.b16 %v3306, %v3305
        %v3333 = vpack.c.b16 %v3308, %v3307
        %v3334 = vpack.c.b16 %v3310, %v3309
        %v3335 = vpack.c.b16 %v3312, %v3311
        %v3336 = vpack.c.b16 %v3314, %v3313
        %v3337 = vpack.c.b16 %v3316, %v3315
        %v3338 = vpack.c.b16 %v3318, %v3317
        %v3339 = vpack.c.b16 %v3320, %v3319
        %v3340 = vpack.c.b16 %v3322, %v3321
        %v3341 = vpack.c.b16 %v3324, %v3323
        %v3342 = vpack.c.b16 %v3326, %v3325
        %v3375 = vunpack.c.l.b16 %v3231
        %v3376 = vunpack.c.l.b16 %v3232
        %v3377 = vunpack.c.l.b16 %v3233
        %v3378 = vunpack.c.l.b16 %v3234
        %v3379 = vunpack.c.l.b16 %v3235
        %v3380 = vunpack.c.l.b16 %v3236
        %v3381 = vunpack.c.l.b16 %v3237
        %v3382 = vunpack.c.l.b16 %v3238
        %v3383 = vunpack.c.l.b16 %v3239
        %v3384 = vunpack.c.l.b16 %v3240
        %v3385 = vunpack.c.l.b16 %v3241
        %v3386 = vunpack.c.l.b16 %v3242
        %v3387 = vunpack.c.l.b16 %v3243
        %v3388 = vunpack.c.l.b16 %v3244
        %v3389 = vunpack.c.l.b16 %v3245
        %v3390 = vunpack.c.l.b16 %v3246
        %v3391 = vpack.c.b16 %v3375, %v3375
        %v3392 = vpack.c.b16 %v3376, %v3376
        %v3393 = vpack.c.b16 %v3377, %v3377
        %v3394 = vpack.c.b16 %v3378, %v3378
        %v3395 = vpack.c.b16 %v3379, %v3379
        %v3396 = vpack.c.b16 %v3380, %v3380
        %v3397 = vpack.c.b16 %v3381, %v3381
        %v3398 = vpack.c.b16 %v3382, %v3382
        %v3399 = vpack.c.b16 %v3383, %v3383
        %v3400 = vpack.c.b16 %v3384, %v3384
        %v3401 = vpack.c.b16 %v3385, %v3385
        %v3402 = vpack.c.b16 %v3386, %v3386
        %v3403 = vpack.c.b16 %v3387, %v3387
        %v3404 = vpack.c.b16 %v3388, %v3388
        %v3405 = vpack.c.b16 %v3389, %v3389
        %v3406 = vpack.c.b16 %v3390, %v3390
        %v3408 = vshrl.u32 %v3327, 16
        %v3410 = vshll.u32 %v3327, 16
        %v3412 = vrot.slane %v3410, 1
        %v3413 = vor.u32 %v3408, %v3412
        %v3415 = vshll.u32 %v3391, 16
        %v3417 = vrot.slane %v3415, 1
        %v3418 = vsel %vm1318, %v3413, %v3417
        %v3420 = vshrl.u32 %v3328, 16
        %v3422 = vshll.u32 %v3328, 16
        %v3424 = vrot.slane %v3422, 1
        %v3425 = vor.u32 %v3420, %v3424
        %v3427 = vshll.u32 %v3392, 16
        %v3429 = vrot.slane %v3427, 1
        %v3430 = vsel %vm1318, %v3425, %v3429
        %v3432 = vshrl.u32 %v3329, 16
        %v3434 = vshll.u32 %v3329, 16
        %v3436 = vrot.slane %v3434, 1
        %v3437 = vor.u32 %v3432, %v3436
        %v3439 = vshll.u32 %v3393, 16
        %v3441 = vrot.slane %v3439, 1
        %v3442 = vsel %vm1318, %v3437, %v3441
        %v3444 = vshrl.u32 %v3330, 16
        %v3446 = vshll.u32 %v3330, 16
        %v3448 = vrot.slane %v3446, 1
        %v3449 = vor.u32 %v3444, %v3448
        %v3451 = vshll.u32 %v3394, 16
        %v3453 = vrot.slane %v3451, 1
        %v3454 = vsel %vm1318, %v3449, %v3453
        %v3456 = vshrl.u32 %v3331, 16
        %v3458 = vshll.u32 %v3331, 16
        %v3460 = vrot.slane %v3458, 1
        %v3461 = vor.u32 %v3456, %v3460
        %v3463 = vshll.u32 %v3395, 16
        %v3465 = vrot.slane %v3463, 1
        %v3466 = vsel %vm1318, %v3461, %v3465
        %v3468 = vshrl.u32 %v3332, 16
        %v3470 = vshll.u32 %v3332, 16
        %v3472 = vrot.slane %v3470, 1
        %v3473 = vor.u32 %v3468, %v3472
        %v3475 = vshll.u32 %v3396, 16
        %v3477 = vrot.slane %v3475, 1
        %v3478 = vsel %vm1318, %v3473, %v3477
        %v3480 = vshrl.u32 %v3333, 16
        %v3482 = vshll.u32 %v3333, 16
        %v3484 = vrot.slane %v3482, 1
        %v3485 = vor.u32 %v3480, %v3484
        %v3487 = vshll.u32 %v3397, 16
        %v3489 = vrot.slane %v3487, 1
        %v3490 = vsel %vm1318, %v3485, %v3489
        %v3492 = vshrl.u32 %v3334, 16
        %v3494 = vshll.u32 %v3334, 16
        %v3496 = vrot.slane %v3494, 1
        %v3497 = vor.u32 %v3492, %v3496
        %v3499 = vshll.u32 %v3398, 16
        %v3501 = vrot.slane %v3499, 1
        %v3502 = vsel %vm1318, %v3497, %v3501
        %v3504 = vshrl.u32 %v3335, 16
        %v3506 = vshll.u32 %v3335, 16
        %v3508 = vrot.slane %v3506, 1
        %v3509 = vor.u32 %v3504, %v3508
        %v3511 = vshll.u32 %v3399, 16
        %v3513 = vrot.slane %v3511, 1
        %v3514 = vsel %vm1318, %v3509, %v3513
        %v3516 = vshrl.u32 %v3336, 16
        %v3518 = vshll.u32 %v3336, 16
        %v3520 = vrot.slane %v3518, 1
        %v3521 = vor.u32 %v3516, %v3520
        %v3523 = vshll.u32 %v3400, 16
        %v3525 = vrot.slane %v3523, 1
        %v3526 = vsel %vm1318, %v3521, %v3525
        %v3528 = vshrl.u32 %v3337, 16
        %v3530 = vshll.u32 %v3337, 16
        %v3532 = vrot.slane %v3530, 1
        %v3533 = vor.u32 %v3528, %v3532
        %v3535 = vshll.u32 %v3401, 16
        %v3537 = vrot.slane %v3535, 1
        %v3538 = vsel %vm1318, %v3533, %v3537
        %v3540 = vshrl.u32 %v3338, 16
        %v3542 = vshll.u32 %v3338, 16
        %v3544 = vrot.slane %v3542, 1
        %v3545 = vor.u32 %v3540, %v3544
        %v3547 = vshll.u32 %v3402, 16
        %v3549 = vrot.slane %v3547, 1
        %v3550 = vsel %vm1318, %v3545, %v3549
        %v3552 = vshrl.u32 %v3339, 16
        %v3554 = vshll.u32 %v3339, 16
        %v3556 = vrot.slane %v3554, 1
        %v3557 = vor.u32 %v3552, %v3556
        %v3559 = vshll.u32 %v3403, 16
        %v3561 = vrot.slane %v3559, 1
        %v3562 = vsel %vm1318, %v3557, %v3561
        %v3564 = vshrl.u32 %v3340, 16
        %v3566 = vshll.u32 %v3340, 16
        %v3568 = vrot.slane %v3566, 1
        %v3569 = vor.u32 %v3564, %v3568
        %v3571 = vshll.u32 %v3404, 16
        %v3573 = vrot.slane %v3571, 1
        %v3574 = vsel %vm1318, %v3569, %v3573
        %v3576 = vshrl.u32 %v3341, 16
        %v3578 = vshll.u32 %v3341, 16
        %v3580 = vrot.slane %v3578, 1
        %v3581 = vor.u32 %v3576, %v3580
        %v3583 = vshll.u32 %v3405, 16
        %v3585 = vrot.slane %v3583, 1
        %v3586 = vsel %vm1318, %v3581, %v3585
        %v3588 = vshrl.u32 %v3342, 16
        %v3590 = vshll.u32 %v3342, 16
        %v3592 = vrot.slane %v3590, 1
        %v3593 = vor.u32 %v3588, %v3592
        %v3595 = vshll.u32 %v3406, 16
        %v3597 = vrot.slane %v3595, 1
        %v3598 = vsel %vm1318, %v3593, %v3597
        %v3631 = vunpack.c.l.b16 %v3247
        %v3632 = vunpack.c.l.b16 %v3248
        %v3633 = vunpack.c.l.b16 %v3249
        %v3634 = vunpack.c.l.b16 %v3250
        %v3635 = vunpack.c.l.b16 %v3251
        %v3636 = vunpack.c.l.b16 %v3252
        %v3637 = vunpack.c.l.b16 %v3253
        %v3638 = vunpack.c.l.b16 %v3254
        %v3639 = vunpack.c.l.b16 %v3255
        %v3640 = vunpack.c.l.b16 %v3256
        %v3641 = vunpack.c.l.b16 %v3257
        %v3642 = vunpack.c.l.b16 %v3258
        %v3643 = vunpack.c.l.b16 %v3259
        %v3644 = vunpack.c.l.b16 %v3260
        %v3645 = vunpack.c.l.b16 %v3261
        %v3646 = vunpack.c.l.b16 %v3262
        %v3647 = vpack.c.b16 %v3296, %v3631
        %v3648 = vpack.c.b16 %v3298, %v3632
        %v3649 = vpack.c.b16 %v3300, %v3633
        %v3650 = vpack.c.b16 %v3302, %v3634
        %v3651 = vpack.c.b16 %v3304, %v3635
        %v3652 = vpack.c.b16 %v3306, %v3636
        %v3653 = vpack.c.b16 %v3308, %v3637
        %v3654 = vpack.c.b16 %v3310, %v3638
        %v3655 = vpack.c.b16 %v3312, %v3639
        %v3656 = vpack.c.b16 %v3314, %v3640
        %v3657 = vpack.c.b16 %v3316, %v3641
        %v3658 = vpack.c.b16 %v3318, %v3642
        %v3659 = vpack.c.b16 %v3320, %v3643
        %v3660 = vpack.c.b16 %v3322, %v3644
        %v3661 = vpack.c.b16 %v3324, %v3645
        %v3662 = vpack.c.b16 %v3326, %v3646
        %v3663 = vrot.slane %v3647, 1
        %v3664 = vrot.slane %v3391, 1
        %v3665 = vsel %vm1575, %v3663, %v3664
        %v3666 = vrot.slane %v3648, 1
        %v3667 = vrot.slane %v3392, 1
        %v3668 = vsel %vm1575, %v3666, %v3667
        %v3669 = vrot.slane %v3649, 1
        %v3670 = vrot.slane %v3393, 1
        %v3671 = vsel %vm1575, %v3669, %v3670
        %v3672 = vrot.slane %v3650, 1
        %v3673 = vrot.slane %v3394, 1
        %v3674 = vsel %vm1575, %v3672, %v3673
        %v3675 = vrot.slane %v3651, 1
        %v3676 = vrot.slane %v3395, 1
        %v3677 = vsel %vm1575, %v3675, %v3676
        %v3678 = vrot.slane %v3652, 1
        %v3679 = vrot.slane %v3396, 1
        %v3680 = vsel %vm1575, %v3678, %v3679
        %v3681 = vrot.slane %v3653, 1
        %v3682 = vrot.slane %v3397, 1
        %v3683 = vsel %vm1575, %v3681, %v3682
        %v3684 = vrot.slane %v3654, 1
        %v3685 = vrot.slane %v3398, 1
        %v3686 = vsel %vm1575, %v3684, %v3685
        %v3687 = vrot.slane %v3655, 1
        %v3688 = vrot.slane %v3399, 1
        %v3689 = vsel %vm1575, %v3687, %v3688
        %v3690 = vrot.slane %v3656, 1
        %v3691 = vrot.slane %v3400, 1
        %v3692 = vsel %vm1575, %v3690, %v3691
        %v3693 = vrot.slane %v3657, 1
        %v3694 = vrot.slane %v3401, 1
        %v3695 = vsel %vm1575, %v3693, %v3694
        %v3696 = vrot.slane %v3658, 1
        %v3697 = vrot.slane %v3402, 1
        %v3698 = vsel %vm1575, %v3696, %v3697
        %v3699 = vrot.slane %v3659, 1
        %v3700 = vrot.slane %v3403, 1
        %v3701 = vsel %vm1575, %v3699, %v3700
        %v3702 = vrot.slane %v3660, 1
        %v3703 = vrot.slane %v3404, 1
        %v3704 = vsel %vm1575, %v3702, %v3703
        %v3705 = vrot.slane %v3661, 1
        %v3706 = vrot.slane %v3405, 1
        %v3707 = vsel %vm1575, %v3705, %v3706
        %v3708 = vrot.slane %v3662, 1
        %v3709 = vrot.slane %v3406, 1
        %v3710 = vsel %vm1575, %v3708, %v3709
        %s3727 = scalar_lea.vmem %s302, 384 [#allocation3]
        %v3728 = vld [vmem:[%s3727] sm:$0xf]
        %v3729 = vld [vmem:[%s3727 + $0x4] sm:$0xf]
        %v3730 = vld [vmem:[%s3727 + $0x8] sm:$0xf]
        %v3731 = vld [vmem:[%s3727 + $0xc] sm:$0xf]
        %v3732 = vld [vmem:[%s3727 + $0x10] sm:$0xf]
        %v3733 = vld [vmem:[%s3727 + $0x14] sm:$0xf]
        %v3734 = vld [vmem:[%s3727 + $0x18] sm:$0xf]
        %v3735 = vld [vmem:[%s3727 + $0x1c] sm:$0xf]
        %v3736 = vld [vmem:[%s3727 + $0x20] sm:$0xf]
        %v3737 = vld [vmem:[%s3727 + $0x24] sm:$0xf]
        %v3738 = vld [vmem:[%s3727 + $0x28] sm:$0xf]
        %v3739 = vld [vmem:[%s3727 + $0x2c] sm:$0xf]
        %v3740 = vld [vmem:[%s3727 + $0x30] sm:$0xf]
        %v3741 = vld [vmem:[%s3727 + $0x34] sm:$0xf]
        %v3742 = vld [vmem:[%s3727 + $0x38] sm:$0xf]
        %v3743 = vld [vmem:[%s3727 + $0x3c] sm:$0xf]
        %v3744 = vld [vmem:[%s3727 + $0x40] sm:$0xf]
        %v3745 = vld [vmem:[%s3727 + $0x44] sm:$0xf]
        %v3746 = vld [vmem:[%s3727 + $0x48] sm:$0xf]
        %v3747 = vld [vmem:[%s3727 + $0x4c] sm:$0xf]
        %v3748 = vld [vmem:[%s3727 + $0x50] sm:$0xf]
        %v3749 = vld [vmem:[%s3727 + $0x54] sm:$0xf]
        %v3750 = vld [vmem:[%s3727 + $0x58] sm:$0xf]
        %v3751 = vld [vmem:[%s3727 + $0x5c] sm:$0xf]
        %v3752 = vld [vmem:[%s3727 + $0x60] sm:$0xf]
        %v3753 = vld [vmem:[%s3727 + $0x64] sm:$0xf]
        %v3754 = vld [vmem:[%s3727 + $0x68] sm:$0xf]
        %v3755 = vld [vmem:[%s3727 + $0x6c] sm:$0xf]
        %v3756 = vld [vmem:[%s3727 + $0x70] sm:$0xf]
        %v3757 = vld [vmem:[%s3727 + $0x74] sm:$0xf]
        %v3758 = vld [vmem:[%s3727 + $0x78] sm:$0xf]
        %v3759 = vld [vmem:[%s3727 + $0x7c] sm:$0xf]
        %v3760 = vld [vmem:[%s3727 + $0x80] sm:$0xf]
        %v3761 = vld [vmem:[%s3727 + $0x84] sm:$0xf]
        %v3762 = vld [vmem:[%s3727 + $0x88] sm:$0xf]
        %v3763 = vld [vmem:[%s3727 + $0x8c] sm:$0xf]
        %v3764 = vld [vmem:[%s3727 + $0x90] sm:$0xf]
        %v3765 = vld [vmem:[%s3727 + $0x94] sm:$0xf]
        %v3766 = vld [vmem:[%s3727 + $0x98] sm:$0xf]
        %v3767 = vld [vmem:[%s3727 + $0x9c] sm:$0xf]
        %v3768 = vld [vmem:[%s3727 + $0xa0] sm:$0xf]
        %v3769 = vld [vmem:[%s3727 + $0xa4] sm:$0xf]
        %v3770 = vld [vmem:[%s3727 + $0xa8] sm:$0xf]
        %v3771 = vld [vmem:[%s3727 + $0xac] sm:$0xf]
        %v3772 = vld [vmem:[%s3727 + $0xb0] sm:$0xf]
        %v3773 = vld [vmem:[%s3727 + $0xb4] sm:$0xf]
        %v3774 = vld [vmem:[%s3727 + $0xb8] sm:$0xf]
        %v3775 = vld [vmem:[%s3727 + $0xbc] sm:$0xf]
        %v3824 = vunpack.c.l.b16 %v3728
        %v3825 = vunpack.c.l.b16 %v3729
        %v3826 = vunpack.c.l.b16 %v3730
        %v3827 = vunpack.c.l.b16 %v3731
        %v3828 = vunpack.c.l.b16 %v3732
        %v3829 = vunpack.c.l.b16 %v3733
        %v3830 = vunpack.c.l.b16 %v3734
        %v3831 = vunpack.c.l.b16 %v3735
        %v3832 = vunpack.c.l.b16 %v3736
        %v3833 = vunpack.c.l.b16 %v3737
        %v3834 = vunpack.c.l.b16 %v3738
        %v3835 = vunpack.c.l.b16 %v3739
        %v3836 = vunpack.c.l.b16 %v3740
        %v3837 = vunpack.c.l.b16 %v3741
        %v3838 = vunpack.c.l.b16 %v3742
        %v3839 = vunpack.c.l.b16 %v3743
        %v3840 = vunpack.c.l.b16 %v3744
        %v3841 = vunpack.c.l.b16 %v3745
        %v3842 = vunpack.c.l.b16 %v3746
        %v3843 = vunpack.c.l.b16 %v3747
        %v3844 = vunpack.c.l.b16 %v3748
        %v3845 = vunpack.c.l.b16 %v3749
        %v3846 = vunpack.c.l.b16 %v3750
        %v3847 = vunpack.c.l.b16 %v3751
        %v3848 = vunpack.c.l.b16 %v3752
        %v3849 = vunpack.c.l.b16 %v3753
        %v3850 = vunpack.c.l.b16 %v3754
        %v3851 = vunpack.c.l.b16 %v3755
        %v3852 = vunpack.c.l.b16 %v3756
        %v3853 = vunpack.c.l.b16 %v3757
        %v3854 = vunpack.c.l.b16 %v3758
        %v3855 = vunpack.c.l.b16 %v3759
        %v3856 = vunpack.c.l.b16 %v3760
        %v3857 = vunpack.c.l.b16 %v3761
        %v3858 = vunpack.c.l.b16 %v3762
        %v3859 = vunpack.c.l.b16 %v3763
        %v3860 = vunpack.c.l.b16 %v3764
        %v3861 = vunpack.c.l.b16 %v3765
        %v3862 = vunpack.c.l.b16 %v3766
        %v3863 = vunpack.c.l.b16 %v3767
        %v3864 = vunpack.c.l.b16 %v3768
        %v3865 = vunpack.c.l.b16 %v3769
        %v3866 = vunpack.c.l.b16 %v3770
        %v3867 = vunpack.c.l.b16 %v3771
        %v3868 = vunpack.c.l.b16 %v3772
        %v3869 = vunpack.c.l.b16 %v3773
        %v3870 = vunpack.c.l.b16 %v3774
        %v3871 = vunpack.c.l.b16 %v3775
        %v3872 = vpack.c.b16 %v3825, %v3824
        %v3873 = vpack.c.b16 %v3827, %v3826
        %v3874 = vpack.c.b16 %v3829, %v3828
        %v3875 = vpack.c.b16 %v3831, %v3830
        %v3876 = vpack.c.b16 %v3833, %v3832
        %v3877 = vpack.c.b16 %v3835, %v3834
        %v3878 = vpack.c.b16 %v3837, %v3836
        %v3879 = vpack.c.b16 %v3839, %v3838
        %v3880 = vpack.c.b16 %v3841, %v3840
        %v3881 = vpack.c.b16 %v3843, %v3842
        %v3882 = vpack.c.b16 %v3845, %v3844
        %v3883 = vpack.c.b16 %v3847, %v3846
        %v3884 = vpack.c.b16 %v3849, %v3848
        %v3885 = vpack.c.b16 %v3851, %v3850
        %v3886 = vpack.c.b16 %v3853, %v3852
        %v3887 = vpack.c.b16 %v3855, %v3854
        %v3888 = vpack.c.b16 %v3857, %v3856
        %v3889 = vpack.c.b16 %v3859, %v3858
        %v3890 = vpack.c.b16 %v3861, %v3860
        %v3891 = vpack.c.b16 %v3863, %v3862
        %v3892 = vpack.c.b16 %v3865, %v3864
        %v3893 = vpack.c.b16 %v3867, %v3866
        %v3894 = vpack.c.b16 %v3869, %v3868
        %v3895 = vpack.c.b16 %v3871, %v3870
        %3920 = vmatprep.subr.bf16.mxu0 0
        %3921 = vmatpush1.bf16.msra.mxu0 %v3872
        %3922 = vmatprep.subr.bf16.mxu0 0
        %3923 = vmatpush1.bf16.msra.mxu0 %v3873
        %3924 = vmatprep.subr.bf16.mxu0 0
        %3925 = vmatpush1.bf16.msra.mxu0 %v3874
        %3926 = vmatprep.subr.bf16.mxu0 0
        %3927 = vmatpush1.bf16.msra.mxu0 %v3875
        %3928 = vmatprep.subr.bf16.mxu0 0
        %3929 = vmatpush1.bf16.msra.mxu0 %v3876
        %3930 = vmatprep.subr.bf16.mxu0 0
        %3931 = vmatpush1.bf16.msra.mxu0 %v3877
        %3932 = vmatprep.subr.bf16.mxu0 0
        %3933 = vmatpush1.bf16.msra.mxu0 %v3878
        %3934 = vmatprep.subr.bf16.mxu0 0
        %3935 = vmatpush1.bf16.msra.mxu0 %v3879
        %3936 = vmatprep.subr.bf16.mxu0 0
        %3937 = vmatpush1.bf16.msra.mxu0 %v3880
        %3938 = vmatprep.subr.bf16.mxu0 0
        %3939 = vmatpush1.bf16.msra.mxu0 %v3881
        %3940 = vmatprep.subr.bf16.mxu0 0
        %3941 = vmatpush1.bf16.msra.mxu0 %v3882
        %3942 = vmatprep.subr.bf16.mxu0 0
        %3943 = vmatpush1.bf16.msra.mxu0 %v3883
        %3944 = vmatprep.subr.bf16.mxu0 0
        %3945 = vmatpush1.bf16.msra.mxu0 %v3884
        %3946 = vmatprep.subr.bf16.mxu0 0
        %3947 = vmatpush1.bf16.msra.mxu0 %v3885
        %3948 = vmatprep.subr.bf16.mxu0 0
        %3949 = vmatpush1.bf16.msra.mxu0 %v3886
        %3950 = vmatprep.subr.bf16.mxu0 0
        %3951 = vmatpush1.bf16.msra.mxu0 %v3887
        %3952 = vmatprep.mubr.bf16.mxu0 %v3418
        %3953 = vmatmul.mubr.bf16.gmra.mrb[0].mxu0 %v3327
        %v3954 = vpop.f32.mrb[0].mxu0
        %v3955 = vadd.f32 0.0, %v3954
        %v3956 = vpop.f32.mrb[0].mxu0
        %v3957 = vpop.f32.mrb[0].mxu0
        %v3958 = vadd.f32 0.0, %v3957
        %v3959 = vpop.f32.mrb[0].mxu0
        %3960 = vmatprep.mubr.bf16.mxu0 %v3430
        %3961 = vmatmul.mubr.bf16.gmra.mrb[0].mxu0 %v3328
        %v3962 = vpop.f32.mrb[0].mxu0
        %v3963 = vadd.f32 0.0, %v3962
        %v3964 = vpop.f32.mrb[0].mxu0
        %v3965 = vpop.f32.mrb[0].mxu0
        %v3966 = vadd.f32 0.0, %v3965
        %v3967 = vpop.f32.mrb[0].mxu0
        %3968 = vmatprep.mubr.bf16.mxu0 %v3442
        %3969 = vmatmul.mubr.bf16.gmra.mrb[0].mxu0 %v3329
        %v3970 = vpop.f32.mrb[0].mxu0
        %v3971 = vadd.f32 0.0, %v3970
        %v3972 = vpop.f32.mrb[0].mxu0
        %v3973 = vpop.f32.mrb[0].mxu0
        %v3974 = vadd.f32 0.0, %v3973
        %v3975 = vpop.f32.mrb[0].mxu0
        %3976 = vmatprep.mubr.bf16.mxu0 %v3454
        %3977 = vmatmul.mubr.bf16.gmra.mrb[0].mxu0 %v3330
        %v3978 = vpop.f32.mrb[0].mxu0
        %v3979 = vadd.f32 0.0, %v3978
        %v3980 = vpop.f32.mrb[0].mxu0
        %v3981 = vpop.f32.mrb[0].mxu0
        %v3982 = vadd.f32 0.0, %v3981
        %v3983 = vpop.f32.mrb[0].mxu0
        %3984 = vmatprep.mubr.bf16.mxu0 %v3466
        %3985 = vmatmul.mubr.bf16.gmra.mrb[0].mxu0 %v3331
        %v3986 = vpop.f32.mrb[0].mxu0
        %v3987 = vadd.f32 0.0, %v3986
        %v3988 = vpop.f32.mrb[0].mxu0
        %v3989 = vpop.f32.mrb[0].mxu0
        %v3990 = vadd.f32 0.0, %v3989
        %v3991 = vpop.f32.mrb[0].mxu0
        %3992 = vmatprep.mubr.bf16.mxu0 %v3478
        %3993 = vmatmul.mubr.bf16.gmra.mrb[0].mxu0 %v3332
        %v3994 = vpop.f32.mrb[0].mxu0
        %v3995 = vadd.f32 0.0, %v3994
        %v3996 = vpop.f32.mrb[0].mxu0
        %v3997 = vpop.f32.mrb[0].mxu0
        %v3998 = vadd.f32 0.0, %v3997
        %v3999 = vpop.f32.mrb[0].mxu0
        %4000 = vmatprep.mubr.bf16.mxu0 %v3490
        %4001 = vmatmul.mubr.bf16.gmra.mrb[0].mxu0 %v3333
        %v4002 = vpop.f32.mrb[0].mxu0
        %v4003 = vadd.f32 0.0, %v4002
        %v4004 = vpop.f32.mrb[0].mxu0
        %v4005 = vpop.f32.mrb[0].mxu0
        %v4006 = vadd.f32 0.0, %v4005
        %v4007 = vpop.f32.mrb[0].mxu0
        %4008 = vmatprep.mubr.bf16.mxu0 %v3502
        %4009 = vmatmul.mubr.bf16.gmra.mrb[0].mxu0 %v3334
        %v4010 = vpop.f32.mrb[0].mxu0
        %v4011 = vadd.f32 0.0, %v4010
        %v4012 = vpop.f32.mrb[0].mxu0
        %v4013 = vpop.f32.mrb[0].mxu0
        %v4014 = vadd.f32 0.0, %v4013
        %v4015 = vpop.f32.mrb[0].mxu0
        %4016 = vmatprep.mubr.bf16.mxu0 %v3514
        %4017 = vmatmul.mubr.bf16.gmra.mrb[0].mxu0 %v3335
        %v4018 = vpop.f32.mrb[0].mxu0
        %v4019 = vadd.f32 0.0, %v4018
        %v4020 = vpop.f32.mrb[0].mxu0
        %v4021 = vpop.f32.mrb[0].mxu0
        %v4022 = vadd.f32 0.0, %v4021
        %v4023 = vpop.f32.mrb[0].mxu0
        %4024 = vmatprep.mubr.bf16.mxu0 %v3526
        %4025 = vmatmul.mubr.bf16.gmra.mrb[0].mxu0 %v3336
        %v4026 = vpop.f32.mrb[0].mxu0
        %v4027 = vadd.f32 0.0, %v4026
        %v4028 = vpop.f32.mrb[0].mxu0
        %v4029 = vpop.f32.mrb[0].mxu0
        %v4030 = vadd.f32 0.0, %v4029
        %v4031 = vpop.f32.mrb[0].mxu0
        %4032 = vmatprep.mubr.bf16.mxu0 %v3538
        %4033 = vmatmul.mubr.bf16.gmra.mrb[0].mxu0 %v3337
        %v4034 = vpop.f32.mrb[0].mxu0
        %v4035 = vadd.f32 0.0, %v4034
        %v4036 = vpop.f32.mrb[0].mxu0
        %v4037 = vpop.f32.mrb[0].mxu0
        %v4038 = vadd.f32 0.0, %v4037
        %v4039 = vpop.f32.mrb[0].mxu0
        %4040 = vmatprep.mubr.bf16.mxu0 %v3550
        %4041 = vmatmul.mubr.bf16.gmra.mrb[0].mxu0 %v3338
        %v4042 = vpop.f32.mrb[0].mxu0
        %v4043 = vadd.f32 0.0, %v4042
        %v4044 = vpop.f32.mrb[0].mxu0
        %v4045 = vpop.f32.mrb[0].mxu0
        %v4046 = vadd.f32 0.0, %v4045
        %v4047 = vpop.f32.mrb[0].mxu0
        %4048 = vmatprep.mubr.bf16.mxu0 %v3562
        %4049 = vmatmul.mubr.bf16.gmra.mrb[0].mxu0 %v3339
        %v4050 = vpop.f32.mrb[0].mxu0
        %v4051 = vadd.f32 0.0, %v4050
        %v4052 = vpop.f32.mrb[0].mxu0
        %v4053 = vpop.f32.mrb[0].mxu0
        %v4054 = vadd.f32 0.0, %v4053
        %v4055 = vpop.f32.mrb[0].mxu0
        %4056 = vmatprep.mubr.bf16.mxu0 %v3574
        %4057 = vmatmul.mubr.bf16.gmra.mrb[0].mxu0 %v3340
        %v4058 = vpop.f32.mrb[0].mxu0
        %v4059 = vadd.f32 0.0, %v4058
        %v4060 = vpop.f32.mrb[0].mxu0
        %v4061 = vpop.f32.mrb[0].mxu0
        %v4062 = vadd.f32 0.0, %v4061
        %v4063 = vpop.f32.mrb[0].mxu0
        %4064 = vmatprep.mubr.bf16.mxu0 %v3586
        %4065 = vmatmul.mubr.bf16.gmra.mrb[0].mxu0 %v3341
        %v4066 = vpop.f32.mrb[0].mxu0
        %v4067 = vadd.f32 0.0, %v4066
        %v4068 = vpop.f32.mrb[0].mxu0
        %v4069 = vpop.f32.mrb[0].mxu0
        %v4070 = vadd.f32 0.0, %v4069
        %v4071 = vpop.f32.mrb[0].mxu0
        %4072 = vmatprep.mubr.bf16.mxu0 %v3598
        %4073 = vmatmul.mubr.bf16.gmra.mrb[0].mxu0 %v3342
        %v4074 = vpop.f32.mrb[0].mxu0
        %v4075 = vadd.f32 0.0, %v4074
        %v4076 = vpop.f32.mrb[0].mxu0
        %v4077 = vpop.f32.mrb[0].mxu0
        %v4078 = vadd.f32 0.0, %v4077
        %v4079 = vpop.f32.mrb[0].mxu0
        %4080 = vdwg.mxu0
        %4081 = vmatprep.subr.bf16.mxu0 0
        %4082 = vmatpush1.bf16.msra.mxu0 %v3888
        %4083 = vmatprep.subr.bf16.mxu0 0
        %4084 = vmatpush1.bf16.msra.mxu0 %v3889
        %4085 = vmatprep.subr.bf16.mxu0 0
        %4086 = vmatpush1.bf16.msra.mxu0 %v3890
        %4087 = vmatprep.subr.bf16.mxu0 0
        %4088 = vmatpush1.bf16.msra.mxu0 %v3891
        %4089 = vmatprep.subr.bf16.mxu0 0
        %4090 = vmatpush1.bf16.msra.mxu0 %v3892
        %4091 = vmatprep.subr.bf16.mxu0 0
        %4092 = vmatpush1.bf16.msra.mxu0 %v3893
        %4093 = vmatprep.subr.bf16.mxu0 0
        %4094 = vmatpush1.bf16.msra.mxu0 %v3894
        %4095 = vmatprep.subr.bf16.mxu0 0
        %4096 = vmatpush1.bf16.msra.mxu0 %v3895
        %4097 = vmatprep.subr.bf16.mxu0 0
        %4098 = vmatpush1.bf16.msra.mxu0 0
        %4099 = vmatprep.subr.bf16.mxu0 0
        %4100 = vmatpush1.bf16.msra.mxu0 0
        %4101 = vmatprep.subr.bf16.mxu0 0
        %4102 = vmatpush1.bf16.msra.mxu0 0
        %4103 = vmatprep.subr.bf16.mxu0 0
        %4104 = vmatpush1.bf16.msra.mxu0 0
        %4105 = vmatprep.subr.bf16.mxu0 0
        %4106 = vmatpush1.bf16.msra.mxu0 0
        %4107 = vmatprep.subr.bf16.mxu0 0
        %4108 = vmatpush1.bf16.msra.mxu0 0
        %4109 = vmatprep.subr.bf16.mxu0 0
        %4110 = vmatpush1.bf16.msra.mxu0 0
        %4111 = vmatprep.subr.bf16.mxu0 0
        %4112 = vmatpush1.bf16.msra.mxu0 0
        %4113 = vmatprep.mubr.bf16.mxu0 0
        %4114 = vmatmul.mubr.bf16.gmra.mrb[0].mxu0 %v3665
        %v4115 = vpop.f32.mrb[0].mxu0
        %v4116 = vadd.f32 %v3955, %v4115
        %v4117 = vpop.f32.mrb[0].mxu0
        %v4118 = vpop.f32.mrb[0].mxu0
        %v4119 = vadd.f32 %v3958, %v4118
        %v4120 = vpop.f32.mrb[0].mxu0
        %4121 = vmatprep.mubr.bf16.mxu0 0
        %4122 = vmatmul.mubr.bf16.gmra.mrb[0].mxu0 %v3668
        %v4123 = vpop.f32.mrb[0].mxu0
        %v4124 = vadd.f32 %v3963, %v4123
        %v4125 = vpop.f32.mrb[0].mxu0
        %v4126 = vpop.f32.mrb[0].mxu0
        %v4127 = vadd.f32 %v3966, %v4126
        %v4128 = vpop.f32.mrb[0].mxu0
        %4129 = vmatprep.mubr.bf16.mxu0 0
        %4130 = vmatmul.mubr.bf16.gmra.mrb[0].mxu0 %v3671
        %v4131 = vpop.f32.mrb[0].mxu0
        %v4132 = vadd.f32 %v3971, %v4131
        %v4133 = vpop.f32.mrb[0].mxu0
        %v4134 = vpop.f32.mrb[0].mxu0
        %v4135 = vadd.f32 %v3974, %v4134
        %v4136 = vpop.f32.mrb[0].mxu0
        %4137 = vmatprep.mubr.bf16.mxu0 0
        %4138 = vmatmul.mubr.bf16.gmra.mrb[0].mxu0 %v3674
        %v4139 = vpop.f32.mrb[0].mxu0
        %v4140 = vadd.f32 %v3979, %v4139
        %v4141 = vpop.f32.mrb[0].mxu0
        %v4142 = vpop.f32.mrb[0].mxu0
        %v4143 = vadd.f32 %v3982, %v4142
        %v4144 = vpop.f32.mrb[0].mxu0
        %4145 = vmatprep.mubr.bf16.mxu0 0
        %4146 = vmatmul.mubr.bf16.gmra.mrb[0].mxu0 %v3677
        %v4147 = vpop.f32.mrb[0].mxu0
        %v4148 = vadd.f32 %v3987, %v4147
        %v4149 = vpop.f32.mrb[0].mxu0
        %v4150 = vpop.f32.mrb[0].mxu0
        %v4151 = vadd.f32 %v3990, %v4150
        %v4152 = vpop.f32.mrb[0].mxu0
        %4153 = vmatprep.mubr.bf16.mxu0 0
        %4154 = vmatmul.mubr.bf16.gmra.mrb[0].mxu0 %v3680
        %v4155 = vpop.f32.mrb[0].mxu0
        %v4156 = vadd.f32 %v3995, %v4155
        %v4157 = vpop.f32.mrb[0].mxu0
        %v4158 = vpop.f32.mrb[0].mxu0
        %v4159 = vadd.f32 %v3998, %v4158
        %v4160 = vpop.f32.mrb[0].mxu0
        %4161 = vmatprep.mubr.bf16.mxu0 0
        %4162 = vmatmul.mubr.bf16.gmra.mrb[0].mxu0 %v3683
        %v4163 = vpop.f32.mrb[0].mxu0
        %v4164 = vadd.f32 %v4003, %v4163
        %v4165 = vpop.f32.mrb[0].mxu0
        %v4166 = vpop.f32.mrb[0].mxu0
        %v4167 = vadd.f32 %v4006, %v4166
        %v4168 = vpop.f32.mrb[0].mxu0
        %4169 = vmatprep.mubr.bf16.mxu0 0
        %4170 = vmatmul.mubr.bf16.gmra.mrb[0].mxu0 %v3686
        %v4171 = vpop.f32.mrb[0].mxu0
        %v4172 = vadd.f32 %v4011, %v4171
        %v4173 = vpop.f32.mrb[0].mxu0
        %v4174 = vpop.f32.mrb[0].mxu0
        %v4175 = vadd.f32 %v4014, %v4174
        %v4176 = vpop.f32.mrb[0].mxu0
        %4177 = vmatprep.mubr.bf16.mxu0 0
        %4178 = vmatmul.mubr.bf16.gmra.mrb[0].mxu0 %v3689
        %v4179 = vpop.f32.mrb[0].mxu0
        %v4180 = vadd.f32 %v4019, %v4179
        %v4181 = vpop.f32.mrb[0].mxu0
        %v4182 = vpop.f32.mrb[0].mxu0
        %v4183 = vadd.f32 %v4022, %v4182
        %v4184 = vpop.f32.mrb[0].mxu0
        %4185 = vmatprep.mubr.bf16.mxu0 0
        %4186 = vmatmul.mubr.bf16.gmra.mrb[0].mxu0 %v3692
        %v4187 = vpop.f32.mrb[0].mxu0
        %v4188 = vadd.f32 %v4027, %v4187
        %v4189 = vpop.f32.mrb[0].mxu0
        %v4190 = vpop.f32.mrb[0].mxu0
        %v4191 = vadd.f32 %v4030, %v4190
        %v4192 = vpop.f32.mrb[0].mxu0
        %4193 = vmatprep.mubr.bf16.mxu0 0
        %4194 = vmatmul.mubr.bf16.gmra.mrb[0].mxu0 %v3695
        %v4195 = vpop.f32.mrb[0].mxu0
        %v4196 = vadd.f32 %v4035, %v4195
        %v4197 = vpop.f32.mrb[0].mxu0
        %v4198 = vpop.f32.mrb[0].mxu0
        %v4199 = vadd.f32 %v4038, %v4198
        %v4200 = vpop.f32.mrb[0].mxu0
        %4201 = vmatprep.mubr.bf16.mxu0 0
        %4202 = vmatmul.mubr.bf16.gmra.mrb[0].mxu0 %v3698
        %v4203 = vpop.f32.mrb[0].mxu0
        %v4204 = vadd.f32 %v4043, %v4203
        %v4205 = vpop.f32.mrb[0].mxu0
        %v4206 = vpop.f32.mrb[0].mxu0
        %v4207 = vadd.f32 %v4046, %v4206
        %v4208 = vpop.f32.mrb[0].mxu0
        %4209 = vmatprep.mubr.bf16.mxu0 0
        %4210 = vmatmul.mubr.bf16.gmra.mrb[0].mxu0 %v3701
        %v4211 = vpop.f32.mrb[0].mxu0
        %v4212 = vadd.f32 %v4051, %v4211
        %v4213 = vpop.f32.mrb[0].mxu0
        %v4214 = vpop.f32.mrb[0].mxu0
        %v4215 = vadd.f32 %v4054, %v4214
        %v4216 = vpop.f32.mrb[0].mxu0
        %4217 = vmatprep.mubr.bf16.mxu0 0
        %4218 = vmatmul.mubr.bf16.gmra.mrb[0].mxu0 %v3704
        %v4219 = vpop.f32.mrb[0].mxu0
        %v4220 = vadd.f32 %v4059, %v4219
        %v4221 = vpop.f32.mrb[0].mxu0
        %v4222 = vpop.f32.mrb[0].mxu0
        %v4223 = vadd.f32 %v4062, %v4222
        %v4224 = vpop.f32.mrb[0].mxu0
        %4225 = vmatprep.mubr.bf16.mxu0 0
        %4226 = vmatmul.mubr.bf16.gmra.mrb[0].mxu0 %v3707
        %v4227 = vpop.f32.mrb[0].mxu0
        %v4228 = vadd.f32 %v4067, %v4227
        %v4229 = vpop.f32.mrb[0].mxu0
        %v4230 = vpop.f32.mrb[0].mxu0
        %v4231 = vadd.f32 %v4070, %v4230
        %v4232 = vpop.f32.mrb[0].mxu0
        %4233 = vmatprep.mubr.bf16.mxu0 0
        %4234 = vmatmul.mubr.bf16.gmra.mrb[0].mxu0 %v3710
        %v4235 = vpop.f32.mrb[0].mxu0
        %v4236 = vadd.f32 %v4075, %v4235
        %v4237 = vpop.f32.mrb[0].mxu0
        %v4238 = vpop.f32.mrb[0].mxu0
        %v4239 = vadd.f32 %v4078, %v4238
        %v4240 = vpop.f32.mrb[0].mxu0
        %4241 = vdwg.mxu0
        %v4242 = vadd.f32 %v3072, %v4116
        %v4243 = vadd.f32 %v3075, %v4119
        %v4244 = vadd.f32 %v3080, %v4124
        %v4245 = vadd.f32 %v3083, %v4127
        %v4246 = vadd.f32 %v3088, %v4132
        %v4247 = vadd.f32 %v3091, %v4135
        %v4248 = vadd.f32 %v3096, %v4140
        %v4249 = vadd.f32 %v3099, %v4143
        %v4250 = vadd.f32 %v3104, %v4148
        %v4251 = vadd.f32 %v3107, %v4151
        %v4252 = vadd.f32 %v3112, %v4156
        %v4253 = vadd.f32 %v3115, %v4159
        %v4254 = vadd.f32 %v3120, %v4164
        %v4255 = vadd.f32 %v3123, %v4167
        %v4256 = vadd.f32 %v3128, %v4172
        %v4257 = vadd.f32 %v3131, %v4175
        %v4258 = vadd.f32 %v3136, %v4180
        %v4259 = vadd.f32 %v3139, %v4183
        %v4260 = vadd.f32 %v3144, %v4188
        %v4261 = vadd.f32 %v3147, %v4191
        %v4262 = vadd.f32 %v3152, %v4196
        %v4263 = vadd.f32 %v3155, %v4199
        %v4264 = vadd.f32 %v3160, %v4204
        %v4265 = vadd.f32 %v3163, %v4207
        %v4266 = vadd.f32 %v3168, %v4212
        %v4267 = vadd.f32 %v3171, %v4215
        %v4268 = vadd.f32 %v3176, %v4220
        %v4269 = vadd.f32 %v3179, %v4223
        %v4270 = vadd.f32 %v3184, %v4228
        %v4271 = vadd.f32 %v3187, %v4231
        %v4272 = vadd.f32 %v3192, %v4236
        %v4273 = vadd.f32 %v3195, %v4239
        %v4274 = vld [vmem:[%s310] sm:$0x1]
        %v4276 = vlaneseq
        %v4277 = vshrl.u32 %v4276, 7
        %v4278 = vsub.s32 0, %v4277
        %v4279 = vrot.slane %v4274, %v4278
        %v4281 = vadd.f32 %v4242, %v4279
        %v4282 = vadd.f32 %v4243, %v4279
        %v4283 = vadd.f32 %v4244, %v4279
        %v4284 = vadd.f32 %v4245, %v4279
        %v4285 = vadd.f32 %v4246, %v4279
        %v4286 = vadd.f32 %v4247, %v4279
        %v4287 = vadd.f32 %v4248, %v4279
        %v4288 = vadd.f32 %v4249, %v4279
        %v4289 = vadd.f32 %v4250, %v4279
        %v4290 = vadd.f32 %v4251, %v4279
        %v4291 = vadd.f32 %v4252, %v4279
        %v4292 = vadd.f32 %v4253, %v4279
        %v4293 = vadd.f32 %v4254, %v4279
        %v4294 = vadd.f32 %v4255, %v4279
        %v4295 = vadd.f32 %v4256, %v4279
        %v4296 = vadd.f32 %v4257, %v4279
        %v4297 = vadd.f32 %v4258, %v4279
        %v4298 = vadd.f32 %v4259, %v4279
        %v4299 = vadd.f32 %v4260, %v4279
        %v4300 = vadd.f32 %v4261, %v4279
        %v4301 = vadd.f32 %v4262, %v4279
        %v4302 = vadd.f32 %v4263, %v4279
        %v4303 = vadd.f32 %v4264, %v4279
        %v4304 = vadd.f32 %v4265, %v4279
        %v4305 = vadd.f32 %v4266, %v4279
        %v4306 = vadd.f32 %v4267, %v4279
        %v4307 = vadd.f32 %v4268, %v4279
        %v4308 = vadd.f32 %v4269, %v4279
        %v4309 = vadd.f32 %v4270, %v4279
        %v4310 = vadd.f32 %v4271, %v4279
        %v4311 = vadd.f32 %v4272, %v4279
        %v4312 = vadd.f32 %v4273, %v4279
        %s4313 = smul.u32 %s29, 8
        %s4314 = ssub.s32 %s4313, 4
        %v4315 = vstv %s4314
        %v4316 = vadd.s32 %v4315, 1
        %v4317 = vadd.s32 %v4315, 2
        %v4318 = vadd.s32 %v4315, 3
        %v4319 = vadd.s32 %v4315, 4
        %v4320 = vadd.s32 %v4315, 5
        %v4321 = vadd.s32 %v4315, 6
        %v4322 = vadd.s32 %v4315, 7
        %v4323 = vadd.s32 %v4315, 8
        %v4324 = vadd.s32 %v4315, 9
        %v4325 = vadd.s32 %v4315, 10
        %v4326 = vadd.s32 %v4315, 11
        %v4327 = vadd.s32 %v4315, 12
        %v4328 = vadd.s32 %v4315, 13
        %v4329 = vadd.s32 %v4315, 14
        %v4330 = vadd.s32 %v4315, 15
        %vm4331 = vcmp.ge.s32.totalorder %v4315, 0
        %vm4332 = vcmp.ge.s32.totalorder %v4316, 0
        %vm4333 = vcmp.ge.s32.totalorder %v4317, 0
        %vm4334 = vcmp.ge.s32.totalorder %v4318, 0
        %vm4335 = vcmp.ge.s32.totalorder %v4319, 0
        %vm4336 = vcmp.ge.s32.totalorder %v4320, 0
        %vm4337 = vcmp.ge.s32.totalorder %v4321, 0
        %vm4338 = vcmp.ge.s32.totalorder %v4322, 0
        %vm4339 = vcmp.ge.s32.totalorder %v4323, 0
        %vm4340 = vcmp.ge.s32.totalorder %v4324, 0
        %vm4341 = vcmp.ge.s32.totalorder %v4325, 0
        %vm4342 = vcmp.ge.s32.totalorder %v4326, 0
        %vm4343 = vcmp.ge.s32.totalorder %v4327, 0
        %vm4344 = vcmp.ge.s32.totalorder %v4328, 0
        %vm4345 = vcmp.ge.s32.totalorder %v4329, 0
        %vm4346 = vcmp.ge.s32.totalorder %v4330, 0
        %vm4347 = vcmp.lt.s32.totalorder %v4315, 16
        %vm4348 = vcmp.lt.s32.totalorder %v4316, 16
        %vm4349 = vcmp.lt.s32.totalorder %v4317, 16
        %vm4350 = vcmp.lt.s32.totalorder %v4318, 16
        %vm4351 = vcmp.lt.s32.totalorder %v4319, 16
        %vm4352 = vcmp.lt.s32.totalorder %v4320, 16
        %vm4353 = vcmp.lt.s32.totalorder %v4321, 16
        %vm4354 = vcmp.lt.s32.totalorder %v4322, 16
        %vm4355 = vcmp.lt.s32.totalorder %v4323, 16
        %vm4356 = vcmp.lt.s32.totalorder %v4324, 16
        %vm4357 = vcmp.lt.s32.totalorder %v4325, 16
        %vm4358 = vcmp.lt.s32.totalorder %v4326, 16
        %vm4359 = vcmp.lt.s32.totalorder %v4327, 16
        %vm4360 = vcmp.lt.s32.totalorder %v4328, 16
        %vm4361 = vcmp.lt.s32.totalorder %v4329, 16
        %vm4362 = vcmp.lt.s32.totalorder %v4330, 16
        %vm4363 = vmand %vm4331, %vm4347
        %vm4364 = vmand %vm4332, %vm4348
        %vm4365 = vmand %vm4333, %vm4349
        %vm4366 = vmand %vm4334, %vm4350
        %vm4367 = vmand %vm4335, %vm4351
        %vm4368 = vmand %vm4336, %vm4352
        %vm4369 = vmand %vm4337, %vm4353
        %vm4370 = vmand %vm4338, %vm4354
        %vm4371 = vmand %vm4339, %vm4355
        %vm4372 = vmand %vm4340, %vm4356
        %vm4373 = vmand %vm4341, %vm4357
        %vm4374 = vmand %vm4342, %vm4358
        %vm4375 = vmand %vm4343, %vm4359
        %vm4376 = vmand %vm4344, %vm4360
        %vm4377 = vmand %vm4345, %vm4361
        %vm4378 = vmand %vm4346, %vm4362
        %p4379 = scmp.eq.s32.totalorder %s30, 3
        %vm4380 = vcmp.ge.f32.partialorder %v4281, 0.0
        %vm4381 = vcmp.ge.f32.partialorder %v4282, 0.0
        %vm4382 = vcmp.ge.f32.partialorder %v4283, 0.0
        %vm4383 = vcmp.ge.f32.partialorder %v4284, 0.0
        %vm4384 = vcmp.ge.f32.partialorder %v4285, 0.0
        %vm4385 = vcmp.ge.f32.partialorder %v4286, 0.0
        %vm4386 = vcmp.ge.f32.partialorder %v4287, 0.0
        %vm4387 = vcmp.ge.f32.partialorder %v4288, 0.0
        %vm4388 = vcmp.ge.f32.partialorder %v4289, 0.0
        %vm4389 = vcmp.ge.f32.partialorder %v4290, 0.0
        %vm4390 = vcmp.ge.f32.partialorder %v4291, 0.0
        %vm4391 = vcmp.ge.f32.partialorder %v4292, 0.0
        %vm4392 = vcmp.ge.f32.partialorder %v4293, 0.0
        %vm4393 = vcmp.ge.f32.partialorder %v4294, 0.0
        %vm4394 = vcmp.ge.f32.partialorder %v4295, 0.0
        %vm4395 = vcmp.ge.f32.partialorder %v4296, 0.0
        %vm4396 = vcmp.ge.f32.partialorder %v4297, 0.0
        %vm4397 = vcmp.ge.f32.partialorder %v4298, 0.0
        %vm4398 = vcmp.ge.f32.partialorder %v4299, 0.0
        %vm4399 = vcmp.ge.f32.partialorder %v4300, 0.0
        %vm4400 = vcmp.ge.f32.partialorder %v4301, 0.0
        %vm4401 = vcmp.ge.f32.partialorder %v4302, 0.0
        %vm4402 = vcmp.ge.f32.partialorder %v4303, 0.0
        %vm4403 = vcmp.ge.f32.partialorder %v4304, 0.0
        %vm4404 = vcmp.ge.f32.partialorder %v4305, 0.0
        %vm4405 = vcmp.ge.f32.partialorder %v4306, 0.0
        %vm4406 = vcmp.ge.f32.partialorder %v4307, 0.0
        %vm4407 = vcmp.ge.f32.partialorder %v4308, 0.0
        %vm4408 = vcmp.ge.f32.partialorder %v4309, 0.0
        %vm4409 = vcmp.ge.f32.partialorder %v4310, 0.0
        %vm4410 = vcmp.ge.f32.partialorder %v4311, 0.0
        %vm4411 = vcmp.ge.f32.partialorder %v4312, 0.0
        %v4412 = vld [vmem:[%s318] sm:$0x1]
        %v4414 = vlaneseq
        %v4415 = vshrl.u32 %v4414, 7
        %v4416 = vsub.s32 0, %v4415
        %v4417 = vrot.slane %v4412, %v4416
        %v4419 = vmul.f32 %v4417, %v4281
        %v4420 = vmul.f32 %v4417, %v4282
        %v4421 = vmul.f32 %v4417, %v4283
        %v4422 = vmul.f32 %v4417, %v4284
        %v4423 = vmul.f32 %v4417, %v4285
        %v4424 = vmul.f32 %v4417, %v4286
        %v4425 = vmul.f32 %v4417, %v4287
        %v4426 = vmul.f32 %v4417, %v4288
        %v4427 = vmul.f32 %v4417, %v4289
        %v4428 = vmul.f32 %v4417, %v4290
        %v4429 = vmul.f32 %v4417, %v4291
        %v4430 = vmul.f32 %v4417, %v4292
        %v4431 = vmul.f32 %v4417, %v4293
        %v4432 = vmul.f32 %v4417, %v4294
        %v4433 = vmul.f32 %v4417, %v4295
        %v4434 = vmul.f32 %v4417, %v4296
        %v4435 = vmul.f32 %v4417, %v4297
        %v4436 = vmul.f32 %v4417, %v4298
        %v4437 = vmul.f32 %v4417, %v4299
        %v4438 = vmul.f32 %v4417, %v4300
        %v4439 = vmul.f32 %v4417, %v4301
        %v4440 = vmul.f32 %v4417, %v4302
        %v4441 = vmul.f32 %v4417, %v4303
        %v4442 = vmul.f32 %v4417, %v4304
        %v4443 = vmul.f32 %v4417, %v4305
        %v4444 = vmul.f32 %v4417, %v4306
        %v4445 = vmul.f32 %v4417, %v4307
        %v4446 = vmul.f32 %v4417, %v4308
        %v4447 = vmul.f32 %v4417, %v4309
        %v4448 = vmul.f32 %v4417, %v4310
        %v4449 = vmul.f32 %v4417, %v4311
        %v4450 = vmul.f32 %v4417, %v4312
        %v4451 = vsel %vm4380, %v4281, %v4419
        %v4452 = vsel %vm4381, %v4282, %v4420
        %v4453 = vsel %vm4382, %v4283, %v4421
        %v4454 = vsel %vm4383, %v4284, %v4422
        %v4455 = vsel %vm4384, %v4285, %v4423
        %v4456 = vsel %vm4385, %v4286, %v4424
        %v4457 = vsel %vm4386, %v4287, %v4425
        %v4458 = vsel %vm4387, %v4288, %v4426
        %v4459 = vsel %vm4388, %v4289, %v4427
        %v4460 = vsel %vm4389, %v4290, %v4428
        %v4461 = vsel %vm4390, %v4291, %v4429
        %v4462 = vsel %vm4391, %v4292, %v4430
        %v4463 = vsel %vm4392, %v4293, %v4431
        %v4464 = vsel %vm4393, %v4294, %v4432
        %v4465 = vsel %vm4394, %v4295, %v4433
        %v4466 = vsel %vm4395, %v4296, %v4434
        %v4467 = vsel %vm4396, %v4297, %v4435
        %v4468 = vsel %vm4397, %v4298, %v4436
        %v4469 = vsel %vm4398, %v4299, %v4437
        %v4470 = vsel %vm4399, %v4300, %v4438
        %v4471 = vsel %vm4400, %v4301, %v4439
        %v4472 = vsel %vm4401, %v4302, %v4440
        %v4473 = vsel %vm4402, %v4303, %v4441
        %v4474 = vsel %vm4403, %v4304, %v4442
        %v4475 = vsel %vm4404, %v4305, %v4443
        %v4476 = vsel %vm4405, %v4306, %v4444
        %v4477 = vsel %vm4406, %v4307, %v4445
        %v4478 = vsel %vm4407, %v4308, %v4446
        %v4479 = vsel %vm4408, %v4309, %v4447
        %v4480 = vsel %vm4409, %v4310, %v4448
        %v4481 = vsel %vm4410, %v4311, %v4449
        %v4482 = vsel %vm4411, %v4312, %v4450
        %v4483 = vsel %vm4363, 1, 0
        %v4484 = vsel %vm4364, 1, 0
        %v4485 = vsel %vm4365, 1, 0
        %v4486 = vsel %vm4366, 1, 0
        %v4487 = vsel %vm4367, 1, 0
        %v4488 = vsel %vm4368, 1, 0
        %v4489 = vsel %vm4369, 1, 0
        %v4490 = vsel %vm4370, 1, 0
        %v4491 = vsel %vm4371, 1, 0
        %v4492 = vsel %vm4372, 1, 0
        %v4493 = vsel %vm4373, 1, 0
        %v4494 = vsel %vm4374, 1, 0
        %v4495 = vsel %vm4375, 1, 0
        %v4496 = vsel %vm4376, 1, 0
        %v4497 = vsel %vm4377, 1, 0
        %v4498 = vsel %vm4378, 1, 0
        %vm4499 = vcmp.eq.s32.totalorder %v4483, 1
        %vm4500 = vcmp.eq.s32.totalorder %v4484, 1
        %vm4501 = vcmp.eq.s32.totalorder %v4485, 1
        %vm4502 = vcmp.eq.s32.totalorder %v4486, 1
        %vm4503 = vcmp.eq.s32.totalorder %v4487, 1
        %vm4504 = vcmp.eq.s32.totalorder %v4488, 1
        %vm4505 = vcmp.eq.s32.totalorder %v4489, 1
        %vm4506 = vcmp.eq.s32.totalorder %v4490, 1
        %vm4507 = vcmp.eq.s32.totalorder %v4491, 1
        %vm4508 = vcmp.eq.s32.totalorder %v4492, 1
        %vm4509 = vcmp.eq.s32.totalorder %v4493, 1
        %vm4510 = vcmp.eq.s32.totalorder %v4494, 1
        %vm4511 = vcmp.eq.s32.totalorder %v4495, 1
        %vm4512 = vcmp.eq.s32.totalorder %v4496, 1
        %vm4513 = vcmp.eq.s32.totalorder %v4497, 1
        %vm4514 = vcmp.eq.s32.totalorder %v4498, 1
        %v4515 = vsel %vm4499, %v4451, 0.0
        %v4516 = vsel %vm4499, %v4452, 0.0
        %v4517 = vsel %vm4500, %v4453, 0.0
        %v4518 = vsel %vm4500, %v4454, 0.0
        %v4519 = vsel %vm4501, %v4455, 0.0
        %v4520 = vsel %vm4501, %v4456, 0.0
        %v4521 = vsel %vm4502, %v4457, 0.0
        %v4522 = vsel %vm4502, %v4458, 0.0
        %v4523 = vsel %vm4503, %v4459, 0.0
        %v4524 = vsel %vm4503, %v4460, 0.0
        %v4525 = vsel %vm4504, %v4461, 0.0
        %v4526 = vsel %vm4504, %v4462, 0.0
        %v4527 = vsel %vm4505, %v4463, 0.0
        %v4528 = vsel %vm4505, %v4464, 0.0
        %v4529 = vsel %vm4506, %v4465, 0.0
        %v4530 = vsel %vm4506, %v4466, 0.0
        %v4531 = vsel %vm4507, %v4467, 0.0
        %v4532 = vsel %vm4507, %v4468, 0.0
        %v4533 = vsel %vm4508, %v4469, 0.0
        %v4534 = vsel %vm4508, %v4470, 0.0
        %v4535 = vsel %vm4509, %v4471, 0.0
        %v4536 = vsel %vm4509, %v4472, 0.0
        %v4537 = vsel %vm4510, %v4473, 0.0
        %v4538 = vsel %vm4510, %v4474, 0.0
        %v4539 = vsel %vm4511, %v4475, 0.0
        %v4540 = vsel %vm4511, %v4476, 0.0
        %v4541 = vsel %vm4512, %v4477, 0.0
        %v4542 = vsel %vm4512, %v4478, 0.0
        %v4543 = vsel %vm4513, %v4479, 0.0
        %v4544 = vsel %vm4513, %v4480, 0.0
        %v4545 = vsel %vm4514, %v4481, 0.0
        %v4546 = vsel %vm4514, %v4482, 0.0
        %v4547 = vpack.c.bf16 %v4516, %v4515
        %v4548 = vpack.c.bf16 %v4518, %v4517
        %v4549 = vpack.c.bf16 %v4520, %v4519
        %v4550 = vpack.c.bf16 %v4522, %v4521
        %v4551 = vpack.c.bf16 %v4524, %v4523
        %v4552 = vpack.c.bf16 %v4526, %v4525
        %v4553 = vpack.c.bf16 %v4528, %v4527
        %v4554 = vpack.c.bf16 %v4530, %v4529
        %v4555 = vpack.c.bf16 %v4532, %v4531
        %v4556 = vpack.c.bf16 %v4534, %v4533
        %v4557 = vpack.c.bf16 %v4536, %v4535
        %v4558 = vpack.c.bf16 %v4538, %v4537
        %v4559 = vpack.c.bf16 %v4540, %v4539
        %v4560 = vpack.c.bf16 %v4542, %v4541
        %v4561 = vpack.c.bf16 %v4544, %v4543
        %v4562 = vpack.c.bf16 %v4546, %v4545
        %p4563 = scmp.ne.s32.totalorder %s30, 3
        %p4564 = scmp.eq.s32.totalorder %s400, 0
        %p4565 = pnand %p4563, %p4564
        %p4566 = pneg %p4565
        // Predicated region
        $region61: #{_lambda_.1} parent=39 // pred_check
          _
        $region62: #{_lambda_.1} parent=39 // pred_check_branch
          %4568 = sbr.rel (%p4565) target = $region64
        $region63: #{_lambda_.1} parent=39 // pred_region
          %v4585 = vunpack.c.l.b16 %v4547
          %v4586 = vunpack.c.h.b16 %v4547
          %v4587 = vunpack.c.l.b16 %v4548
          %v4588 = vunpack.c.h.b16 %v4548
          %v4589 = vunpack.c.l.b16 %v4549
          %v4590 = vunpack.c.h.b16 %v4549
          %v4591 = vunpack.c.l.b16 %v4550
          %v4592 = vunpack.c.h.b16 %v4550
          %v4593 = vunpack.c.l.b16 %v4551
          %v4594 = vunpack.c.h.b16 %v4551
          %v4595 = vunpack.c.l.b16 %v4552
          %v4596 = vunpack.c.h.b16 %v4552
          %v4597 = vunpack.c.l.b16 %v4553
          %v4598 = vunpack.c.h.b16 %v4553
          %v4599 = vunpack.c.l.b16 %v4554
          %v4600 = vunpack.c.h.b16 %v4554
          %v4601 = vunpack.c.l.b16 %v4555
          %v4602 = vunpack.c.h.b16 %v4555
          %v4603 = vunpack.c.l.b16 %v4556
          %v4604 = vunpack.c.h.b16 %v4556
          %v4605 = vunpack.c.l.b16 %v4557
          %v4606 = vunpack.c.h.b16 %v4557
          %v4607 = vunpack.c.l.b16 %v4558
          %v4608 = vunpack.c.h.b16 %v4558
          %v4609 = vunpack.c.l.b16 %v4559
          %v4610 = vunpack.c.h.b16 %v4559
          %v4611 = vunpack.c.l.b16 %v4560
          %v4612 = vunpack.c.h.b16 %v4560
          %v4613 = vunpack.c.l.b16 %v4561
          %v4614 = vunpack.c.h.b16 %v4561
          %v4615 = vunpack.c.l.b16 %v4562
          %v4616 = vunpack.c.h.b16 %v4562
          %v4617 = vpack.c.b16 %v4585, %v4585
          %v4618 = vpack.c.b16 %v4586, %v4586
          %v4619 = vpack.c.b16 %v4587, %v4587
          %v4620 = vpack.c.b16 %v4588, %v4588
          %v4621 = vpack.c.b16 %v4589, %v4589
          %v4622 = vpack.c.b16 %v4590, %v4590
          %v4623 = vpack.c.b16 %v4591, %v4591
          %v4624 = vpack.c.b16 %v4592, %v4592
          %v4625 = vpack.c.b16 %v4593, %v4593
          %v4626 = vpack.c.b16 %v4594, %v4594
          %v4627 = vpack.c.b16 %v4595, %v4595
          %v4628 = vpack.c.b16 %v4596, %v4596
          %v4629 = vpack.c.b16 %v4597, %v4597
          %v4630 = vpack.c.b16 %v4598, %v4598
          %v4631 = vpack.c.b16 %v4599, %v4599
          %v4632 = vpack.c.b16 %v4600, %v4600
          %v4633 = vpack.c.b16 %v4601, %v4601
          %v4634 = vpack.c.b16 %v4602, %v4602
          %v4635 = vpack.c.b16 %v4603, %v4603
          %v4636 = vpack.c.b16 %v4604, %v4604
          %v4637 = vpack.c.b16 %v4605, %v4605
          %v4638 = vpack.c.b16 %v4606, %v4606
          %v4639 = vpack.c.b16 %v4607, %v4607
          %v4640 = vpack.c.b16 %v4608, %v4608
          %v4641 = vpack.c.b16 %v4609, %v4609
          %v4642 = vpack.c.b16 %v4610, %v4610
          %v4643 = vpack.c.b16 %v4611, %v4611
          %v4644 = vpack.c.b16 %v4612, %v4612
          %v4645 = vpack.c.b16 %v4613, %v4613
          %v4646 = vpack.c.b16 %v4614, %v4614
          %v4647 = vpack.c.b16 %v4615, %v4615
          %v4648 = vpack.c.b16 %v4616, %v4616
          %vm4649 = vsmask.f32 256
          %vm4650 = vsmask.f32 4368
          %vm4651 = vmor %vm4649, %vm4650
          %v4653 = vshrl.u32 %v4617, 16
          %v4655 = vrot.slane %v4653, 7
          %v4656 = vshll.u32 %v4617, 16
          %v4658 = vor.u32 %v4655, %v4656
          %v4659 = vrot.slane %v4655, 4
          %v4661 = vshrl.u32 %v4618, 16
          %v4663 = vrot.slane %v4661, 7
          %v4664 = vshll.u32 %v4618, 16
          %v4666 = vor.u32 %v4663, %v4664
          %v4667 = vsel %vm4651, %v4659, %v4666
          %v4668 = vrot.slane %v4663, 4
          %v4670 = vshrl.u32 %v4619, 16
          %v4672 = vrot.slane %v4670, 7
          %v4673 = vshll.u32 %v4619, 16
          %v4675 = vor.u32 %v4672, %v4673
          %v4676 = vrot.slane %v4672, 4
          %v4678 = vshrl.u32 %v4620, 16
          %v4680 = vrot.slane %v4678, 7
          %v4681 = vshll.u32 %v4620, 16
          %v4683 = vor.u32 %v4680, %v4681
          %v4684 = vsel %vm4651, %v4676, %v4683
          %v4685 = vrot.slane %v4680, 4
          %v4687 = vshrl.u32 %v4621, 16
          %v4689 = vrot.slane %v4687, 7
          %v4690 = vshll.u32 %v4621, 16
          %v4692 = vor.u32 %v4689, %v4690
          %v4693 = vrot.slane %v4689, 4
          %v4695 = vshrl.u32 %v4622, 16
          %v4697 = vrot.slane %v4695, 7
          %v4698 = vshll.u32 %v4622, 16
          %v4700 = vor.u32 %v4697, %v4698
          %v4701 = vsel %vm4651, %v4693, %v4700
          %v4702 = vrot.slane %v4697, 4
          %v4704 = vshrl.u32 %v4623, 16
          %v4706 = vrot.slane %v4704, 7
          %v4707 = vshll.u32 %v4623, 16
          %v4709 = vor.u32 %v4706, %v4707
          %v4710 = vrot.slane %v4706, 4
          %v4712 = vshrl.u32 %v4624, 16
          %v4714 = vrot.slane %v4712, 7
          %v4715 = vshll.u32 %v4624, 16
          %v4717 = vor.u32 %v4714, %v4715
          %v4718 = vsel %vm4651, %v4710, %v4717
          %v4719 = vrot.slane %v4714, 4
          %v4721 = vshrl.u32 %v4625, 16
          %v4723 = vrot.slane %v4721, 7
          %v4724 = vshll.u32 %v4625, 16
          %v4726 = vor.u32 %v4723, %v4724
          %v4727 = vrot.slane %v4723, 4
          %v4729 = vshrl.u32 %v4626, 16
          %v4731 = vrot.slane %v4729, 7
          %v4732 = vshll.u32 %v4626, 16
          %v4734 = vor.u32 %v4731, %v4732
          %v4735 = vsel %vm4651, %v4727, %v4734
          %v4736 = vrot.slane %v4731, 4
          %v4738 = vshrl.u32 %v4627, 16
          %v4740 = vrot.slane %v4738, 7
          %v4741 = vshll.u32 %v4627, 16
          %v4743 = vor.u32 %v4740, %v4741
          %v4744 = vrot.slane %v4740, 4
          %v4746 = vshrl.u32 %v4628, 16
          %v4748 = vrot.slane %v4746, 7
          %v4749 = vshll.u32 %v4628, 16
          %v4751 = vor.u32 %v4748, %v4749
          %v4752 = vsel %vm4651, %v4744, %v4751
          %v4753 = vrot.slane %v4748, 4
          %v4755 = vshrl.u32 %v4629, 16
          %v4757 = vrot.slane %v4755, 7
          %v4758 = vshll.u32 %v4629, 16
          %v4760 = vor.u32 %v4757, %v4758
          %v4761 = vrot.slane %v4757, 4
          %v4763 = vshrl.u32 %v4630, 16
          %v4765 = vrot.slane %v4763, 7
          %v4766 = vshll.u32 %v4630, 16
          %v4768 = vor.u32 %v4765, %v4766
          %v4769 = vsel %vm4651, %v4761, %v4768
          %v4770 = vrot.slane %v4765, 4
          %v4772 = vshrl.u32 %v4631, 16
          %v4774 = vrot.slane %v4772, 7
          %v4775 = vshll.u32 %v4631, 16
          %v4777 = vor.u32 %v4774, %v4775
          %v4778 = vrot.slane %v4774, 4
          %v4780 = vshrl.u32 %v4632, 16
          %v4782 = vrot.slane %v4780, 7
          %v4783 = vshll.u32 %v4632, 16
          %v4785 = vor.u32 %v4782, %v4783
          %v4786 = vsel %vm4651, %v4778, %v4785
          %v4787 = vrot.slane %v4782, 4
          %v4789 = vshrl.u32 %v4633, 16
          %v4791 = vrot.slane %v4789, 7
          %v4792 = vshll.u32 %v4633, 16
          %v4794 = vor.u32 %v4791, %v4792
          %v4795 = vrot.slane %v4791, 4
          %v4797 = vshrl.u32 %v4634, 16
          %v4799 = vrot.slane %v4797, 7
          %v4800 = vshll.u32 %v4634, 16
          %v4802 = vor.u32 %v4799, %v4800
          %v4803 = vsel %vm4651, %v4795, %v4802
          %v4804 = vrot.slane %v4799, 4
          %v4806 = vshrl.u32 %v4635, 16
          %v4808 = vrot.slane %v4806, 7
          %v4809 = vshll.u32 %v4635, 16
          %v4811 = vor.u32 %v4808, %v4809
          %v4812 = vrot.slane %v4808, 4
          %v4814 = vshrl.u32 %v4636, 16
          %v4816 = vrot.slane %v4814, 7
          %v4817 = vshll.u32 %v4636, 16
          %v4819 = vor.u32 %v4816, %v4817
          %v4820 = vsel %vm4651, %v4812, %v4819
          %v4821 = vrot.slane %v4816, 4
          %v4823 = vshrl.u32 %v4637, 16
          %v4825 = vrot.slane %v4823, 7
          %v4826 = vshll.u32 %v4637, 16
          %v4828 = vor.u32 %v4825, %v4826
          %v4829 = vrot.slane %v4825, 4
          %v4831 = vshrl.u32 %v4638, 16
          %v4833 = vrot.slane %v4831, 7
          %v4834 = vshll.u32 %v4638, 16
          %v4836 = vor.u32 %v4833, %v4834
          %v4837 = vsel %vm4651, %v4829, %v4836
          %v4838 = vrot.slane %v4833, 4
          %v4840 = vshrl.u32 %v4639, 16
          %v4842 = vrot.slane %v4840, 7
          %v4843 = vshll.u32 %v4639, 16
          %v4845 = vor.u32 %v4842, %v4843
          %v4846 = vrot.slane %v4842, 4
          %v4848 = vshrl.u32 %v4640, 16
          %v4850 = vrot.slane %v4848, 7
          %v4851 = vshll.u32 %v4640, 16
          %v4853 = vor.u32 %v4850, %v4851
          %v4854 = vsel %vm4651, %v4846, %v4853
          %v4855 = vrot.slane %v4850, 4
          %v4857 = vshrl.u32 %v4641, 16
          %v4859 = vrot.slane %v4857, 7
          %v4860 = vshll.u32 %v4641, 16
          %v4862 = vor.u32 %v4859, %v4860
          %v4863 = vrot.slane %v4859, 4
          %v4865 = vshrl.u32 %v4642, 16
          %v4867 = vrot.slane %v4865, 7
          %v4868 = vshll.u32 %v4642, 16
          %v4870 = vor.u32 %v4867, %v4868
          %v4871 = vsel %vm4651, %v4863, %v4870
          %v4872 = vrot.slane %v4867, 4
          %v4874 = vshrl.u32 %v4643, 16
          %v4876 = vrot.slane %v4874, 7
          %v4877 = vshll.u32 %v4643, 16
          %v4879 = vor.u32 %v4876, %v4877
          %v4880 = vrot.slane %v4876, 4
          %v4882 = vshrl.u32 %v4644, 16
          %v4884 = vrot.slane %v4882, 7
          %v4885 = vshll.u32 %v4644, 16
          %v4887 = vor.u32 %v4884, %v4885
          %v4888 = vsel %vm4651, %v4880, %v4887
          %v4889 = vrot.slane %v4884, 4
          %v4891 = vshrl.u32 %v4645, 16
          %v4893 = vrot.slane %v4891, 7
          %v4894 = vshll.u32 %v4645, 16
          %v4896 = vor.u32 %v4893, %v4894
          %v4897 = vrot.slane %v4893, 4
          %v4899 = vshrl.u32 %v4646, 16
          %v4901 = vrot.slane %v4899, 7
          %v4902 = vshll.u32 %v4646, 16
          %v4904 = vor.u32 %v4901, %v4902
          %v4905 = vsel %vm4651, %v4897, %v4904
          %v4906 = vrot.slane %v4901, 4
          %v4908 = vshrl.u32 %v4647, 16
          %v4910 = vrot.slane %v4908, 7
          %v4911 = vshll.u32 %v4647, 16
          %v4913 = vor.u32 %v4910, %v4911
          %v4914 = vrot.slane %v4910, 4
          %v4916 = vshrl.u32 %v4648, 16
          %v4918 = vrot.slane %v4916, 7
          %v4919 = vshll.u32 %v4648, 16
          %v4921 = vor.u32 %v4918, %v4919
          %v4922 = vsel %vm4651, %v4914, %v4921
          %v4923 = vrot.slane %v4918, 4
          %s4972 = scalar_lea.vmem [#allocation2], 228
          %vm4973 = vcmask 1043456
          %vm4974 = vsmask.f32 7938
          %vm4975 = vmand %vm4973, %vm4974
          %v4976 = vld [vmem:[%s4972] sm:$0xf]
          %v4977 = vsel %vm4975, %v4658, %v4976
          %4978 = vst [vmem:[%s4972] sm:$0xf] %v4977
          %4979 = vst [vmem:[%s4972 + $0x4] sm:$0xf] %v4667
          %vm4980 = vcmask 1040384
          %vm4981 = vmand %vm4980, %vm4649
          %v4982 = vld [vmem:[%s4972 + $0x8] sm:$0x1]
          %v4983 = vsel %vm4981, %v4668, %v4982
          %4984 = vst [vmem:[%s4972 + $0x8] sm:$0x1] %v4983
          %v4985 = vld [vmem:[%s4972 + $0xc] sm:$0xf]
          %v4986 = vsel %vm4975, %v4675, %v4985
          %4987 = vst [vmem:[%s4972 + $0xc] sm:$0xf] %v4986
          %4988 = vst [vmem:[%s4972 + $0x10] sm:$0xf] %v4684
          %v4989 = vld [vmem:[%s4972 + $0x14] sm:$0x1]
          %v4990 = vsel %vm4981, %v4685, %v4989
          %4991 = vst [vmem:[%s4972 + $0x14] sm:$0x1] %v4990
          %v4992 = vld [vmem:[%s4972 + $0x18] sm:$0xf]
          %v4993 = vsel %vm4975, %v4692, %v4992
          %4994 = vst [vmem:[%s4972 + $0x18] sm:$0xf] %v4993
          %4995 = vst [vmem:[%s4972 + $0x1c] sm:$0xf] %v4701
          %v4996 = vld [vmem:[%s4972 + $0x20] sm:$0x1]
          %v4997 = vsel %vm4981, %v4702, %v4996
          %4998 = vst [vmem:[%s4972 + $0x20] sm:$0x1] %v4997
          %v4999 = vld [vmem:[%s4972 + $0x24] sm:$0xf]
          %v5000 = vsel %vm4975, %v4709, %v4999
          %5001 = vst [vmem:[%s4972 + $0x24] sm:$0xf] %v5000
          %5002 = vst [vmem:[%s4972 + $0x28] sm:$0xf] %v4718
          %v5003 = vld [vmem:[%s4972 + $0x2c] sm:$0x1]
          %v5004 = vsel %vm4981, %v4719, %v5003
          %5005 = vst [vmem:[%s4972 + $0x2c] sm:$0x1] %v5004
          %v5006 = vld [vmem:[%s4972 + $0x30] sm:$0xf]
          %v5007 = vsel %vm4975, %v4726, %v5006
          %5008 = vst [vmem:[%s4972 + $0x30] sm:$0xf] %v5007
          %5009 = vst [vmem:[%s4972 + $0x34] sm:$0xf] %v4735
          %v5010 = vld [vmem:[%s4972 + $0x38] sm:$0x1]
          %v5011 = vsel %vm4981, %v4736, %v5010
          %5012 = vst [vmem:[%s4972 + $0x38] sm:$0x1] %v5011
          %v5013 = vld [vmem:[%s4972 + $0x3c] sm:$0xf]
          %v5014 = vsel %vm4975, %v4743, %v5013
          %5015 = vst [vmem:[%s4972 + $0x3c] sm:$0xf] %v5014
          %5016 = vst [vmem:[%s4972 + $0x40] sm:$0xf] %v4752
          %v5017 = vld [vmem:[%s4972 + $0x44] sm:$0x1]
          %v5018 = vsel %vm4981, %v4753, %v5017
          %5019 = vst [vmem:[%s4972 + $0x44] sm:$0x1] %v5018
          %v5020 = vld [vmem:[%s4972 + $0x48] sm:$0xf]
          %v5021 = vsel %vm4975, %v4760, %v5020
          %5022 = vst [vmem:[%s4972 + $0x48] sm:$0xf] %v5021
          %5023 = vst [vmem:[%s4972 + $0x4c] sm:$0xf] %v4769
          %v5024 = vld [vmem:[%s4972 + $0x50] sm:$0x1]
          %v5025 = vsel %vm4981, %v4770, %v5024
          %5026 = vst [vmem:[%s4972 + $0x50] sm:$0x1] %v5025
          %v5027 = vld [vmem:[%s4972 + $0x54] sm:$0xf]
          %v5028 = vsel %vm4975, %v4777, %v5027
          %5029 = vst [vmem:[%s4972 + $0x54] sm:$0xf] %v5028
          %5030 = vst [vmem:[%s4972 + $0x58] sm:$0xf] %v4786
          %v5031 = vld [vmem:[%s4972 + $0x5c] sm:$0x1]
          %v5032 = vsel %vm4981, %v4787, %v5031
          %5033 = vst [vmem:[%s4972 + $0x5c] sm:$0x1] %v5032
          %v5034 = vld [vmem:[%s4972 + $0x60] sm:$0xf]
          %v5035 = vsel %vm4975, %v4794, %v5034
          %5036 = vst [vmem:[%s4972 + $0x60] sm:$0xf] %v5035
          %5037 = vst [vmem:[%s4972 + $0x64] sm:$0xf] %v4803
          %v5038 = vld [vmem:[%s4972 + $0x68] sm:$0x1]
          %v5039 = vsel %vm4981, %v4804, %v5038
          %5040 = vst [vmem:[%s4972 + $0x68] sm:$0x1] %v5039
          %v5041 = vld [vmem:[%s4972 + $0x6c] sm:$0xf]
          %v5042 = vsel %vm4975, %v4811, %v5041
          %5043 = vst [vmem:[%s4972 + $0x6c] sm:$0xf] %v5042
          %5044 = vst [vmem:[%s4972 + $0x70] sm:$0xf] %v4820
          %v5045 = vld [vmem:[%s4972 + $0x74] sm:$0x1]
          %v5046 = vsel %vm4981, %v4821, %v5045
          %5047 = vst [vmem:[%s4972 + $0x74] sm:$0x1] %v5046
          %v5048 = vld [vmem:[%s4972 + $0x78] sm:$0xf]
          %v5049 = vsel %vm4975, %v4828, %v5048
          %5050 = vst [vmem:[%s4972 + $0x78] sm:$0xf] %v5049
          %5051 = vst [vmem:[%s4972 + $0x7c] sm:$0xf] %v4837
          %v5052 = vld [vmem:[%s4972 + $0x80] sm:$0x1]
          %v5053 = vsel %vm4981, %v4838, %v5052
          %5054 = vst [vmem:[%s4972 + $0x80] sm:$0x1] %v5053
          %v5055 = vld [vmem:[%s4972 + $0x84] sm:$0xf]
          %v5056 = vsel %vm4975, %v4845, %v5055
          %5057 = vst [vmem:[%s4972 + $0x84] sm:$0xf] %v5056
          %5058 = vst [vmem:[%s4972 + $0x88] sm:$0xf] %v4854
          %v5059 = vld [vmem:[%s4972 + $0x8c] sm:$0x1]
          %v5060 = vsel %vm4981, %v4855, %v5059
          %5061 = vst [vmem:[%s4972 + $0x8c] sm:$0x1] %v5060
          %v5062 = vld [vmem:[%s4972 + $0x90] sm:$0xf]
          %v5063 = vsel %vm4975, %v4862, %v5062
          %5064 = vst [vmem:[%s4972 + $0x90] sm:$0xf] %v5063
          %5065 = vst [vmem:[%s4972 + $0x94] sm:$0xf] %v4871
          %v5066 = vld [vmem:[%s4972 + $0x98] sm:$0x1]
          %v5067 = vsel %vm4981, %v4872, %v5066
          %5068 = vst [vmem:[%s4972 + $0x98] sm:$0x1] %v5067
          %v5069 = vld [vmem:[%s4972 + $0x9c] sm:$0xf]
          %v5070 = vsel %vm4975, %v4879, %v5069
          %5071 = vst [vmem:[%s4972 + $0x9c] sm:$0xf] %v5070
          %5072 = vst [vmem:[%s4972 + $0xa0] sm:$0xf] %v4888
          %v5073 = vld [vmem:[%s4972 + $0xa4] sm:$0x1]
          %v5074 = vsel %vm4981, %v4889, %v5073
          %5075 = vst [vmem:[%s4972 + $0xa4] sm:$0x1] %v5074
          %v5076 = vld [vmem:[%s4972 + $0xa8] sm:$0xf]
          %v5077 = vsel %vm4975, %v4896, %v5076
          %5078 = vst [vmem:[%s4972 + $0xa8] sm:$0xf] %v5077
          %5079 = vst [vmem:[%s4972 + $0xac] sm:$0xf] %v4905
          %v5080 = vld [vmem:[%s4972 + $0xb0] sm:$0x1]
          %v5081 = vsel %vm4981, %v4906, %v5080
          %5082 = vst [vmem:[%s4972 + $0xb0] sm:$0x1] %v5081
          %v5083 = vld [vmem:[%s4972 + $0xb4] sm:$0xf]
          %v5084 = vsel %vm4975, %v4913, %v5083
          %5085 = vst [vmem:[%s4972 + $0xb4] sm:$0xf] %v5084
          %5086 = vst [vmem:[%s4972 + $0xb8] sm:$0xf] %v4922
          %v5087 = vld [vmem:[%s4972 + $0xbc] sm:$0x1]
          %v5088 = vsel %vm4981, %v4923, %v5087
          %5089 = vst [vmem:[%s4972 + $0xbc] sm:$0x1] %v5088
        $region64: #{_lambda_.1} parent=39 // pred_fallthru
          _
        %p5090 = scmp.eq.s32.totalorder %s400, 1
        %p5091 = pnand %p4563, %p5090
        %p5092 = pneg %p5091
        // Predicated region
        $region65: #{_lambda_.1} parent=39 // pred_check
          _
        $region66: #{_lambda_.1} parent=39 // pred_check_branch
          %5094 = sbr.rel (%p5091) target = $region68
        $region67: #{_lambda_.1} parent=39 // pred_region
          %v5111 = vunpack.c.l.b16 %v4547
          %v5112 = vunpack.c.h.b16 %v4547
          %v5113 = vunpack.c.l.b16 %v4548
          %v5114 = vunpack.c.h.b16 %v4548
          %v5115 = vunpack.c.l.b16 %v4549
          %v5116 = vunpack.c.h.b16 %v4549
          %v5117 = vunpack.c.l.b16 %v4550
          %v5118 = vunpack.c.h.b16 %v4550
          %v5119 = vunpack.c.l.b16 %v4551
          %v5120 = vunpack.c.h.b16 %v4551
          %v5121 = vunpack.c.l.b16 %v4552
          %v5122 = vunpack.c.h.b16 %v4552
          %v5123 = vunpack.c.l.b16 %v4553
          %v5124 = vunpack.c.h.b16 %v4553
          %v5125 = vunpack.c.l.b16 %v4554
          %v5126 = vunpack.c.h.b16 %v4554
          %v5127 = vunpack.c.l.b16 %v4555
          %v5128 = vunpack.c.h.b16 %v4555
          %v5129 = vunpack.c.l.b16 %v4556
          %v5130 = vunpack.c.h.b16 %v4556
          %v5131 = vunpack.c.l.b16 %v4557
          %v5132 = vunpack.c.h.b16 %v4557
          %v5133 = vunpack.c.l.b16 %v4558
          %v5134 = vunpack.c.h.b16 %v4558
          %v5135 = vunpack.c.l.b16 %v4559
          %v5136 = vunpack.c.h.b16 %v4559
          %v5137 = vunpack.c.l.b16 %v4560
          %v5138 = vunpack.c.h.b16 %v4560
          %v5139 = vunpack.c.l.b16 %v4561
          %v5140 = vunpack.c.h.b16 %v4561
          %v5141 = vunpack.c.l.b16 %v4562
          %v5142 = vunpack.c.h.b16 %v4562
          %v5143 = vpack.c.b16 %v5111, %v5111
          %v5144 = vpack.c.b16 %v5112, %v5112
          %v5145 = vpack.c.b16 %v5113, %v5113
          %v5146 = vpack.c.b16 %v5114, %v5114
          %v5147 = vpack.c.b16 %v5115, %v5115
          %v5148 = vpack.c.b16 %v5116, %v5116
          %v5149 = vpack.c.b16 %v5117, %v5117
          %v5150 = vpack.c.b16 %v5118, %v5118
          %v5151 = vpack.c.b16 %v5119, %v5119
          %v5152 = vpack.c.b16 %v5120, %v5120
          %v5153 = vpack.c.b16 %v5121, %v5121
          %v5154 = vpack.c.b16 %v5122, %v5122
          %v5155 = vpack.c.b16 %v5123, %v5123
          %v5156 = vpack.c.b16 %v5124, %v5124
          %v5157 = vpack.c.b16 %v5125, %v5125
          %v5158 = vpack.c.b16 %v5126, %v5126
          %v5159 = vpack.c.b16 %v5127, %v5127
          %v5160 = vpack.c.b16 %v5128, %v5128
          %v5161 = vpack.c.b16 %v5129, %v5129
          %v5162 = vpack.c.b16 %v5130, %v5130
          %v5163 = vpack.c.b16 %v5131, %v5131
          %v5164 = vpack.c.b16 %v5132, %v5132
          %v5165 = vpack.c.b16 %v5133, %v5133
          %v5166 = vpack.c.b16 %v5134, %v5134
          %v5167 = vpack.c.b16 %v5135, %v5135
          %v5168 = vpack.c.b16 %v5136, %v5136
          %v5169 = vpack.c.b16 %v5137, %v5137
          %v5170 = vpack.c.b16 %v5138, %v5138
          %v5171 = vpack.c.b16 %v5139, %v5139
          %v5172 = vpack.c.b16 %v5140, %v5140
          %v5173 = vpack.c.b16 %v5141, %v5141
          %v5174 = vpack.c.b16 %v5142, %v5142
          %vm5175 = vsmask.f32 256
          %vm5176 = vsmask.f32 4368
          %vm5177 = vmor %vm5175, %vm5176
          %v5179 = vshrl.u32 %v5143, 16
          %v5181 = vrot.slane %v5179, 7
          %v5182 = vshll.u32 %v5143, 16
          %v5184 = vor.u32 %v5181, %v5182
          %v5185 = vrot.slane %v5181, 4
          %v5187 = vshrl.u32 %v5144, 16
          %v5189 = vrot.slane %v5187, 7
          %v5190 = vshll.u32 %v5144, 16
          %v5192 = vor.u32 %v5189, %v5190
          %v5193 = vsel %vm5177, %v5185, %v5192
          %v5194 = vrot.slane %v5189, 4
          %v5196 = vshrl.u32 %v5145, 16
          %v5198 = vrot.slane %v5196, 7
          %v5199 = vshll.u32 %v5145, 16
          %v5201 = vor.u32 %v5198, %v5199
          %v5202 = vrot.slane %v5198, 4
          %v5204 = vshrl.u32 %v5146, 16
          %v5206 = vrot.slane %v5204, 7
          %v5207 = vshll.u32 %v5146, 16
          %v5209 = vor.u32 %v5206, %v5207
          %v5210 = vsel %vm5177, %v5202, %v5209
          %v5211 = vrot.slane %v5206, 4
          %v5213 = vshrl.u32 %v5147, 16
          %v5215 = vrot.slane %v5213, 7
          %v5216 = vshll.u32 %v5147, 16
          %v5218 = vor.u32 %v5215, %v5216
          %v5219 = vrot.slane %v5215, 4
          %v5221 = vshrl.u32 %v5148, 16
          %v5223 = vrot.slane %v5221, 7
          %v5224 = vshll.u32 %v5148, 16
          %v5226 = vor.u32 %v5223, %v5224
          %v5227 = vsel %vm5177, %v5219, %v5226
          %v5228 = vrot.slane %v5223, 4
          %v5230 = vshrl.u32 %v5149, 16
          %v5232 = vrot.slane %v5230, 7
          %v5233 = vshll.u32 %v5149, 16
          %v5235 = vor.u32 %v5232, %v5233
          %v5236 = vrot.slane %v5232, 4
          %v5238 = vshrl.u32 %v5150, 16
          %v5240 = vrot.slane %v5238, 7
          %v5241 = vshll.u32 %v5150, 16
          %v5243 = vor.u32 %v5240, %v5241
          %v5244 = vsel %vm5177, %v5236, %v5243
          %v5245 = vrot.slane %v5240, 4
          %v5247 = vshrl.u32 %v5151, 16
          %v5249 = vrot.slane %v5247, 7
          %v5250 = vshll.u32 %v5151, 16
          %v5252 = vor.u32 %v5249, %v5250
          %v5253 = vrot.slane %v5249, 4
          %v5255 = vshrl.u32 %v5152, 16
          %v5257 = vrot.slane %v5255, 7
          %v5258 = vshll.u32 %v5152, 16
          %v5260 = vor.u32 %v5257, %v5258
          %v5261 = vsel %vm5177, %v5253, %v5260
          %v5262 = vrot.slane %v5257, 4
          %v5264 = vshrl.u32 %v5153, 16
          %v5266 = vrot.slane %v5264, 7
          %v5267 = vshll.u32 %v5153, 16
          %v5269 = vor.u32 %v5266, %v5267
          %v5270 = vrot.slane %v5266, 4
          %v5272 = vshrl.u32 %v5154, 16
          %v5274 = vrot.slane %v5272, 7
          %v5275 = vshll.u32 %v5154, 16
          %v5277 = vor.u32 %v5274, %v5275
          %v5278 = vsel %vm5177, %v5270, %v5277
          %v5279 = vrot.slane %v5274, 4
          %v5281 = vshrl.u32 %v5155, 16
          %v5283 = vrot.slane %v5281, 7
          %v5284 = vshll.u32 %v5155, 16
          %v5286 = vor.u32 %v5283, %v5284
          %v5287 = vrot.slane %v5283, 4
          %v5289 = vshrl.u32 %v5156, 16
          %v5291 = vrot.slane %v5289, 7
          %v5292 = vshll.u32 %v5156, 16
          %v5294 = vor.u32 %v5291, %v5292
          %v5295 = vsel %vm5177, %v5287, %v5294
          %v5296 = vrot.slane %v5291, 4
          %v5298 = vshrl.u32 %v5157, 16
          %v5300 = vrot.slane %v5298, 7
          %v5301 = vshll.u32 %v5157, 16
          %v5303 = vor.u32 %v5300, %v5301
          %v5304 = vrot.slane %v5300, 4
          %v5306 = vshrl.u32 %v5158, 16
          %v5308 = vrot.slane %v5306, 7
          %v5309 = vshll.u32 %v5158, 16
          %v5311 = vor.u32 %v5308, %v5309
          %v5312 = vsel %vm5177, %v5304, %v5311
          %v5313 = vrot.slane %v5308, 4
          %v5315 = vshrl.u32 %v5159, 16
          %v5317 = vrot.slane %v5315, 7
          %v5318 = vshll.u32 %v5159, 16
          %v5320 = vor.u32 %v5317, %v5318
          %v5321 = vrot.slane %v5317, 4
          %v5323 = vshrl.u32 %v5160, 16
          %v5325 = vrot.slane %v5323, 7
          %v5326 = vshll.u32 %v5160, 16
          %v5328 = vor.u32 %v5325, %v5326
          %v5329 = vsel %vm5177, %v5321, %v5328
          %v5330 = vrot.slane %v5325, 4
          %v5332 = vshrl.u32 %v5161, 16
          %v5334 = vrot.slane %v5332, 7
          %v5335 = vshll.u32 %v5161, 16
          %v5337 = vor.u32 %v5334, %v5335
          %v5338 = vrot.slane %v5334, 4
          %v5340 = vshrl.u32 %v5162, 16
          %v5342 = vrot.slane %v5340, 7
          %v5343 = vshll.u32 %v5162, 16
          %v5345 = vor.u32 %v5342, %v5343
          %v5346 = vsel %vm5177, %v5338, %v5345
          %v5347 = vrot.slane %v5342, 4
          %v5349 = vshrl.u32 %v5163, 16
          %v5351 = vrot.slane %v5349, 7
          %v5352 = vshll.u32 %v5163, 16
          %v5354 = vor.u32 %v5351, %v5352
          %v5355 = vrot.slane %v5351, 4
          %v5357 = vshrl.u32 %v5164, 16
          %v5359 = vrot.slane %v5357, 7
          %v5360 = vshll.u32 %v5164, 16
          %v5362 = vor.u32 %v5359, %v5360
          %v5363 = vsel %vm5177, %v5355, %v5362
          %v5364 = vrot.slane %v5359, 4
          %v5366 = vshrl.u32 %v5165, 16
          %v5368 = vrot.slane %v5366, 7
          %v5369 = vshll.u32 %v5165, 16
          %v5371 = vor.u32 %v5368, %v5369
          %v5372 = vrot.slane %v5368, 4
          %v5374 = vshrl.u32 %v5166, 16
          %v5376 = vrot.slane %v5374, 7
          %v5377 = vshll.u32 %v5166, 16
          %v5379 = vor.u32 %v5376, %v5377
          %v5380 = vsel %vm5177, %v5372, %v5379
          %v5381 = vrot.slane %v5376, 4
          %v5383 = vshrl.u32 %v5167, 16
          %v5385 = vrot.slane %v5383, 7
          %v5386 = vshll.u32 %v5167, 16
          %v5388 = vor.u32 %v5385, %v5386
          %v5389 = vrot.slane %v5385, 4
          %v5391 = vshrl.u32 %v5168, 16
          %v5393 = vrot.slane %v5391, 7
          %v5394 = vshll.u32 %v5168, 16
          %v5396 = vor.u32 %v5393, %v5394
          %v5397 = vsel %vm5177, %v5389, %v5396
          %v5398 = vrot.slane %v5393, 4
          %v5400 = vshrl.u32 %v5169, 16
          %v5402 = vrot.slane %v5400, 7
          %v5403 = vshll.u32 %v5169, 16
          %v5405 = vor.u32 %v5402, %v5403
          %v5406 = vrot.slane %v5402, 4
          %v5408 = vshrl.u32 %v5170, 16
          %v5410 = vrot.slane %v5408, 7
          %v5411 = vshll.u32 %v5170, 16
          %v5413 = vor.u32 %v5410, %v5411
          %v5414 = vsel %vm5177, %v5406, %v5413
          %v5415 = vrot.slane %v5410, 4
          %v5417 = vshrl.u32 %v5171, 16
          %v5419 = vrot.slane %v5417, 7
          %v5420 = vshll.u32 %v5171, 16
          %v5422 = vor.u32 %v5419, %v5420
          %v5423 = vrot.slane %v5419, 4
          %v5425 = vshrl.u32 %v5172, 16
          %v5427 = vrot.slane %v5425, 7
          %v5428 = vshll.u32 %v5172, 16
          %v5430 = vor.u32 %v5427, %v5428
          %v5431 = vsel %vm5177, %v5423, %v5430
          %v5432 = vrot.slane %v5427, 4
          %v5434 = vshrl.u32 %v5173, 16
          %v5436 = vrot.slane %v5434, 7
          %v5437 = vshll.u32 %v5173, 16
          %v5439 = vor.u32 %v5436, %v5437
          %v5440 = vrot.slane %v5436, 4
          %v5442 = vshrl.u32 %v5174, 16
          %v5444 = vrot.slane %v5442, 7
          %v5445 = vshll.u32 %v5174, 16
          %v5447 = vor.u32 %v5444, %v5445
          %v5448 = vsel %vm5177, %v5440, %v5447
          %v5449 = vrot.slane %v5444, 4
          %s5498 = scalar_lea.vmem [#allocation2], 12
          %vm5499 = vcmask 1043456
          %vm5500 = vsmask.f32 7938
          %vm5501 = vmand %vm5499, %vm5500
          %v5502 = vld [vmem:[%s5498] sm:$0xf]
          %v5503 = vsel %vm5501, %v5184, %v5502
          %5504 = vst [vmem:[%s5498] sm:$0xf] %v5503
          %5505 = vst [vmem:[%s5498 + $0x4] sm:$0xf] %v5193
          %vm5506 = vcmask 1040384
          %vm5507 = vmand %vm5506, %vm5175
          %v5508 = vld [vmem:[%s5498 + $0x8] sm:$0x1]
          %v5509 = vsel %vm5507, %v5194, %v5508
          %5510 = vst [vmem:[%s5498 + $0x8] sm:$0x1] %v5509
          %v5511 = vld [vmem:[%s5498 + $0xc] sm:$0xf]
          %v5512 = vsel %vm5501, %v5201, %v5511
          %5513 = vst [vmem:[%s5498 + $0xc] sm:$0xf] %v5512
          %5514 = vst [vmem:[%s5498 + $0x10] sm:$0xf] %v5210
          %v5515 = vld [vmem:[%s5498 + $0x14] sm:$0x1]
          %v5516 = vsel %vm5507, %v5211, %v5515
          %5517 = vst [vmem:[%s5498 + $0x14] sm:$0x1] %v5516
          %v5518 = vld [vmem:[%s5498 + $0x18] sm:$0xf]
          %v5519 = vsel %vm5501, %v5218, %v5518
          %5520 = vst [vmem:[%s5498 + $0x18] sm:$0xf] %v5519
          %5521 = vst [vmem:[%s5498 + $0x1c] sm:$0xf] %v5227
          %v5522 = vld [vmem:[%s5498 + $0x20] sm:$0x1]
          %v5523 = vsel %vm5507, %v5228, %v5522
          %5524 = vst [vmem:[%s5498 + $0x20] sm:$0x1] %v5523
          %v5525 = vld [vmem:[%s5498 + $0x24] sm:$0xf]
          %v5526 = vsel %vm5501, %v5235, %v5525
          %5527 = vst [vmem:[%s5498 + $0x24] sm:$0xf] %v5526
          %5528 = vst [vmem:[%s5498 + $0x28] sm:$0xf] %v5244
          %v5529 = vld [vmem:[%s5498 + $0x2c] sm:$0x1]
          %v5530 = vsel %vm5507, %v5245, %v5529
          %5531 = vst [vmem:[%s5498 + $0x2c] sm:$0x1] %v5530
          %v5532 = vld [vmem:[%s5498 + $0x30] sm:$0xf]
          %v5533 = vsel %vm5501, %v5252, %v5532
          %5534 = vst [vmem:[%s5498 + $0x30] sm:$0xf] %v5533
          %5535 = vst [vmem:[%s5498 + $0x34] sm:$0xf] %v5261
          %v5536 = vld [vmem:[%s5498 + $0x38] sm:$0x1]
          %v5537 = vsel %vm5507, %v5262, %v5536
          %5538 = vst [vmem:[%s5498 + $0x38] sm:$0x1] %v5537
          %v5539 = vld [vmem:[%s5498 + $0x3c] sm:$0xf]
          %v5540 = vsel %vm5501, %v5269, %v5539
          %5541 = vst [vmem:[%s5498 + $0x3c] sm:$0xf] %v5540
          %5542 = vst [vmem:[%s5498 + $0x40] sm:$0xf] %v5278
          %v5543 = vld [vmem:[%s5498 + $0x44] sm:$0x1]
          %v5544 = vsel %vm5507, %v5279, %v5543
          %5545 = vst [vmem:[%s5498 + $0x44] sm:$0x1] %v5544
          %v5546 = vld [vmem:[%s5498 + $0x48] sm:$0xf]
          %v5547 = vsel %vm5501, %v5286, %v5546
          %5548 = vst [vmem:[%s5498 + $0x48] sm:$0xf] %v5547
          %5549 = vst [vmem:[%s5498 + $0x4c] sm:$0xf] %v5295
          %v5550 = vld [vmem:[%s5498 + $0x50] sm:$0x1]
          %v5551 = vsel %vm5507, %v5296, %v5550
          %5552 = vst [vmem:[%s5498 + $0x50] sm:$0x1] %v5551
          %v5553 = vld [vmem:[%s5498 + $0x54] sm:$0xf]
          %v5554 = vsel %vm5501, %v5303, %v5553
          %5555 = vst [vmem:[%s5498 + $0x54] sm:$0xf] %v5554
          %5556 = vst [vmem:[%s5498 + $0x58] sm:$0xf] %v5312
          %v5557 = vld [vmem:[%s5498 + $0x5c] sm:$0x1]
          %v5558 = vsel %vm5507, %v5313, %v5557
          %5559 = vst [vmem:[%s5498 + $0x5c] sm:$0x1] %v5558
          %v5560 = vld [vmem:[%s5498 + $0x60] sm:$0xf]
          %v5561 = vsel %vm5501, %v5320, %v5560
          %5562 = vst [vmem:[%s5498 + $0x60] sm:$0xf] %v5561
          %5563 = vst [vmem:[%s5498 + $0x64] sm:$0xf] %v5329
          %v5564 = vld [vmem:[%s5498 + $0x68] sm:$0x1]
          %v5565 = vsel %vm5507, %v5330, %v5564
          %5566 = vst [vmem:[%s5498 + $0x68] sm:$0x1] %v5565
          %v5567 = vld [vmem:[%s5498 + $0x6c] sm:$0xf]
          %v5568 = vsel %vm5501, %v5337, %v5567
          %5569 = vst [vmem:[%s5498 + $0x6c] sm:$0xf] %v5568
          %5570 = vst [vmem:[%s5498 + $0x70] sm:$0xf] %v5346
          %v5571 = vld [vmem:[%s5498 + $0x74] sm:$0x1]
          %v5572 = vsel %vm5507, %v5347, %v5571
          %5573 = vst [vmem:[%s5498 + $0x74] sm:$0x1] %v5572
          %v5574 = vld [vmem:[%s5498 + $0x78] sm:$0xf]
          %v5575 = vsel %vm5501, %v5354, %v5574
          %5576 = vst [vmem:[%s5498 + $0x78] sm:$0xf] %v5575
          %5577 = vst [vmem:[%s5498 + $0x7c] sm:$0xf] %v5363
          %v5578 = vld [vmem:[%s5498 + $0x80] sm:$0x1]
          %v5579 = vsel %vm5507, %v5364, %v5578
          %5580 = vst [vmem:[%s5498 + $0x80] sm:$0x1] %v5579
          %v5581 = vld [vmem:[%s5498 + $0x84] sm:$0xf]
          %v5582 = vsel %vm5501, %v5371, %v5581
          %5583 = vst [vmem:[%s5498 + $0x84] sm:$0xf] %v5582
          %5584 = vst [vmem:[%s5498 + $0x88] sm:$0xf] %v5380
          %v5585 = vld [vmem:[%s5498 + $0x8c] sm:$0x1]
          %v5586 = vsel %vm5507, %v5381, %v5585
          %5587 = vst [vmem:[%s5498 + $0x8c] sm:$0x1] %v5586
          %v5588 = vld [vmem:[%s5498 + $0x90] sm:$0xf]
          %v5589 = vsel %vm5501, %v5388, %v5588
          %5590 = vst [vmem:[%s5498 + $0x90] sm:$0xf] %v5589
          %5591 = vst [vmem:[%s5498 + $0x94] sm:$0xf] %v5397
          %v5592 = vld [vmem:[%s5498 + $0x98] sm:$0x1]
          %v5593 = vsel %vm5507, %v5398, %v5592
          %5594 = vst [vmem:[%s5498 + $0x98] sm:$0x1] %v5593
          %v5595 = vld [vmem:[%s5498 + $0x9c] sm:$0xf]
          %v5596 = vsel %vm5501, %v5405, %v5595
          %5597 = vst [vmem:[%s5498 + $0x9c] sm:$0xf] %v5596
          %5598 = vst [vmem:[%s5498 + $0xa0] sm:$0xf] %v5414
          %v5599 = vld [vmem:[%s5498 + $0xa4] sm:$0x1]
          %v5600 = vsel %vm5507, %v5415, %v5599
          %5601 = vst [vmem:[%s5498 + $0xa4] sm:$0x1] %v5600
          %v5602 = vld [vmem:[%s5498 + $0xa8] sm:$0xf]
          %v5603 = vsel %vm5501, %v5422, %v5602
          %5604 = vst [vmem:[%s5498 + $0xa8] sm:$0xf] %v5603
          %5605 = vst [vmem:[%s5498 + $0xac] sm:$0xf] %v5431
          %v5606 = vld [vmem:[%s5498 + $0xb0] sm:$0x1]
          %v5607 = vsel %vm5507, %v5432, %v5606
          %5608 = vst [vmem:[%s5498 + $0xb0] sm:$0x1] %v5607
          %v5609 = vld [vmem:[%s5498 + $0xb4] sm:$0xf]
          %v5610 = vsel %vm5501, %v5439, %v5609
          %5611 = vst [vmem:[%s5498 + $0xb4] sm:$0xf] %v5610
          %5612 = vst [vmem:[%s5498 + $0xb8] sm:$0xf] %v5448
          %v5613 = vld [vmem:[%s5498 + $0xbc] sm:$0x1]
          %v5614 = vsel %vm5507, %v5449, %v5613
          %5615 = vst [vmem:[%s5498 + $0xbc] sm:$0x1] %v5614
        $region68: #{_lambda_.1} parent=39 // pred_fallthru
          _
        // Predicated region
        $region69: #{_lambda_.1} parent=39 // pred_check
          %p5616 = pneg %p4379
        $region70: #{_lambda_.1} parent=39 // pred_check_branch
          %5618 = sbr.rel (%p5616) target = $region72
        $region71: #{_lambda_.1} parent=39 // pred_region
          %s5619 = scalar_lea.vmem %s378, 32
          %v5620 = vld [vmem:[%s5619] sm:$0xf]
          %v5621 = vld [vmem:[%s5619 + $0x4] sm:$0xf]
          %v5622 = vld [vmem:[%s5619 + $0x8] sm:$0xf]
          %v5623 = vld [vmem:[%s5619 + $0xc] sm:$0xf]
          %v5624 = vld [vmem:[%s5619 + $0x10] sm:$0xf]
          %v5625 = vld [vmem:[%s5619 + $0x14] sm:$0xf]
          %v5626 = vld [vmem:[%s5619 + $0x18] sm:$0xf]
          %v5627 = vld [vmem:[%s5619 + $0x1c] sm:$0xf]
          %v5628 = vld [vmem:[%s5619 + $0x20] sm:$0xf]
          %v5629 = vld [vmem:[%s5619 + $0x24] sm:$0xf]
          %v5630 = vld [vmem:[%s5619 + $0x28] sm:$0xf]
          %v5631 = vld [vmem:[%s5619 + $0x2c] sm:$0xf]
          %v5632 = vld [vmem:[%s5619 + $0x30] sm:$0xf]
          %v5633 = vld [vmem:[%s5619 + $0x34] sm:$0xf]
          %v5634 = vld [vmem:[%s5619 + $0x38] sm:$0xf]
          %v5635 = vld [vmem:[%s5619 + $0x3c] sm:$0xf]
          %v5636 = vld [vmem:[#allocation8] sm:$0xf]
          %v5637 = vld [vmem:[#allocation8 + $0x4] sm:$0xf]
          %v5638 = vld [vmem:[#allocation8 + $0x8] sm:$0xf]
          %v5639 = vld [vmem:[#allocation8 + $0xc] sm:$0xf]
          %v5640 = vld [vmem:[#allocation8 + $0x10] sm:$0xf]
          %v5641 = vld [vmem:[#allocation8 + $0x14] sm:$0xf]
          %v5642 = vld [vmem:[#allocation8 + $0x18] sm:$0xf]
          %v5643 = vld [vmem:[#allocation8 + $0x1c] sm:$0xf]
          %v5644 = vld [vmem:[#allocation8 + $0x20] sm:$0xf]
          %v5645 = vld [vmem:[#allocation8 + $0x24] sm:$0xf]
          %v5646 = vld [vmem:[#allocation8 + $0x28] sm:$0xf]
          %v5647 = vld [vmem:[#allocation8 + $0x2c] sm:$0xf]
          %v5648 = vld [vmem:[#allocation8 + $0x30] sm:$0xf]
          %v5649 = vld [vmem:[#allocation8 + $0x34] sm:$0xf]
          %v5650 = vld [vmem:[#allocation8 + $0x38] sm:$0xf]
          %v5651 = vld [vmem:[#allocation8 + $0x3c] sm:$0xf]
          %v5668 = vunpack.c.l.b16 %v5620
          %v5669 = vunpack.c.l.b16 %v5621
          %v5670 = vunpack.c.l.b16 %v5622
          %v5671 = vunpack.c.l.b16 %v5623
          %v5672 = vunpack.c.l.b16 %v5624
          %v5673 = vunpack.c.l.b16 %v5625
          %v5674 = vunpack.c.l.b16 %v5626
          %v5675 = vunpack.c.l.b16 %v5627
          %v5676 = vunpack.c.l.b16 %v5628
          %v5677 = vunpack.c.l.b16 %v5629
          %v5678 = vunpack.c.l.b16 %v5630
          %v5679 = vunpack.c.l.b16 %v5631
          %v5680 = vunpack.c.l.b16 %v5632
          %v5681 = vunpack.c.l.b16 %v5633
          %v5682 = vunpack.c.l.b16 %v5634
          %v5683 = vunpack.c.l.b16 %v5635
          %v5684 = vpack.c.b16 %v5669, %v5668
          %v5685 = vpack.c.b16 %v5671, %v5670
          %v5686 = vpack.c.b16 %v5673, %v5672
          %v5687 = vpack.c.b16 %v5675, %v5674
          %v5688 = vpack.c.b16 %v5677, %v5676
          %v5689 = vpack.c.b16 %v5679, %v5678
          %v5690 = vpack.c.b16 %v5681, %v5680
          %v5691 = vpack.c.b16 %v5683, %v5682
          %v5716 = vunpack.c.l.b16 %v5636
          %v5717 = vunpack.c.l.b16 %v5637
          %v5718 = vunpack.c.l.b16 %v5638
          %v5719 = vunpack.c.l.b16 %v5639
          %v5720 = vunpack.c.l.b16 %v5640
          %v5721 = vunpack.c.l.b16 %v5641
          %v5722 = vunpack.c.l.b16 %v5642
          %v5723 = vunpack.c.l.b16 %v5643
          %v5724 = vunpack.c.l.b16 %v5644
          %v5725 = vunpack.c.l.b16 %v5645
          %v5726 = vunpack.c.l.b16 %v5646
          %v5727 = vunpack.c.l.b16 %v5647
          %v5728 = vunpack.c.l.b16 %v5648
          %v5729 = vunpack.c.l.b16 %v5649
          %v5730 = vunpack.c.l.b16 %v5650
          %v5731 = vunpack.c.l.b16 %v5651
          %v5732 = vpack.c.b16 %v5717, %v5716
          %v5733 = vpack.c.b16 %v5719, %v5718
          %v5734 = vpack.c.b16 %v5721, %v5720
          %v5735 = vpack.c.b16 %v5723, %v5722
          %v5736 = vpack.c.b16 %v5725, %v5724
          %v5737 = vpack.c.b16 %v5727, %v5726
          %v5738 = vpack.c.b16 %v5729, %v5728
          %v5739 = vpack.c.b16 %v5731, %v5730
          %5748 = vmatprep.subr.bf16.mxu0 0
          %5749 = vmatpush1.bf16.msra.mxu0 %v5732
          %5750 = vmatprep.subr.bf16.mxu0 0
          %5751 = vmatpush1.bf16.msra.mxu0 %v5733
          %5752 = vmatprep.subr.bf16.mxu0 0
          %5753 = vmatpush1.bf16.msra.mxu0 %v5734
          %5754 = vmatprep.subr.bf16.mxu0 0
          %5755 = vmatpush1.bf16.msra.mxu0 %v5735
          %5756 = vmatprep.subr.bf16.mxu0 0
          %5757 = vmatpush1.bf16.msra.mxu0 %v5736
          %5758 = vmatprep.subr.bf16.mxu0 0
          %5759 = vmatpush1.bf16.msra.mxu0 %v5737
          %5760 = vmatprep.subr.bf16.mxu0 0
          %5761 = vmatpush1.bf16.msra.mxu0 %v5738
          %5762 = vmatprep.subr.bf16.mxu0 0
          %5763 = vmatpush1.bf16.msra.mxu0 %v5739
          %5764 = vmatprep.subr.bf16.mxu0 0
          %5765 = vmatpush1.bf16.msra.mxu0 0
          %5766 = vmatprep.subr.bf16.mxu0 0
          %5767 = vmatpush1.bf16.msra.mxu0 0
          %5768 = vmatprep.subr.bf16.mxu0 0
          %5769 = vmatpush1.bf16.msra.mxu0 0
          %5770 = vmatprep.subr.bf16.mxu0 0
          %5771 = vmatpush1.bf16.msra.mxu0 0
          %5772 = vmatprep.subr.bf16.mxu0 0
          %5773 = vmatpush1.bf16.msra.mxu0 0
          %5774 = vmatprep.subr.bf16.mxu0 0
          %5775 = vmatpush1.bf16.msra.mxu0 0
          %5776 = vmatprep.subr.bf16.mxu0 0
          %5777 = vmatpush1.bf16.msra.mxu0 0
          %5778 = vmatprep.subr.bf16.mxu0 0
          %5779 = vmatpush1.bf16.msra.mxu0 0
          %5780 = vmatprep.mubr.bf16.mxu0 0
          %5781 = vmatmul.mubr.bf16.gmra.mrb[0].mxu0 %v5684
          %v5782 = vpop.f32.mrb[0].mxu0
          %v5783 = vadd.f32 0.0, %v5782
          %v5784 = vpop.f32.mrb[0].mxu0
          %v5785 = vpop.f32.mrb[0].mxu0
          %v5786 = vadd.f32 0.0, %v5785
          %v5787 = vpop.f32.mrb[0].mxu0
          %5788 = vmatprep.mubr.bf16.mxu0 0
          %5789 = vmatmul.mubr.bf16.gmra.mrb[0].mxu0 %v5685
          %v5790 = vpop.f32.mrb[0].mxu0
          %v5791 = vadd.f32 0.0, %v5790
          %v5792 = vpop.f32.mrb[0].mxu0
          %v5793 = vpop.f32.mrb[0].mxu0
          %v5794 = vadd.f32 0.0, %v5793
          %v5795 = vpop.f32.mrb[0].mxu0
          %5796 = vmatprep.mubr.bf16.mxu0 0
          %5797 = vmatmul.mubr.bf16.gmra.mrb[0].mxu0 %v5686
          %v5798 = vpop.f32.mrb[0].mxu0
          %v5799 = vadd.f32 0.0, %v5798
          %v5800 = vpop.f32.mrb[0].mxu0
          %v5801 = vpop.f32.mrb[0].mxu0
          %v5802 = vadd.f32 0.0, %v5801
          %v5803 = vpop.f32.mrb[0].mxu0
          %5804 = vmatprep.mubr.bf16.mxu0 0
          %5805 = vmatmul.mubr.bf16.gmra.mrb[0].mxu0 %v5687
          %v5806 = vpop.f32.mrb[0].mxu0
          %v5807 = vadd.f32 0.0, %v5806
          %v5808 = vpop.f32.mrb[0].mxu0
          %v5809 = vpop.f32.mrb[0].mxu0
          %v5810 = vadd.f32 0.0, %v5809
          %v5811 = vpop.f32.mrb[0].mxu0
          %5812 = vmatprep.mubr.bf16.mxu0 0
          %5813 = vmatmul.mubr.bf16.gmra.mrb[0].mxu0 %v5688
          %v5814 = vpop.f32.mrb[0].mxu0
          %v5815 = vadd.f32 0.0, %v5814
          %v5816 = vpop.f32.mrb[0].mxu0
          %v5817 = vpop.f32.mrb[0].mxu0
          %v5818 = vadd.f32 0.0, %v5817
          %v5819 = vpop.f32.mrb[0].mxu0
          %5820 = vmatprep.mubr.bf16.mxu0 0
          %5821 = vmatmul.mubr.bf16.gmra.mrb[0].mxu0 %v5689
          %v5822 = vpop.f32.mrb[0].mxu0
          %v5823 = vadd.f32 0.0, %v5822
          %v5824 = vpop.f32.mrb[0].mxu0
          %v5825 = vpop.f32.mrb[0].mxu0
          %v5826 = vadd.f32 0.0, %v5825
          %v5827 = vpop.f32.mrb[0].mxu0
          %5828 = vmatprep.mubr.bf16.mxu0 0
          %5829 = vmatmul.mubr.bf16.gmra.mrb[0].mxu0 %v5690
          %v5830 = vpop.f32.mrb[0].mxu0
          %v5831 = vadd.f32 0.0, %v5830
          %v5832 = vpop.f32.mrb[0].mxu0
          %v5833 = vpop.f32.mrb[0].mxu0
          %v5834 = vadd.f32 0.0, %v5833
          %v5835 = vpop.f32.mrb[0].mxu0
          %5836 = vmatprep.mubr.bf16.mxu0 0
          %5837 = vmatmul.mubr.bf16.gmra.mrb[0].mxu0 %v5691
          %v5838 = vpop.f32.mrb[0].mxu0
          %v5839 = vadd.f32 0.0, %v5838
          %v5840 = vpop.f32.mrb[0].mxu0
          %v5841 = vpop.f32.mrb[0].mxu0
          %v5842 = vadd.f32 0.0, %v5841
          %v5843 = vpop.f32.mrb[0].mxu0
          %5844 = vdwg.mxu0
          %v5845 = vadd.f32 %v4289, %v5783
          %v5846 = vadd.f32 %v4290, %v5786
          %v5847 = vadd.f32 %v4291, %v5791
          %v5848 = vadd.f32 %v4292, %v5794
          %v5849 = vadd.f32 %v4293, %v5799
          %v5850 = vadd.f32 %v4294, %v5802
          %v5851 = vadd.f32 %v4295, %v5807
          %v5852 = vadd.f32 %v4296, %v5810
          %v5853 = vadd.f32 %v4297, %v5815
          %v5854 = vadd.f32 %v4298, %v5818
          %v5855 = vadd.f32 %v4299, %v5823
          %v5856 = vadd.f32 %v4300, %v5826
          %v5857 = vadd.f32 %v4301, %v5831
          %v5858 = vadd.f32 %v4302, %v5834
          %v5859 = vadd.f32 %v4303, %v5839
          %v5860 = vadd.f32 %v4304, %v5842
          %v5861 = vpack.c.bf16 %v5846, %v5845
          %v5862 = vpack.c.bf16 %v5848, %v5847
          %v5863 = vpack.c.bf16 %v5850, %v5849
          %v5864 = vpack.c.bf16 %v5852, %v5851
          %v5865 = vpack.c.bf16 %v5854, %v5853
          %v5866 = vpack.c.bf16 %v5856, %v5855
          %v5867 = vpack.c.bf16 %v5858, %v5857
          %v5868 = vpack.c.bf16 %v5860, %v5859
          %v5877 = vunpack.c.l.b16 %v5861
          %v5878 = vunpack.c.h.b16 %v5861
          %v5879 = vunpack.c.l.b16 %v5862
          %v5880 = vunpack.c.h.b16 %v5862
          %v5881 = vunpack.c.l.b16 %v5863
          %v5882 = vunpack.c.h.b16 %v5863
          %v5883 = vunpack.c.l.b16 %v5864
          %v5884 = vunpack.c.h.b16 %v5864
          %v5885 = vunpack.c.l.b16 %v5865
          %v5886 = vunpack.c.h.b16 %v5865
          %v5887 = vunpack.c.l.b16 %v5866
          %v5888 = vunpack.c.h.b16 %v5866
          %v5889 = vunpack.c.l.b16 %v5867
          %v5890 = vunpack.c.h.b16 %v5867
          %v5891 = vunpack.c.l.b16 %v5868
          %v5892 = vunpack.c.h.b16 %v5868
          %v5893 = vpack.c.b16 %v5877, %v5877
          %v5894 = vpack.c.b16 %v5878, %v5878
          %v5895 = vpack.c.b16 %v5879, %v5879
          %v5896 = vpack.c.b16 %v5880, %v5880
          %v5897 = vpack.c.b16 %v5881, %v5881
          %v5898 = vpack.c.b16 %v5882, %v5882
          %v5899 = vpack.c.b16 %v5883, %v5883
          %v5900 = vpack.c.b16 %v5884, %v5884
          %v5901 = vpack.c.b16 %v5885, %v5885
          %v5902 = vpack.c.b16 %v5886, %v5886
          %v5903 = vpack.c.b16 %v5887, %v5887
          %v5904 = vpack.c.b16 %v5888, %v5888
          %v5905 = vpack.c.b16 %v5889, %v5889
          %v5906 = vpack.c.b16 %v5890, %v5890
          %v5907 = vpack.c.b16 %v5891, %v5891
          %v5908 = vpack.c.b16 %v5892, %v5892
          %5925 = vst [vmem:[%s387] sm:$0xf] %v5893
          %5926 = vst [vmem:[%s387 + $0x4] sm:$0xf] %v5894
          %5927 = vst [vmem:[%s387 + $0x8] sm:$0xf] %v5895
          %5928 = vst [vmem:[%s387 + $0xc] sm:$0xf] %v5896
          %5929 = vst [vmem:[%s387 + $0x10] sm:$0xf] %v5897
          %5930 = vst [vmem:[%s387 + $0x14] sm:$0xf] %v5898
          %5931 = vst [vmem:[%s387 + $0x18] sm:$0xf] %v5899
          %5932 = vst [vmem:[%s387 + $0x1c] sm:$0xf] %v5900
          %5933 = vst [vmem:[%s387 + $0x20] sm:$0xf] %v5901
          %5934 = vst [vmem:[%s387 + $0x24] sm:$0xf] %v5902
          %5935 = vst [vmem:[%s387 + $0x28] sm:$0xf] %v5903
          %5936 = vst [vmem:[%s387 + $0x2c] sm:$0xf] %v5904
          %5937 = vst [vmem:[%s387 + $0x30] sm:$0xf] %v5905
          %5938 = vst [vmem:[%s387 + $0x34] sm:$0xf] %v5906
          %5939 = vst [vmem:[%s387 + $0x38] sm:$0xf] %v5907
          %5940 = vst [vmem:[%s387 + $0x3c] sm:$0xf] %v5908
        $region72: #{_lambda_.1} parent=39 // pred_fallthru
          _
        %p5941 = scmp.lt.s32.totalorder %s28, 1
        %s5942 = scalar_select %p5941, %s28, 1
        %p5943 = scmp.lt.s32.totalorder %s29, 1
        %s5944 = scalar_select %p5943, %s29, 1
        %s5945 = smul.addr %s5944, 16
        %s5946 = smul.addr %s5942, 32
        %s5947 = sadd.s32 %s5945, %s5946
        %s5948 = smul.addr %s5947, 4
        %s5949 = scalar_lea.vmem %s5, %s5948
        // Predicated region
        $region73: #{_lambda_.1} parent=39 // pred_check
          %p5950 = pneg %p189
        $region74: #{_lambda_.1} parent=39 // pred_check_branch
          %5952 = sbr.rel (%p5950) target = $region76
        $region75: #{_lambda_.1} parent=39 // pred_region
          _
        $region76: #{_lambda_.1} parent=39 // pred_fallthru
          _
      $region40: #{_lambda_.1} parent=5 // pred_fallthru
        _
      %p5953 = scmp.le.s32.totalorder 2, %s18
      // Predicated region
      $region77: #{_lambda_.1} parent=5 // pred_check
        %p5954 = pneg %p5953
      $region78: #{_lambda_.1} parent=5 // pred_check_branch
        %5956 = sbr.rel (%p5954) target = $region80
      $region79: #{_lambda_.1} parent=5 // pred_region
        %s5957 = ssub.s32 %s18, 2
        // Predicated region
        $region81: #{_lambda_.1} parent=79 // pred_check
          %p5958 = pneg %p195
        $region82: #{_lambda_.1} parent=79 // pred_check_branch
          %5960 = sbr.rel (%p5958) target = $region84
        $region83: #{_lambda_.1} parent=79 // pred_region
          %p5961 = scmp.lt.s32.totalorder %s31, 1
          %s5962 = scalar_select %p5961, %s31, 1
          %p5963 = scmp.lt.s32.totalorder %s32, 1
          %s5964 = scalar_select %p5963, %s32, 1
          %s5965 = smul.addr %s5964, 16
          %s5966 = smul.addr %s5962, 32
          %s5967 = sadd.s32 %s5965, %s5966
          %s5968 = smul.addr %s5967, 4
          %s5969 = scalar_lea.vmem %s5, %s5968
        $region84: #{_lambda_.1} parent=79 // pred_fallthru
          _
      $region80: #{_lambda_.1} parent=5 // pred_fallthru
        _
    $region6: #{_lambda_.1} parent=1 // loop_footer
      %s22 = sadd.s32 1, %s18
    $region7: #{_lambda_.1} parent=1 // loop_footer_branch
      %17 = sbr.rel target = $region3
    $region8: #{_lambda_.1} parent=1 // loop_exit
      _
    %5970 = vsyncpa [#allocation4], 1
    %s5971 = scalar_lea.sflag [#allocation4], 1
    %5972 = vsyncpa %s5971, 1
    %5973 = vsyncpa [#allocation6], 1
    %s5974 = scalar_lea.sflag [#allocation6], 1
    %5975 = vsyncpa %s5974, 1
    %5976 = vsyncpa [#allocation9], 1

</llo_original>
